<compile_context>
chip_gen: v6e
topology: v6e:2x2x1
jax: 0.10.0
libtpu: 0.0.40
codegen_flags: <defaults>
</compile_context>

<pallas_src>
import functools

import jax
import jax.numpy as jnp
from jax import lax
from jax.experimental import pallas as pl
from jax.experimental.pallas import tpu as pltpu


def _shift_zero(x, d, axis):
    """y[..., i, ...] = x[..., i+d, ...] along `axis`; positions shifted in from the
    edge are zero.  `d` is a static Python int, so this is one static slice plus one
    concatenate on an in-register value (no VMEM scratch round trip, no masks)."""
    if d == 0:
        return x
    n = x.shape[axis]
    if abs(d) >= n:
        return jnp.zeros_like(x)
    pad_shape = list(x.shape)
    pad_shape[axis] = abs(d)
    zeros = jnp.zeros(pad_shape, x.dtype)
    if d > 0:
        kept = lax.slice_in_dim(x, d, n, axis=axis)
        return jnp.concatenate([kept, zeros], axis=axis)
    kept = lax.slice_in_dim(x, 0, n + d, axis=axis)
    return jnp.concatenate([zeros, kept], axis=axis)


def _crpe_kernel(q_ref, v_ref, w_ref, o_ref, *, Ch, KMAX, groups):
    """One (head, batch-block) grid step.

    q_ref / v_ref / o_ref: (bb, H, W*Ch) blocks in the native layout.
    w_ref: (KMAX*KMAX + 1, W*Ch) per-head tap weights (each tap's per-channel weight
           broadcast over W) with the bias in the last row.
    groups: static ((K, head_start, head_end), ...) — the tap loop is specialized per
            head group, selected by pl.program_id(0).
    """
    pad_max = KMAX // 2
    n_taps = KMAX * KMAX
    q32 = q_ref[...].astype(jnp.float32)
    v32 = v_ref[...].astype(jnp.float32)
    bb, H, WC = v32.shape
    bias_row = w_ref[n_taps, :].astype(jnp.float32).reshape(1, 1, WC)

    def conv_and_store(K):
        pk = K // 2
        # Accumulator starts at the broadcast bias: no separate epilogue add pass.
        acc = jnp.broadcast_to(bias_row, (bb, H, WC))
        for dy in range(-pk, pk + 1):                       # vertical taps (sublane)
            v_dy = _shift_zero(v32, dy, axis=1)
            for dx in range(-pk, pk + 1):                   # horizontal taps (lanes)
                row = (dy + pad_max) * KMAX + (dx + pad_max)
                w_t = w_ref[row, :].astype(jnp.float32).reshape(1, 1, WC)
                # shift by dx pixels == dx*Ch lanes; zero fill == exact SAME padding.
                acc = acc + _shift_zero(v_dy, dx * Ch, axis=2) * w_t
        o_ref[...] = (q32 * acc).astype(o_ref.dtype)        # fused q * conv_v

    if len(groups) == 1:
        conv_and_store(groups[0][0])
    else:
        head = pl.program_id(0)
        for K, h_start, h_end in groups:                    # static boundaries
            @pl.when(jnp.logical_and(head >= h_start, head < h_end))
            def _(K=K):
                conv_and_store(K)


def _pack_weights(windows, head_splits, weights, biases, Ch, W):
    """Build the per-head tap table: (h, KMAX*KMAX + 1, W*Ch) float32.

    Row (dy+PADMAX)*KMAX + (dx+PADMAX) holds that head's depthwise weight for tap
    (dy, dx) broadcast over the W positions of the merged lane axis; heads whose
    window K < KMAX never read the outer rows (their tap loop is specialized).
    The last row is the bias.  Tiny, and NOT replicated across the batch.
    """
    KMAX = max(windows)
    pad_max = KMAX // 2
    n_taps = KMAX * KMAX
    per_head = []
    for K, hs, wk, bk in zip(windows, head_splits, weights, biases):
        pk = K // 2
        w4 = wk.astype(jnp.float32).reshape(K, K, hs, Ch)
        p = pad_max - pk
        w4 = jnp.pad(w4, ((p, p), (p, p), (0, 0), (0, 0)))           # (KMAX,KMAX,hs,Ch)
        w4 = w4.transpose(2, 0, 1, 3).reshape(hs, n_taps, Ch)        # (hs, taps, Ch)
        b2 = bk.astype(jnp.float32).reshape(hs, 1, Ch)               # (hs, 1,    Ch)
        wb = jnp.concatenate([w4, b2], axis=1)                       # (hs, taps+1, Ch)
        wb = jnp.tile(wb[:, :, None, :], (1, 1, W, 1)).reshape(hs, n_taps + 1, W * Ch)
        per_head.append(wb)
    return jnp.concatenate(per_head, axis=0)                          # (h, taps+1, W*Ch)


def conv_rel_pos_enc(q, v, size, windows, head_splits, weights, biases):
    """Fused ConvRelPosEnc forward.  q, v: (B, h, N, Ch), N == H*W; returns q * conv(v)."""
    B, h, N, Ch = q.shape
    H, W = size
    assert N == H * W
    assert v.shape == q.shape
    assert sum(head_splits) == h
    assert all(k % 2 == 1 for k in windows)
    WC = W * Ch
    KMAX = max(windows)
    n_taps = KMAX * KMAX

    # Free reshapes only (contiguous dim split/merge -> no HBM repack):
    q_r = q.reshape(B, h, H, WC)
    v_r = v.reshape(B, h, H, WC)
    wb = _pack_weights(windows, head_splits, weights, biases, Ch, W)  # (h, taps+1, WC)

    # Batch-block size: largest divisor of B whose q block is <= 1 MiB (v/out match),
    # keeping per-step VMEM (3 arrays x 2 pipeline buffers + weights + f32 temps) well
    # inside v7x's 64 MiB while amortizing the ~0.35 us/grid-step overhead on v5e/v6e.
    itemsize = jnp.dtype(q.dtype).itemsize
    bb = 1
    for cand in range(B, 0, -1):
        if B % cand == 0 and cand * H * WC * itemsize <= (1 << 20):
            bb = cand
            break
    if h * (B // bb) < 2 and bb > 1:       # guarantee >= 2 grid steps for v7x's 2 TCs
        for cand in range(bb - 1, 0, -1):
            if B % cand == 0:
                bb = cand
                break
    n_b = B // bb

    blk_bytes = bb * H * WC * itemsize
    wb_bytes = (n_taps + 1) * WC * 4
    f32_tile = bb * H * WC * 4
    vmem_limit = 2 * (3 * blk_bytes + wb_bytes) + 8 * f32_tile + (2 << 20)
    vmem_limit = int(min(32 << 20, max(8 << 20, vmem_limit)))          # explicit budget

    group_bounds, start = [], 0
    for K, hs in zip(windows, head_splits):
        group_bounds.append((int(K), int(start), int(start + hs)))
        start += hs

    kern = functools.partial(_crpe_kernel, Ch=Ch, KMAX=KMAX, groups=tuple(group_bounds))

    out = pl.pallas_call(
        kern,
        # head outermost: the weight block index is constant across the inner batch
        # axis, so the (taps+1, WC) table is not re-fetched every step.
        grid=(h, n_b),
        in_specs=[
            pl.BlockSpec((bb, None, H, WC), lambda hd, bi: (bi, hd, 0, 0)),   # q
            pl.BlockSpec((bb, None, H, WC), lambda hd, bi: (bi, hd, 0, 0)),   # v
            pl.BlockSpec((None, n_taps + 1, WC), lambda hd, bi: (hd, 0, 0)),  # w + bias
        ],
        out_specs=pl.BlockSpec((bb, None, H, WC), lambda hd, bi: (bi, hd, 0, 0)),
        out_shape=jax.ShapeDtypeStruct((B, h, H, WC), q.dtype),
        compiler_params=pltpu.CompilerParams(
            dimension_semantics=("parallel", "parallel"),
            vmem_limit_bytes=vmem_limit),
    )(q_r, v_r, wb)

    return out.reshape(B, h, N, Ch)                                   # free reshape


def reference_crpe(q, v, size, windows, head_splits, weights, biases):
    """Pure-JAX reference mirroring the PyTorch module (per-window depthwise convs)."""
    B, h, N, Ch = q.shape
    H, W = size
    v_img = v.transpose(0, 2, 1, 3).reshape(B, H, W, h * Ch)   # NHWC, channel = head*Ch+c
    outs, start = [], 0
    for K, hs, wk, bk in zip(windows, head_splits, weights, biases):
        cw = hs * Ch
        xs = v_img[..., start:start + cw]
        y = lax.conv_general_dilated(
            xs, wk.reshape(K, K, 1, cw), window_strides=(1, 1), padding="SAME",
            dimension_numbers=("NHWC", "HWIO", "NHWC"), feature_group_count=cw)
        outs.append(y + bk)
        start += cw
    conv_v = jnp.concatenate(outs, axis=-1)
    conv_v = conv_v.reshape(B, N, h, Ch).transpose(0, 2, 1, 3)
    return q * conv_v


def init_crpe_params(key, ch, num_heads, window):
    """window: {kernel_size: head_split}, as in the PyTorch constructor."""
    windows = list(window.keys())
    head_splits = list(window.values())
    assert sum(head_splits) == num_heads
    keys = jax.random.split(key, 2 * len(windows))
    weights, biases = [], []
    for idx, (K, hs) in enumerate(zip(windows, head_splits)):
        cw = hs * ch
        weights.append(0.1 * jax.random.normal(keys[2 * idx], (K, K, cw), jnp.float32))
        biases.append(0.1 * jax.random.normal(keys[2 * idx + 1], (cw,), jnp.float32))
    return windows, head_splits, weights, biases


if __name__ == "__main__":
    key = jax.random.PRNGKey(0)
    B, num_heads, Ch = 2, 8, 8
    H, W = 8, 8
    N = H * W
    window = {3: 2, 5: 3, 7: 3}                      # head splits per window size

    kp, kq, kv = jax.random.split(key, 3)
    windows, head_splits, weights, biases = init_crpe_params(kp, Ch, num_heads, window)
    q = jax.random.normal(kq, (B, num_heads, N, Ch), jnp.float32)
    v = jax.random.normal(kv, (B, num_heads, N, Ch), jnp.float32)

    out = conv_rel_pos_enc(q, v, (H, W), windows, head_splits, weights, biases)
    out = jax.block_until_ready(out)

    assert out.shape == (B, num_heads, N, Ch), out.shape
    assert bool(jnp.all(jnp.isfinite(out)))

    ref = reference_crpe(q, v, (H, W), windows, head_splits, weights, biases)
    max_err = float(jnp.max(jnp.abs(out - ref)))
    assert bool(jnp.allclose(out, ref, atol=1e-4, rtol=1e-4)), max_err

    print("KERNEL_OK")
</pallas_src>

<mosaic_0001>
module attributes {stable_mosaic.version = 11 : i64} {
  func.func @_crpe_kernel(%arg0: i32, %arg1: i32, %arg2: memref<2x1x8x64xf32, #tpu.memory_space<vmem>>, %arg3: memref<2x1x8x64xf32, #tpu.memory_space<vmem>>, %arg4: memref<1x50x64xf32, #tpu.memory_space<vmem>>, %arg5: memref<2x1x8x64xf32, #tpu.memory_space<vmem>>) attributes {dimension_semantics = [#tpu.dimension_semantics<parallel>, #tpu.dimension_semantics<parallel>], iteration_bounds = array<i64: 8, 1>, scalar_prefetch = 0 : i64, scratch_operands = 0 : i64, tpu.core_type = #tpu.core_type<tc>, window_params = [{transform_indices = @transform_0, window_bounds = array<i64: 2, 1, 8, 64>}, {transform_indices = @transform_1, window_bounds = array<i64: 2, 1, 8, 64>}, {transform_indices = @transform_2, window_bounds = array<i64: 1, 50, 64>}, {transform_indices = @transform_3, window_bounds = array<i64: 2, 1, 8, 64>}]} {
    %c0 = arith.constant 0 : index
    %c0_0 = arith.constant 0 : index
    %c0_1 = arith.constant 0 : index
    %c0_2 = arith.constant 0 : index
    %0 = vector.load %arg2[%c0, %c0_0, %c0_1, %c0_2] : memref<2x1x8x64xf32, #tpu.memory_space<vmem>>, vector<2x1x8x64xf32>
    %1 = vector.shape_cast %0 : vector<2x1x8x64xf32> to vector<2x8x64xf32>
    %c0_3 = arith.constant 0 : index
    %c0_4 = arith.constant 0 : index
    %c0_5 = arith.constant 0 : index
    %c0_6 = arith.constant 0 : index
    %2 = vector.load %arg3[%c0_3, %c0_4, %c0_5, %c0_6] : memref<2x1x8x64xf32, #tpu.memory_space<vmem>>, vector<2x1x8x64xf32>
    %3 = vector.shape_cast %2 : vector<2x1x8x64xf32> to vector<2x8x64xf32>
    %c0_7 = arith.constant 0 : index
    %c49 = arith.constant 49 : index
    %c0_8 = arith.constant 0 : index
    %4 = vector.load %arg4[%c0_7, %c49, %c0_8] : memref<1x50x64xf32, #tpu.memory_space<vmem>>, vector<1x1x64xf32>
    %5 = vector.shape_cast %4 : vector<1x1x64xf32> to vector<64xf32>
    %6 = vector.shape_cast %5 : vector<64xf32> to vector<1x1x64xf32>
    %c0_i32 = arith.constant 0 : i32
    %7 = arith.cmpi sge, %arg0, %c0_i32 : i32
    %c2_i32 = arith.constant 2 : i32
    %8 = arith.cmpi slt, %arg0, %c2_i32 : i32
    %9 = arith.andi %7, %8 : i1
    %10 = arith.extui %9 : i1 to i32
    %c0_i32_9 = arith.constant 0 : i32
    %11 = arith.cmpi ne, %10, %c0_i32_9 : i32
    scf.if %11 {
      %22 = vector.shape_cast %6 : vector<1x1x64xf32> to vector<1x1x64xf32>
      %23 = vector.broadcast %22 : vector<1x1x64xf32> to vector<2x8x64xf32>
      %cst = arith.constant 0.000000e+00 : f32
      %24 = vector.broadcast %cst : f32 to vector<2x1x64xf32>
      %25 = vector.extract_strided_slice %3 {offsets = [0, 0, 0], sizes = [2, 7, 64], strides = [1, 1, 1]} : vector<2x8x64xf32> to vector<2x7x64xf32>
      %26 = tpu.concatenate %24, %25 in 1 : vector<2x1x64xf32>, vector<2x7x64xf32> -> vector<2x8x64xf32>
      %c0_14 = arith.constant 0 : index
      %c16 = arith.constant 16 : index
      %c0_15 = arith.constant 0 : index
      %27 = vector.load %arg4[%c0_14, %c16, %c0_15] : memref<1x50x64xf32, #tpu.memory_space<vmem>>, vector<1x1x64xf32>
      %28 = vector.shape_cast %27 : vector<1x1x64xf32> to vector<64xf32>
      %29 = vector.shape_cast %28 : vector<64xf32> to vector<1x1x64xf32>
      %cst_16 = arith.constant 0.000000e+00 : f32
      %30 = vector.broadcast %cst_16 : f32 to vector<2x8x8xf32>
      %31 = vector.extract_strided_slice %26 {offsets = [0, 0, 0], sizes = [2, 8, 56], strides = [1, 1, 1]} : vector<2x8x64xf32> to vector<2x8x56xf32>
      %32 = tpu.concatenate %30, %31 in 2 : vector<2x8x8xf32>, vector<2x8x56xf32> -> vector<2x8x64xf32>
      %33 = vector.broadcast %29 : vector<1x1x64xf32> to vector<2x8x64xf32>
      %34 = arith.mulf %32, %33 : vector<2x8x64xf32>
      %35 = arith.addf %23, %34 : vector<2x8x64xf32>
      %c0_17 = arith.constant 0 : index
      %c17 = arith.constant 17 : index
      %c0_18 = arith.constant 0 : index
      %36 = vector.load %arg4[%c0_17, %c17, %c0_18] : memref<1x50x64xf32, #tpu.memory_space<vmem>>, vector<1x1x64xf32>
      %37 = vector.shape_cast %36 : vector<1x1x64xf32> to vector<64xf32>
      %38 = vector.shape_cast %37 : vector<64xf32> to vector<1x1x64xf32>
      %39 = vector.broadcast %38 : vector<1x1x64xf32> to vector<2x8x64xf32>
      %40 = arith.mulf %26, %39 : vector<2x8x64xf32>
      %41 = arith.addf %35, %40 : vector<2x8x64xf32>
      %c0_19 = arith.constant 0 : index
      %c18 = arith.constant 18 : index
      %c0_20 = arith.constant 0 : index
      %42 = vector.load %arg4[%c0_19, %c18, %c0_20] : memref<1x50x64xf32, #tpu.memory_space<vmem>>, vector<1x1x64xf32>
      %43 = vector.shape_cast %42 : vector<1x1x64xf32> to vector<64xf32>
      %44 = vector.shape_cast %43 : vector<64xf32> to vector<1x1x64xf32>
      %cst_21 = arith.constant 0.000000e+00 : f32
      %45 = vector.broadcast %cst_21 : f32 to vector<2x8x8xf32>
      %46 = vector.extract_strided_slice %26 {offsets = [0, 0, 8], sizes = [2, 8, 56], strides = [1, 1, 1]} : vector<2x8x64xf32> to vector<2x8x56xf32>
      %47 = tpu.concatenate %46, %45 in 2 : vector<2x8x56xf32>, vector<2x8x8xf32> -> vector<2x8x64xf32>
      %48 = vector.broadcast %44 : vector<1x1x64xf32> to vector<2x8x64xf32>
      %49 = arith.mulf %47, %48 : vector<2x8x64xf32>
      %50 = arith.addf %41, %49 : vector<2x8x64xf32>
      %c0_22 = arith.constant 0 : index
      %c23 = arith.constant 23 : index
      %c0_23 = arith.constant 0 : index
      %51 = vector.load %arg4[%c0_22, %c23, %c0_23] : memref<1x50x64xf32, #tpu.memory_space<vmem>>, vector<1x1x64xf32>
      %52 = vector.shape_cast %51 : vector<1x1x64xf32> to vector<64xf32>
      %53 = vector.shape_cast %52 : vector<64xf32> to vector<1x1x64xf32>
      %cst_24 = arith.constant 0.000000e+00 : f32
      %54 = vector.broadcast %cst_24 : f32 to vector<2x8x8xf32>
      %55 = vector.extract_strided_slice %3 {offsets = [0, 0, 0], sizes = [2, 8, 56], strides = [1, 1, 1]} : vector<2x8x64xf32> to vector<2x8x56xf32>
      %56 = tpu.concatenate %54, %55 in 2 : vector<2x8x8xf32>, vector<2x8x56xf32> -> vector<2x8x64xf32>
      %57 = vector.broadcast %53 : vector<1x1x64xf32> to vector<2x8x64xf32>
      %58 = arith.mulf %56, %57 : vector<2x8x64xf32>
      %59 = arith.addf %50, %58 : vector<2x8x64xf32>
      %c0_25 = arith.constant 0 : index
      %c24 = arith.constant 24 : index
      %c0_26 = arith.constant 0 : index
      %60 = vector.load %arg4[%c0_25, %c24, %c0_26] : memref<1x50x64xf32, #tpu.memory_space<vmem>>, vector<1x1x64xf32>
      %61 = vector.shape_cast %60 : vector<1x1x64xf32> to vector<64xf32>
      %62 = vector.shape_cast %61 : vector<64xf32> to vector<1x1x64xf32>
      %63 = vector.broadcast %62 : vector<1x1x64xf32> to vector<2x8x64xf32>
      %64 = arith.mulf %3, %63 : vector<2x8x64xf32>
      %65 = arith.addf %59, %64 : vector<2x8x64xf32>
      %c0_27 = arith.constant 0 : index
      %c25 = arith.constant 25 : index
      %c0_28 = arith.constant 0 : index
      %66 = vector.load %arg4[%c0_27, %c25, %c0_28] : memref<1x50x64xf32, #tpu.memory_space<vmem>>, vector<1x1x64xf32>
      %67 = vector.shape_cast %66 : vector<1x1x64xf32> to vector<64xf32>
      %68 = vector.shape_cast %67 : vector<64xf32> to vector<1x1x64xf32>
      %cst_29 = arith.constant 0.000000e+00 : f32
      %69 = vector.broadcast %cst_29 : f32 to vector<2x8x8xf32>
      %70 = vector.extract_strided_slice %3 {offsets = [0, 0, 8], sizes = [2, 8, 56], strides = [1, 1, 1]} : vector<2x8x64xf32> to vector<2x8x56xf32>
      %71 = tpu.concatenate %70, %69 in 2 : vector<2x8x56xf32>, vector<2x8x8xf32> -> vector<2x8x64xf32>
      %72 = vector.broadcast %68 : vector<1x1x64xf32> to vector<2x8x64xf32>
      %73 = arith.mulf %71, %72 : vector<2x8x64xf32>
      %74 = arith.addf %65, %73 : vector<2x8x64xf32>
      %cst_30 = arith.constant 0.000000e+00 : f32
      %75 = vector.broadcast %cst_30 : f32 to vector<2x1x64xf32>
      %76 = vector.extract_strided_slice %3 {offsets = [0, 1, 0], sizes = [2, 7, 64], strides = [1, 1, 1]} : vector<2x8x64xf32> to vector<2x7x64xf32>
      %77 = tpu.concatenate %76, %75 in 1 : vector<2x7x64xf32>, vector<2x1x64xf32> -> vector<2x8x64xf32>
      %c0_31 = arith.constant 0 : index
      %c30 = arith.constant 30 : index
      %c0_32 = arith.constant 0 : index
      %78 = vector.load %arg4[%c0_31, %c30, %c0_32] : memref<1x50x64xf32, #tpu.memory_space<vmem>>, vector<1x1x64xf32>
      %79 = vector.shape_cast %78 : vector<1x1x64xf32> to vector<64xf32>
      %80 = vector.shape_cast %79 : vector<64xf32> to vector<1x1x64xf32>
      %cst_33 = arith.constant 0.000000e+00 : f32
      %81 = vector.broadcast %cst_33 : f32 to vector<2x8x8xf32>
      %82 = vector.extract_strided_slice %77 {offsets = [0, 0, 0], sizes = [2, 8, 56], strides = [1, 1, 1]} : vector<2x8x64xf32> to vector<2x8x56xf32>
      %83 = tpu.concatenate %81, %82 in 2 : vector<2x8x8xf32>, vector<2x8x56xf32> -> vector<2x8x64xf32>
      %84 = vector.broadcast %80 : vector<1x1x64xf32> to vector<2x8x64xf32>
      %85 = arith.mulf %83, %84 : vector<2x8x64xf32>
      %86 = arith.addf %74, %85 : vector<2x8x64xf32>
      %c0_34 = arith.constant 0 : index
      %c31 = arith.constant 31 : index
      %c0_35 = arith.constant 0 : index
      %87 = vector.load %arg4[%c0_34, %c31, %c0_35] : memref<1x50x64xf32, #tpu.memory_space<vmem>>, vector<1x1x64xf32>
      %88 = vector.shape_cast %87 : vector<1x1x64xf32> to vector<64xf32>
      %89 = vector.shape_cast %88 : vector<64xf32> to vector<1x1x64xf32>
      %90 = vector.broadcast %89 : vector<1x1x64xf32> to vector<2x8x64xf32>
      %91 = arith.mulf %77, %90 : vector<2x8x64xf32>
      %92 = arith.addf %86, %91 : vector<2x8x64xf32>
      %c0_36 = arith.constant 0 : index
      %c32 = arith.constant 32 : index
      %c0_37 = arith.constant 0 : index
      %93 = vector.load %arg4[%c0_36, %c32, %c0_37] : memref<1x50x64xf32, #tpu.memory_space<vmem>>, vector<1x1x64xf32>
      %94 = vector.shape_cast %93 : vector<1x1x64xf32> to vector<64xf32>
      %95 = vector.shape_cast %94 : vector<64xf32> to vector<1x1x64xf32>
      %cst_38 = arith.constant 0.000000e+00 : f32
      %96 = vector.broadcast %cst_38 : f32 to vector<2x8x8xf32>
      %97 = vector.extract_strided_slice %77 {offsets = [0, 0, 8], sizes = [2, 8, 56], strides = [1, 1, 1]} : vector<2x8x64xf32> to vector<2x8x56xf32>
      %98 = tpu.concatenate %97, %96 in 2 : vector<2x8x56xf32>, vector<2x8x8xf32> -> vector<2x8x64xf32>
      %99 = vector.broadcast %95 : vector<1x1x64xf32> to vector<2x8x64xf32>
      %100 = arith.mulf %98, %99 : vector<2x8x64xf32>
      %101 = arith.addf %92, %100 : vector<2x8x64xf32>
      %102 = arith.mulf %1, %101 : vector<2x8x64xf32>
      %c0_39 = arith.constant 0 : index
      %c0_40 = arith.constant 0 : index
      %c0_41 = arith.constant 0 : index
      %c0_42 = arith.constant 0 : index
      %103 = vector.load %arg5[%c0_39, %c0_40, %c0_41, %c0_42] : memref<2x1x8x64xf32, #tpu.memory_space<vmem>>, vector<2x1x8x64xf32>
      %104 = vector.shape_cast %103 : vector<2x1x8x64xf32> to vector<2x8x64xf32>
      %105 = vector.shape_cast %102 : vector<2x8x64xf32> to vector<2x1x8x64xf32>
      tpu.vector_store %arg5[%c0_39, %c0_40, %c0_41, %c0_42], %105 {strides = array<i32>} : memref<2x1x8x64xf32, #tpu.memory_space<vmem>>, vector<2x1x8x64xf32>,
    } else {
    }
    %c2_i32_10 = arith.constant 2 : i32
    %12 = arith.cmpi sge, %arg0, %c2_i32_10 : i32
    %c5_i32 = arith.constant 5 : i32
    %13 = arith.cmpi slt, %arg0, %c5_i32 : i32
    %14 = arith.andi %12, %13 : i1
    %15 = arith.extui %14 : i1 to i32
    %c0_i32_11 = arith.constant 0 : i32
    %16 = arith.cmpi ne, %15, %c0_i32_11 : i32
    scf.if %16 {
      %22 = vector.shape_cast %6 : vector<1x1x64xf32> to vector<1x1x64xf32>
      %23 = vector.broadcast %22 : vector<1x1x64xf32> to vector<2x8x64xf32>
      %cst = arith.constant 0.000000e+00 : f32
      %24 = vector.broadcast %cst : f32 to vector<2x2x64xf32>
      %25 = vector.extract_strided_slice %3 {offsets = [0, 0, 0], sizes = [2, 6, 64], strides = [1, 1, 1]} : vector<2x8x64xf32> to vector<2x6x64xf32>
      %26 = tpu.concatenate %24, %25 in 1 : vector<2x2x64xf32>, vector<2x6x64xf32> -> vector<2x8x64xf32>
      %c0_14 = arith.constant 0 : index
      %c8 = arith.constant 8 : index
      %c0_15 = arith.constant 0 : index
      %27 = vector.load %arg4[%c0_14, %c8, %c0_15] : memref<1x50x64xf32, #tpu.memory_space<vmem>>, vector<1x1x64xf32>
      %28 = vector.shape_cast %27 : vector<1x1x64xf32> to vector<64xf32>
      %29 = vector.shape_cast %28 : vector<64xf32> to vector<1x1x64xf32>
      %cst_16 = arith.constant 0.000000e+00 : f32
      %30 = vector.broadcast %cst_16 : f32 to vector<2x8x16xf32>
      %31 = vector.extract_strided_slice %26 {offsets = [0, 0, 0], sizes = [2, 8, 48], strides = [1, 1, 1]} : vector<2x8x64xf32> to vector<2x8x48xf32>
      %32 = tpu.concatenate %30, %31 in 2 : vector<2x8x16xf32>, vector<2x8x48xf32> -> vector<2x8x64xf32>
      %33 = vector.broadcast %29 : vector<1x1x64xf32> to vector<2x8x64xf32>
      %34 = arith.mulf %32, %33 : vector<2x8x64xf32>
      %35 = arith.addf %23, %34 : vector<2x8x64xf32>
      %c0_17 = arith.constant 0 : index
      %c9 = arith.constant 9 : index
      %c0_18 = arith.constant 0 : index
      %36 = vector.load %arg4[%c0_17, %c9, %c0_18] : memref<1x50x64xf32, #tpu.memory_space<vmem>>, vector<1x1x64xf32>
      %37 = vector.shape_cast %36 : vector<1x1x64xf32> to vector<64xf32>
      %38 = vector.shape_cast %37 : vector<64xf32> to vector<1x1x64xf32>
      %cst_19 = arith.constant 0.000000e+00 : f32
      %39 = vector.broadcast %cst_19 : f32 to vector<2x8x8xf32>
      %40 = vector.extract_strided_slice %26 {offsets = [0, 0, 0], sizes = [2, 8, 56], strides = [1, 1, 1]} : vector<2x8x64xf32> to vector<2x8x56xf32>
      %41 = tpu.concatenate %39, %40 in 2 : vector<2x8x8xf32>, vector<2x8x56xf32> -> vector<2x8x64xf32>
      %42 = vector.broadcast %38 : vector<1x1x64xf32> to vector<2x8x64xf32>
      %43 = arith.mulf %41, %42 : vector<2x8x64xf32>
      %44 = arith.addf %35, %43 : vector<2x8x64xf32>
      %c0_20 = arith.constant 0 : index
      %c10 = arith.constant 10 : index
      %c0_21 = arith.constant 0 : index
      %45 = vector.load %arg4[%c0_20, %c10, %c0_21] : memref<1x50x64xf32, #tpu.memory_space<vmem>>, vector<1x1x64xf32>
      %46 = vector.shape_cast %45 : vector<1x1x64xf32> to vector<64xf32>
      %47 = vector.shape_cast %46 : vector<64xf32> to vector<1x1x64xf32>
      %48 = vector.broadcast %47 : vector<1x1x64xf32> to vector<2x8x64xf32>
      %49 = arith.mulf %26, %48 : vector<2x8x64xf32>
      %50 = arith.addf %44, %49 : vector<2x8x64xf32>
      %c0_22 = arith.constant 0 : index
      %c11 = arith.constant 11 : index
      %c0_23 = arith.constant 0 : index
      %51 = vector.load %arg4[%c0_22, %c11, %c0_23] : memref<1x50x64xf32, #tpu.memory_space<vmem>>, vector<1x1x64xf32>
      %52 = vector.shape_cast %51 : vector<1x1x64xf32> to vector<64xf32>
      %53 = vector.shape_cast %52 : vector<64xf32> to vector<1x1x64xf32>
      %cst_24 = arith.constant 0.000000e+00 : f32
      %54 = vector.broadcast %cst_24 : f32 to vector<2x8x8xf32>
      %55 = vector.extract_strided_slice %26 {offsets = [0, 0, 8], sizes = [2, 8, 56], strides = [1, 1, 1]} : vector<2x8x64xf32> to vector<2x8x56xf32>
      %56 = tpu.concatenate %55, %54 in 2 : vector<2x8x56xf32>, vector<2x8x8xf32> -> vector<2x8x64xf32>
      %57 = vector.broadcast %53 : vector<1x1x64xf32> to vector<2x8x64xf32>
      %58 = arith.mulf %56, %57 : vector<2x8x64xf32>
      %59 = arith.addf %50, %58 : vector<2x8x64xf32>
      %c0_25 = arith.constant 0 : index
      %c12 = arith.constant 12 : index
      %c0_26 = arith.constant 0 : index
      %60 = vector.load %arg4[%c0_25, %c12, %c0_26] : memref<1x50x64xf32, #tpu.memory_space<vmem>>, vector<1x1x64xf32>
      %61 = vector.shape_cast %60 : vector<1x1x64xf32> to vector<64xf32>
      %62 = vector.shape_cast %61 : vector<64xf32> to vector<1x1x64xf32>
      %cst_27 = arith.constant 0.000000e+00 : f32
      %63 = vector.broadcast %cst_27 : f32 to vector<2x8x16xf32>
      %64 = vector.extract_strided_slice %26 {offsets = [0, 0, 16], sizes = [2, 8, 48], strides = [1, 1, 1]} : vector<2x8x64xf32> to vector<2x8x48xf32>
      %65 = tpu.concatenate %64, %63 in 2 : vector<2x8x48xf32>, vector<2x8x16xf32> -> vector<2x8x64xf32>
      %66 = vector.broadcast %62 : vector<1x1x64xf32> to vector<2x8x64xf32>
      %67 = arith.mulf %65, %66 : vector<2x8x64xf32>
      %68 = arith.addf %59, %67 : vector<2x8x64xf32>
      %cst_28 = arith.constant 0.000000e+00 : f32
      %69 = vector.broadcast %cst_28 : f32 to vector<2x1x64xf32>
      %70 = vector.extract_strided_slice %3 {offsets = [0, 0, 0], sizes = [2, 7, 64], strides = [1, 1, 1]} : vector<2x8x64xf32> to vector<2x7x64xf32>
      %71 = tpu.concatenate %69, %70 in 1 : vector<2x1x64xf32>, vector<2x7x64xf32> -> vector<2x8x64xf32>
      %c0_29 = arith.constant 0 : index
      %c15 = arith.constant 15 : index
      %c0_30 = arith.constant 0 : index
      %72 = vector.load %arg4[%c0_29, %c15, %c0_30] : memref<1x50x64xf32, #tpu.memory_space<vmem>>, vector<1x1x64xf32>
      %73 = vector.shape_cast %72 : vector<1x1x64xf32> to vector<64xf32>
      %74 = vector.shape_cast %73 : vector<64xf32> to vector<1x1x64xf32>
      %cst_31 = arith.constant 0.000000e+00 : f32
      %75 = vector.broadcast %cst_31 : f32 to vector<2x8x16xf32>
      %76 = vector.extract_strided_slice %71 {offsets = [0, 0, 0], sizes = [2, 8, 48], strides = [1, 1, 1]} : vector<2x8x64xf32> to vector<2x8x48xf32>
      %77 = tpu.concatenate %75, %76 in 2 : vector<2x8x16xf32>, vector<2x8x48xf32> -> vector<2x8x64xf32>
      %78 = vector.broadcast %74 : vector<1x1x64xf32> to vector<2x8x64xf32>
      %79 = arith.mulf %77, %78 : vector<2x8x64xf32>
      %80 = arith.addf %68, %79 : vector<2x8x64xf32>
      %c0_32 = arith.constant 0 : index
      %c16 = arith.constant 16 : index
      %c0_33 = arith.constant 0 : index
      %81 = vector.load %arg4[%c0_32, %c16, %c0_33] : memref<1x50x64xf32, #tpu.memory_space<vmem>>, vector<1x1x64xf32>
      %82 = vector.shape_cast %81 : vector<1x1x64xf32> to vector<64xf32>
      %83 = vector.shape_cast %82 : vector<64xf32> to vector<1x1x64xf32>
      %cst_34 = arith.constant 0.000000e+00 : f32
      %84 = vector.broadcast %cst_34 : f32 to vector<2x8x8xf32>
      %85 = vector.extract_strided_slice %71 {offsets = [0, 0, 0], sizes = [2, 8, 56], strides = [1, 1, 1]} : vector<2x8x64xf32> to vector<2x8x56xf32>
      %86 = tpu.concatenate %84, %85 in 2 : vector<2x8x8xf32>, vector<2x8x56xf32> -> vector<2x8x64xf32>
      %87 = vector.broadcast %83 : vector<1x1x64xf32> to vector<2x8x64xf32>
      %88 = arith.mulf %86, %87 : vector<2x8x64xf32>
      %89 = arith.addf %80, %88 : vector<2x8x64xf32>
      %c0_35 = arith.constant 0 : index
      %c17 = arith.constant 17 : index
      %c0_36 = arith.constant 0 : index
      %90 = vector.load %arg4[%c0_35, %c17, %c0_36] : memref<1x50x64xf32, #tpu.memory_space<vmem>>, vector<1x1x64xf32>
      %91 = vector.shape_cast %90 : vector<1x1x64xf32> to vector<64xf32>
      %92 = vector.shape_cast %91 : vector<64xf32> to vector<1x1x64xf32>
      %93 = vector.broadcast %92 : vector<1x1x64xf32> to vector<2x8x64xf32>
      %94 = arith.mulf %71, %93 : vector<2x8x64xf32>
      %95 = arith.addf %89, %94 : vector<2x8x64xf32>
      %c0_37 = arith.constant 0 : index
      %c18 = arith.constant 18 : index
      %c0_38 = arith.constant 0 : index
      %96 = vector.load %arg4[%c0_37, %c18, %c0_38] : memref<1x50x64xf32, #tpu.memory_space<vmem>>, vector<1x1x64xf32>
      %97 = vector.shape_cast %96 : vector<1x1x64xf32> to vector<64xf32>
      %98 = vector.shape_cast %97 : vector<64xf32> to vector<1x1x64xf32>
      %cst_39 = arith.constant 0.000000e+00 : f32
      %99 = vector.broadcast %cst_39 : f32 to vector<2x8x8xf32>
      %100 = vector.extract_strided_slice %71 {offsets = [0, 0, 8], sizes = [2, 8, 56], strides = [1, 1, 1]} : vector<2x8x64xf32> to vector<2x8x56xf32>
      %101 = tpu.concatenate %100, %99 in 2 : vector<2x8x56xf32>, vector<2x8x8xf32> -> vector<2x8x64xf32>
      %102 = vector.broadcast %98 : vector<1x1x64xf32> to vector<2x8x64xf32>
      %103 = arith.mulf %101, %102 : vector<2x8x64xf32>
      %104 = arith.addf %95, %103 : vector<2x8x64xf32>
      %c0_40 = arith.constant 0 : index
      %c19 = arith.constant 19 : index
      %c0_41 = arith.constant 0 : index
      %105 = vector.load %arg4[%c0_40, %c19, %c0_41] : memref<1x50x64xf32, #tpu.memory_space<vmem>>, vector<1x1x64xf32>
      %106 = vector.shape_cast %105 : vector<1x1x64xf32> to vector<64xf32>
      %107 = vector.shape_cast %106 : vector<64xf32> to vector<1x1x64xf32>
      %cst_42 = arith.constant 0.000000e+00 : f32
      %108 = vector.broadcast %cst_42 : f32 to vector<2x8x16xf32>
      %109 = vector.extract_strided_slice %71 {offsets = [0, 0, 16], sizes = [2, 8, 48], strides = [1, 1, 1]} : vector<2x8x64xf32> to vector<2x8x48xf32>
      %110 = tpu.concatenate %109, %108 in 2 : vector<2x8x48xf32>, vector<2x8x16xf32> -> vector<2x8x64xf32>
      %111 = vector.broadcast %107 : vector<1x1x64xf32> to vector<2x8x64xf32>
      %112 = arith.mulf %110, %111 : vector<2x8x64xf32>
      %113 = arith.addf %104, %112 : vector<2x8x64xf32>
      %c0_43 = arith.constant 0 : index
      %c22 = arith.constant 22 : index
      %c0_44 = arith.constant 0 : index
      %114 = vector.load %arg4[%c0_43, %c22, %c0_44] : memref<1x50x64xf32, #tpu.memory_space<vmem>>, vector<1x1x64xf32>
      %115 = vector.shape_cast %114 : vector<1x1x64xf32> to vector<64xf32>
      %116 = vector.shape_cast %115 : vector<64xf32> to vector<1x1x64xf32>
      %cst_45 = arith.constant 0.000000e+00 : f32
      %117 = vector.broadcast %cst_45 : f32 to vector<2x8x16xf32>
      %118 = vector.extract_strided_slice %3 {offsets = [0, 0, 0], sizes = [2, 8, 48], strides = [1, 1, 1]} : vector<2x8x64xf32> to vector<2x8x48xf32>
      %119 = tpu.concatenate %117, %118 in 2 : vector<2x8x16xf32>, vector<2x8x48xf32> -> vector<2x8x64xf32>
      %120 = vector.broadcast %116 : vector<1x1x64xf32> to vector<2x8x64xf32>
      %121 = arith.mulf %119, %120 : vector<2x8x64xf32>
      %122 = arith.addf %113, %121 : vector<2x8x64xf32>
      %c0_46 = arith.constant 0 : index
      %c23 = arith.constant 23 : index
      %c0_47 = arith.constant 0 : index
      %123 = vector.load %arg4[%c0_46, %c23, %c0_47] : memref<1x50x64xf32, #tpu.memory_space<vmem>>, vector<1x1x64xf32>
      %124 = vector.shape_cast %123 : vector<1x1x64xf32> to vector<64xf32>
      %125 = vector.shape_cast %124 : vector<64xf32> to vector<1x1x64xf32>
      %cst_48 = arith.constant 0.000000e+00 : f32
      %126 = vector.broadcast %cst_48 : f32 to vector<2x8x8xf32>
      %127 = vector.extract_strided_slice %3 {offsets = [0, 0, 0], sizes = [2, 8, 56], strides = [1, 1, 1]} : vector<2x8x64xf32> to vector<2x8x56xf32>
      %128 = tpu.concatenate %126, %127 in 2 : vector<2x8x8xf32>, vector<2x8x56xf32> -> vector<2x8x64xf32>
      %129 = vector.broadcast %125 : vector<1x1x64xf32> to vector<2x8x64xf32>
      %130 = arith.mulf %128, %129 : vector<2x8x64xf32>
      %131 = arith.addf %122, %130 : vector<2x8x64xf32>
      %c0_49 = arith.constant 0 : index
      %c24 = arith.constant 24 : index
      %c0_50 = arith.constant 0 : index
      %132 = vector.load %arg4[%c0_49, %c24, %c0_50] : memref<1x50x64xf32, #tpu.memory_space<vmem>>, vector<1x1x64xf32>
      %133 = vector.shape_cast %132 : vector<1x1x64xf32> to vector<64xf32>
      %134 = vector.shape_cast %133 : vector<64xf32> to vector<1x1x64xf32>
      %135 = vector.broadcast %134 : vector<1x1x64xf32> to vector<2x8x64xf32>
      %136 = arith.mulf %3, %135 : vector<2x8x64xf32>
      %137 = arith.addf %131, %136 : vector<2x8x64xf32>
      %c0_51 = arith.constant 0 : index
      %c25 = arith.constant 25 : index
      %c0_52 = arith.constant 0 : index
      %138 = vector.load %arg4[%c0_51, %c25, %c0_52] : memref<1x50x64xf32, #tpu.memory_space<vmem>>, vector<1x1x64xf32>
      %139 = vector.shape_cast %138 : vector<1x1x64xf32> to vector<64xf32>
      %140 = vector.shape_cast %139 : vector<64xf32> to vector<1x1x64xf32>
      %cst_53 = arith.constant 0.000000e+00 : f32
      %141 = vector.broadcast %cst_53 : f32 to vector<2x8x8xf32>
      %142 = vector.extract_strided_slice %3 {offsets = [0, 0, 8], sizes = [2, 8, 56], strides = [1, 1, 1]} : vector<2x8x64xf32> to vector<2x8x56xf32>
      %143 = tpu.concatenate %142, %141 in 2 : vector<2x8x56xf32>, vector<2x8x8xf32> -> vector<2x8x64xf32>
      %144 = vector.broadcast %140 : vector<1x1x64xf32> to vector<2x8x64xf32>
      %145 = arith.mulf %143, %144 : vector<2x8x64xf32>
      %146 = arith.addf %137, %145 : vector<2x8x64xf32>
      %c0_54 = arith.constant 0 : index
      %c26 = arith.constant 26 : index
      %c0_55 = arith.constant 0 : index
      %147 = vector.load %arg4[%c0_54, %c26, %c0_55] : memref<1x50x64xf32, #tpu.memory_space<vmem>>, vector<1x1x64xf32>
      %148 = vector.shape_cast %147 : vector<1x1x64xf32> to vector<64xf32>
      %149 = vector.shape_cast %148 : vector<64xf32> to vector<1x1x64xf32>
      %cst_56 = arith.constant 0.000000e+00 : f32
      %150 = vector.broadcast %cst_56 : f32 to vector<2x8x16xf32>
      %151 = vector.extract_strided_slice %3 {offsets = [0, 0, 16], sizes = [2, 8, 48], strides = [1, 1, 1]} : vector<2x8x64xf32> to vector<2x8x48xf32>
      %152 = tpu.concatenate %151, %150 in 2 : vector<2x8x48xf32>, vector<2x8x16xf32> -> vector<2x8x64xf32>
      %153 = vector.broadcast %149 : vector<1x1x64xf32> to vector<2x8x64xf32>
      %154 = arith.mulf %152, %153 : vector<2x8x64xf32>
      %155 = arith.addf %146, %154 : vector<2x8x64xf32>
      %cst_57 = arith.constant 0.000000e+00 : f32
      %156 = vector.broadcast %cst_57 : f32 to vector<2x1x64xf32>
      %157 = vector.extract_strided_slice %3 {offsets = [0, 1, 0], sizes = [2, 7, 64], strides = [1, 1, 1]} : vector<2x8x64xf32> to vector<2x7x64xf32>
      %158 = tpu.concatenate %157, %156 in 1 : vector<2x7x64xf32>, vector<2x1x64xf32> -> vector<2x8x64xf32>
      %c0_58 = arith.constant 0 : index
      %c29 = arith.constant 29 : index
      %c0_59 = arith.constant 0 : index
      %159 = vector.load %arg4[%c0_58, %c29, %c0_59] : memref<1x50x64xf32, #tpu.memory_space<vmem>>, vector<1x1x64xf32>
      %160 = vector.shape_cast %159 : vector<1x1x64xf32> to vector<64xf32>
      %161 = vector.shape_cast %160 : vector<64xf32> to vector<1x1x64xf32>
      %cst_60 = arith.constant 0.000000e+00 : f32
      %162 = vector.broadcast %cst_60 : f32 to vector<2x8x16xf32>
      %163 = vector.extract_strided_slice %158 {offsets = [0, 0, 0], sizes = [2, 8, 48], strides = [1, 1, 1]} : vector<2x8x64xf32> to vector<2x8x48xf32>
      %164 = tpu.concatenate %162, %163 in 2 : vector<2x8x16xf32>, vector<2x8x48xf32> -> vector<2x8x64xf32>
      %165 = vector.broadcast %161 : vector<1x1x64xf32> to vector<2x8x64xf32>
      %166 = arith.mulf %164, %165 : vector<2x8x64xf32>
      %167 = arith.addf %155, %166 : vector<2x8x64xf32>
      %c0_61 = arith.constant 0 : index
      %c30 = arith.constant 30 : index
      %c0_62 = arith.constant 0 : index
      %168 = vector.load %arg4[%c0_61, %c30, %c0_62] : memref<1x50x64xf32, #tpu.memory_space<vmem>>, vector<1x1x64xf32>
      %169 = vector.shape_cast %168 : vector<1x1x64xf32> to vector<64xf32>
      %170 = vector.shape_cast %169 : vector<64xf32> to vector<1x1x64xf32>
      %cst_63 = arith.constant 0.000000e+00 : f32
      %171 = vector.broadcast %cst_63 : f32 to vector<2x8x8xf32>
      %172 = vector.extract_strided_slice %158 {offsets = [0, 0, 0], sizes = [2, 8, 56], strides = [1, 1, 1]} : vector<2x8x64xf32> to vector<2x8x56xf32>
      %173 = tpu.concatenate %171, %172 in 2 : vector<2x8x8xf32>, vector<2x8x56xf32> -> vector<2x8x64xf32>
      %174 = vector.broadcast %170 : vector<1x1x64xf32> to vector<2x8x64xf32>
      %175 = arith.mulf %173, %174 : vector<2x8x64xf32>
      %176 = arith.addf %167, %175 : vector<2x8x64xf32>
      %c0_64 = arith.constant 0 : index
      %c31 = arith.constant 31 : index
      %c0_65 = arith.constant 0 : index
      %177 = vector.load %arg4[%c0_64, %c31, %c0_65] : memref<1x50x64xf32, #tpu.memory_space<vmem>>, vector<1x1x64xf32>
      %178 = vector.shape_cast %177 : vector<1x1x64xf32> to vector<64xf32>
      %179 = vector.shape_cast %178 : vector<64xf32> to vector<1x1x64xf32>
      %180 = vector.broadcast %179 : vector<1x1x64xf32> to vector<2x8x64xf32>
      %181 = arith.mulf %158, %180 : vector<2x8x64xf32>
      %182 = arith.addf %176, %181 : vector<2x8x64xf32>
      %c0_66 = arith.constant 0 : index
      %c32 = arith.constant 32 : index
      %c0_67 = arith.constant 0 : index
      %183 = vector.load %arg4[%c0_66, %c32, %c0_67] : memref<1x50x64xf32, #tpu.memory_space<vmem>>, vector<1x1x64xf32>
      %184 = vector.shape_cast %183 : vector<1x1x64xf32> to vector<64xf32>
      %185 = vector.shape_cast %184 : vector<64xf32> to vector<1x1x64xf32>
      %cst_68 = arith.constant 0.000000e+00 : f32
      %186 = vector.broadcast %cst_68 : f32 to vector<2x8x8xf32>
      %187 = vector.extract_strided_slice %158 {offsets = [0, 0, 8], sizes = [2, 8, 56], strides = [1, 1, 1]} : vector<2x8x64xf32> to vector<2x8x56xf32>
      %188 = tpu.concatenate %187, %186 in 2 : vector<2x8x56xf32>, vector<2x8x8xf32> -> vector<2x8x64xf32>
      %189 = vector.broadcast %185 : vector<1x1x64xf32> to vector<2x8x64xf32>
      %190 = arith.mulf %188, %189 : vector<2x8x64xf32>
      %191 = arith.addf %182, %190 : vector<2x8x64xf32>
      %c0_69 = arith.constant 0 : index
      %c33 = arith.constant 33 : index
      %c0_70 = arith.constant 0 : index
      %192 = vector.load %arg4[%c0_69, %c33, %c0_70] : memref<1x50x64xf32, #tpu.memory_space<vmem>>, vector<1x1x64xf32>
      %193 = vector.shape_cast %192 : vector<1x1x64xf32> to vector<64xf32>
      %194 = vector.shape_cast %193 : vector<64xf32> to vector<1x1x64xf32>
      %cst_71 = arith.constant 0.000000e+00 : f32
      %195 = vector.broadcast %cst_71 : f32 to vector<2x8x16xf32>
      %196 = vector.extract_strided_slice %158 {offsets = [0, 0, 16], sizes = [2, 8, 48], strides = [1, 1, 1]} : vector<2x8x64xf32> to vector<2x8x48xf32>
      %197 = tpu.concatenate %196, %195 in 2 : vector<2x8x48xf32>, vector<2x8x16xf32> -> vector<2x8x64xf32>
      %198 = vector.broadcast %194 : vector<1x1x64xf32> to vector<2x8x64xf32>
      %199 = arith.mulf %197, %198 : vector<2x8x64xf32>
      %200 = arith.addf %191, %199 : vector<2x8x64xf32>
      %cst_72 = arith.constant 0.000000e+00 : f32
      %201 = vector.broadcast %cst_72 : f32 to vector<2x2x64xf32>
      %202 = vector.extract_strided_slice %3 {offsets = [0, 2, 0], sizes = [2, 6, 64], strides = [1, 1, 1]} : vector<2x8x64xf32> to vector<2x6x64xf32>
      %203 = tpu.concatenate %202, %201 in 1 : vector<2x6x64xf32>, vector<2x2x64xf32> -> vector<2x8x64xf32>
      %c0_73 = arith.constant 0 : index
      %c36 = arith.constant 36 : index
      %c0_74 = arith.constant 0 : index
      %204 = vector.load %arg4[%c0_73, %c36, %c0_74] : memref<1x50x64xf32, #tpu.memory_space<vmem>>, vector<1x1x64xf32>
      %205 = vector.shape_cast %204 : vector<1x1x64xf32> to vector<64xf32>
      %206 = vector.shape_cast %205 : vector<64xf32> to vector<1x1x64xf32>
      %cst_75 = arith.constant 0.000000e+00 : f32
      %207 = vector.broadcast %cst_75 : f32 to vector<2x8x16xf32>
      %208 = vector.extract_strided_slice %203 {offsets = [0, 0, 0], sizes = [2, 8, 48], strides = [1, 1, 1]} : vector<2x8x64xf32> to vector<2x8x48xf32>
      %209 = tpu.concatenate %207, %208 in 2 : vector<2x8x16xf32>, vector<2x8x48xf32> -> vector<2x8x64xf32>
      %210 = vector.broadcast %206 : vector<1x1x64xf32> to vector<2x8x64xf32>
      %211 = arith.mulf %209, %210 : vector<2x8x64xf32>
      %212 = arith.addf %200, %211 : vector<2x8x64xf32>
      %c0_76 = arith.constant 0 : index
      %c37 = arith.constant 37 : index
      %c0_77 = arith.constant 0 : index
      %213 = vector.load %arg4[%c0_76, %c37, %c0_77] : memref<1x50x64xf32, #tpu.memory_space<vmem>>, vector<1x1x64xf32>
      %214 = vector.shape_cast %213 : vector<1x1x64xf32> to vector<64xf32>
      %215 = vector.shape_cast %214 : vector<64xf32> to vector<1x1x64xf32>
      %cst_78 = arith.constant 0.000000e+00 : f32
      %216 = vector.broadcast %cst_78 : f32 to vector<2x8x8xf32>
      %217 = vector.extract_strided_slice %203 {offsets = [0, 0, 0], sizes = [2, 8, 56], strides = [1, 1, 1]} : vector<2x8x64xf32> to vector<2x8x56xf32>
      %218 = tpu.concatenate %216, %217 in 2 : vector<2x8x8xf32>, vector<2x8x56xf32> -> vector<2x8x64xf32>
      %219 = vector.broadcast %215 : vector<1x1x64xf32> to vector<2x8x64xf32>
      %220 = arith.mulf %218, %219 : vector<2x8x64xf32>
      %221 = arith.addf %212, %220 : vector<2x8x64xf32>
      %c0_79 = arith.constant 0 : index
      %c38 = arith.constant 38 : index
      %c0_80 = arith.constant 0 : index
      %222 = vector.load %arg4[%c0_79, %c38, %c0_80] : memref<1x50x64xf32, #tpu.memory_space<vmem>>, vector<1x1x64xf32>
      %223 = vector.shape_cast %222 : vector<1x1x64xf32> to vector<64xf32>
      %224 = vector.shape_cast %223 : vector<64xf32> to vector<1x1x64xf32>
      %225 = vector.broadcast %224 : vector<1x1x64xf32> to vector<2x8x64xf32>
      %226 = arith.mulf %203, %225 : vector<2x8x64xf32>
      %227 = arith.addf %221, %226 : vector<2x8x64xf32>
      %c0_81 = arith.constant 0 : index
      %c39 = arith.constant 39 : index
      %c0_82 = arith.constant 0 : index
      %228 = vector.load %arg4[%c0_81, %c39, %c0_82] : memref<1x50x64xf32, #tpu.memory_space<vmem>>, vector<1x1x64xf32>
      %229 = vector.shape_cast %228 : vector<1x1x64xf32> to vector<64xf32>
      %230 = vector.shape_cast %229 : vector<64xf32> to vector<1x1x64xf32>
      %cst_83 = arith.constant 0.000000e+00 : f32
      %231 = vector.broadcast %cst_83 : f32 to vector<2x8x8xf32>
      %232 = vector.extract_strided_slice %203 {offsets = [0, 0, 8], sizes = [2, 8, 56], strides = [1, 1, 1]} : vector<2x8x64xf32> to vector<2x8x56xf32>
      %233 = tpu.concatenate %232, %231 in 2 : vector<2x8x56xf32>, vector<2x8x8xf32> -> vector<2x8x64xf32>
      %234 = vector.broadcast %230 : vector<1x1x64xf32> to vector<2x8x64xf32>
      %235 = arith.mulf %233, %234 : vector<2x8x64xf32>
      %236 = arith.addf %227, %235 : vector<2x8x64xf32>
      %c0_84 = arith.constant 0 : index
      %c40 = arith.constant 40 : index
      %c0_85 = arith.constant 0 : index
      %237 = vector.load %arg4[%c0_84, %c40, %c0_85] : memref<1x50x64xf32, #tpu.memory_space<vmem>>, vector<1x1x64xf32>
      %238 = vector.shape_cast %237 : vector<1x1x64xf32> to vector<64xf32>
      %239 = vector.shape_cast %238 : vector<64xf32> to vector<1x1x64xf32>
      %cst_86 = arith.constant 0.000000e+00 : f32
      %240 = vector.broadcast %cst_86 : f32 to vector<2x8x16xf32>
      %241 = vector.extract_strided_slice %203 {offsets = [0, 0, 16], sizes = [2, 8, 48], strides = [1, 1, 1]} : vector<2x8x64xf32> to vector<2x8x48xf32>
      %242 = tpu.concatenate %241, %240 in 2 : vector<2x8x48xf32>, vector<2x8x16xf32> -> vector<2x8x64xf32>
      %243 = vector.broadcast %239 : vector<1x1x64xf32> to vector<2x8x64xf32>
      %244 = arith.mulf %242, %243 : vector<2x8x64xf32>
      %245 = arith.addf %236, %244 : vector<2x8x64xf32>
      %246 = arith.mulf %1, %245 : vector<2x8x64xf32>
      %c0_87 = arith.constant 0 : index
      %c0_88 = arith.constant 0 : index
      %c0_89 = arith.constant 0 : index
      %c0_90 = arith.constant 0 : index
      %247 = vector.load %arg5[%c0_87, %c0_88, %c0_89, %c0_90] : memref<2x1x8x64xf32, #tpu.memory_space<vmem>>, vector<2x1x8x64xf32>
      %248 = vector.shape_cast %247 : vector<2x1x8x64xf32> to vector<2x8x64xf32>
      %249 = vector.shape_cast %246 : vector<2x8x64xf32> to vector<2x1x8x64xf32>
      tpu.vector_store %arg5[%c0_87, %c0_88, %c0_89, %c0_90], %249 {strides = array<i32>} : memref<2x1x8x64xf32, #tpu.memory_space<vmem>>, vector<2x1x8x64xf32>,
    } else {
    }
    %c5_i32_12 = arith.constant 5 : i32
    %17 = arith.cmpi sge, %arg0, %c5_i32_12 : i32
    %c8_i32 = arith.constant 8 : i32
    %18 = arith.cmpi slt, %arg0, %c8_i32 : i32
    %19 = arith.andi %17, %18 : i1
    %20 = arith.extui %19 : i1 to i32
    %c0_i32_13 = arith.constant 0 : i32
    %21 = arith.cmpi ne, %20, %c0_i32_13 : i32
    scf.if %21 {
      %22 = vector.shape_cast %6 : vector<1x1x64xf32> to vector<1x1x64xf32>
      %23 = vector.broadcast %22 : vector<1x1x64xf32> to vector<2x8x64xf32>
      %cst = arith.constant 0.000000e+00 : f32
      %24 = vector.broadcast %cst : f32 to vector<2x3x64xf32>
      %25 = vector.extract_strided_slice %3 {offsets = [0, 0, 0], sizes = [2, 5, 64], strides = [1, 1, 1]} : vector<2x8x64xf32> to vector<2x5x64xf32>
      %26 = tpu.concatenate %24, %25 in 1 : vector<2x3x64xf32>, vector<2x5x64xf32> -> vector<2x8x64xf32>
      %c0_14 = arith.constant 0 : index
      %c0_15 = arith.constant 0 : index
      %c0_16 = arith.constant 0 : index
      %27 = vector.load %arg4[%c0_14, %c0_15, %c0_16] : memref<1x50x64xf32, #tpu.memory_space<vmem>>, vector<1x1x64xf32>
      %28 = vector.shape_cast %27 : vector<1x1x64xf32> to vector<64xf32>
      %29 = vector.shape_cast %28 : vector<64xf32> to vector<1x1x64xf32>
      %cst_17 = arith.constant 0.000000e+00 : f32
      %30 = vector.broadcast %cst_17 : f32 to vector<2x8x24xf32>
      %31 = vector.extract_strided_slice %26 {offsets = [0, 0, 0], sizes = [2, 8, 40], strides = [1, 1, 1]} : vector<2x8x64xf32> to vector<2x8x40xf32>
      %32 = tpu.concatenate %30, %31 in 2 : vector<2x8x24xf32>, vector<2x8x40xf32> -> vector<2x8x64xf32>
      %33 = vector.broadcast %29 : vector<1x1x64xf32> to vector<2x8x64xf32>
      %34 = arith.mulf %32, %33 : vector<2x8x64xf32>
      %35 = arith.addf %23, %34 : vector<2x8x64xf32>
      %c0_18 = arith.constant 0 : index
      %c1 = arith.constant 1 : index
      %c0_19 = arith.constant 0 : index
      %36 = vector.load %arg4[%c0_18, %c1, %c0_19] : memref<1x50x64xf32, #tpu.memory_space<vmem>>, vector<1x1x64xf32>
      %37 = vector.shape_cast %36 : vector<1x1x64xf32> to vector<64xf32>
      %38 = vector.shape_cast %37 : vector<64xf32> to vector<1x1x64xf32>
      %cst_20 = arith.constant 0.000000e+00 : f32
      %39 = vector.broadcast %cst_20 : f32 to vector<2x8x16xf32>
      %40 = vector.extract_strided_slice %26 {offsets = [0, 0, 0], sizes = [2, 8, 48], strides = [1, 1, 1]} : vector<2x8x64xf32> to vector<2x8x48xf32>
      %41 = tpu.concatenate %39, %40 in 2 : vector<2x8x16xf32>, vector<2x8x48xf32> -> vector<2x8x64xf32>
      %42 = vector.broadcast %38 : vector<1x1x64xf32> to vector<2x8x64xf32>
      %43 = arith.mulf %41, %42 : vector<2x8x64xf32>
      %44 = arith.addf %35, %43 : vector<2x8x64xf32>
      %c0_21 = arith.constant 0 : index
      %c2 = arith.constant 2 : index
      %c0_22 = arith.constant 0 : index
      %45 = vector.load %arg4[%c0_21, %c2, %c0_22] : memref<1x50x64xf32, #tpu.memory_space<vmem>>, vector<1x1x64xf32>
      %46 = vector.shape_cast %45 : vector<1x1x64xf32> to vector<64xf32>
      %47 = vector.shape_cast %46 : vector<64xf32> to vector<1x1x64xf32>
      %cst_23 = arith.constant 0.000000e+00 : f32
      %48 = vector.broadcast %cst_23 : f32 to vector<2x8x8xf32>
      %49 = vector.extract_strided_slice %26 {offsets = [0, 0, 0], sizes = [2, 8, 56], strides = [1, 1, 1]} : vector<2x8x64xf32> to vector<2x8x56xf32>
      %50 = tpu.concatenate %48, %49 in 2 : vector<2x8x8xf32>, vector<2x8x56xf32> -> vector<2x8x64xf32>
      %51 = vector.broadcast %47 : vector<1x1x64xf32> to vector<2x8x64xf32>
      %52 = arith.mulf %50, %51 : vector<2x8x64xf32>
      %53 = arith.addf %44, %52 : vector<2x8x64xf32>
      %c0_24 = arith.constant 0 : index
      %c3 = arith.constant 3 : index
      %c0_25 = arith.constant 0 : index
      %54 = vector.load %arg4[%c0_24, %c3, %c0_25] : memref<1x50x64xf32, #tpu.memory_space<vmem>>, vector<1x1x64xf32>
      %55 = vector.shape_cast %54 : vector<1x1x64xf32> to vector<64xf32>
      %56 = vector.shape_cast %55 : vector<64xf32> to vector<1x1x64xf32>
      %57 = vector.broadcast %56 : vector<1x1x64xf32> to vector<2x8x64xf32>
      %58 = arith.mulf %26, %57 : vector<2x8x64xf32>
      %59 = arith.addf %53, %58 : vector<2x8x64xf32>
      %c0_26 = arith.constant 0 : index
      %c4 = arith.constant 4 : index
      %c0_27 = arith.constant 0 : index
      %60 = vector.load %arg4[%c0_26, %c4, %c0_27] : memref<1x50x64xf32, #tpu.memory_space<vmem>>, vector<1x1x64xf32>
      %61 = vector.shape_cast %60 : vector<1x1x64xf32> to vector<64xf32>
      %62 = vector.shape_cast %61 : vector<64xf32> to vector<1x1x64xf32>
      %cst_28 = arith.constant 0.000000e+00 : f32
      %63 = vector.broadcast %cst_28 : f32 to vector<2x8x8xf32>
      %64 = vector.extract_strided_slice %26 {offsets = [0, 0, 8], sizes = [2, 8, 56], strides = [1, 1, 1]} : vector<2x8x64xf32> to vector<2x8x56xf32>
      %65 = tpu.concatenate %64, %63 in 2 : vector<2x8x56xf32>, vector<2x8x8xf32> -> vector<2x8x64xf32>
      %66 = vector.broadcast %62 : vector<1x1x64xf32> to vector<2x8x64xf32>
      %67 = arith.mulf %65, %66 : vector<2x8x64xf32>
      %68 = arith.addf %59, %67 : vector<2x8x64xf32>
      %c0_29 = arith.constant 0 : index
      %c5 = arith.constant 5 : index
      %c0_30 = arith.constant 0 : index
      %69 = vector.load %arg4[%c0_29, %c5, %c0_30] : memref<1x50x64xf32, #tpu.memory_space<vmem>>, vector<1x1x64xf32>
      %70 = vector.shape_cast %69 : vector<1x1x64xf32> to vector<64xf32>
      %71 = vector.shape_cast %70 : vector<64xf32> to vector<1x1x64xf32>
      %cst_31 = arith.constant 0.000000e+00 : f32
      %72 = vector.broadcast %cst_31 : f32 to vector<2x8x16xf32>
      %73 = vector.extract_strided_slice %26 {offsets = [0, 0, 16], sizes = [2, 8, 48], strides = [1, 1, 1]} : vector<2x8x64xf32> to vector<2x8x48xf32>
      %74 = tpu.concatenate %73, %72 in 2 : vector<2x8x48xf32>, vector<2x8x16xf32> -> vector<2x8x64xf32>
      %75 = vector.broadcast %71 : vector<1x1x64xf32> to vector<2x8x64xf32>
      %76 = arith.mulf %74, %75 : vector<2x8x64xf32>
      %77 = arith.addf %68, %76 : vector<2x8x64xf32>
      %c0_32 = arith.constant 0 : index
      %c6 = arith.constant 6 : index
      %c0_33 = arith.constant 0 : index
      %78 = vector.load %arg4[%c0_32, %c6, %c0_33] : memref<1x50x64xf32, #tpu.memory_space<vmem>>, vector<1x1x64xf32>
      %79 = vector.shape_cast %78 : vector<1x1x64xf32> to vector<64xf32>
      %80 = vector.shape_cast %79 : vector<64xf32> to vector<1x1x64xf32>
      %cst_34 = arith.constant 0.000000e+00 : f32
      %81 = vector.broadcast %cst_34 : f32 to vector<2x8x24xf32>
      %82 = vector.extract_strided_slice %26 {offsets = [0, 0, 24], sizes = [2, 8, 40], strides = [1, 1, 1]} : vector<2x8x64xf32> to vector<2x8x40xf32>
      %83 = tpu.concatenate %82, %81 in 2 : vector<2x8x40xf32>, vector<2x8x24xf32> -> vector<2x8x64xf32>
      %84 = vector.broadcast %80 : vector<1x1x64xf32> to vector<2x8x64xf32>
      %85 = arith.mulf %83, %84 : vector<2x8x64xf32>
      %86 = arith.addf %77, %85 : vector<2x8x64xf32>
      %cst_35 = arith.constant 0.000000e+00 : f32
      %87 = vector.broadcast %cst_35 : f32 to vector<2x2x64xf32>
      %88 = vector.extract_strided_slice %3 {offsets = [0, 0, 0], sizes = [2, 6, 64], strides = [1, 1, 1]} : vector<2x8x64xf32> to vector<2x6x64xf32>
      %89 = tpu.concatenate %87, %88 in 1 : vector<2x2x64xf32>, vector<2x6x64xf32> -> vector<2x8x64xf32>
      %c0_36 = arith.constant 0 : index
      %c7 = arith.constant 7 : index
      %c0_37 = arith.constant 0 : index
      %90 = vector.load %arg4[%c0_36, %c7, %c0_37] : memref<1x50x64xf32, #tpu.memory_space<vmem>>, vector<1x1x64xf32>
      %91 = vector.shape_cast %90 : vector<1x1x64xf32> to vector<64xf32>
      %92 = vector.shape_cast %91 : vector<64xf32> to vector<1x1x64xf32>
      %cst_38 = arith.constant 0.000000e+00 : f32
      %93 = vector.broadcast %cst_38 : f32 to vector<2x8x24xf32>
      %94 = vector.extract_strided_slice %89 {offsets = [0, 0, 0], sizes = [2, 8, 40], strides = [1, 1, 1]} : vector<2x8x64xf32> to vector<2x8x40xf32>
      %95 = tpu.concatenate %93, %94 in 2 : vector<2x8x24xf32>, vector<2x8x40xf32> -> vector<2x8x64xf32>
      %96 = vector.broadcast %92 : vector<1x1x64xf32> to vector<2x8x64xf32>
      %97 = arith.mulf %95, %96 : vector<2x8x64xf32>
      %98 = arith.addf %86, %97 : vector<2x8x64xf32>
      %c0_39 = arith.constant 0 : index
      %c8 = arith.constant 8 : index
      %c0_40 = arith.constant 0 : index
      %99 = vector.load %arg4[%c0_39, %c8, %c0_40] : memref<1x50x64xf32, #tpu.memory_space<vmem>>, vector<1x1x64xf32>
      %100 = vector.shape_cast %99 : vector<1x1x64xf32> to vector<64xf32>
      %101 = vector.shape_cast %100 : vector<64xf32> to vector<1x1x64xf32>
      %cst_41 = arith.constant 0.000000e+00 : f32
      %102 = vector.broadcast %cst_41 : f32 to vector<2x8x16xf32>
      %103 = vector.extract_strided_slice %89 {offsets = [0, 0, 0], sizes = [2, 8, 48], strides = [1, 1, 1]} : vector<2x8x64xf32> to vector<2x8x48xf32>
      %104 = tpu.concatenate %102, %103 in 2 : vector<2x8x16xf32>, vector<2x8x48xf32> -> vector<2x8x64xf32>
      %105 = vector.broadcast %101 : vector<1x1x64xf32> to vector<2x8x64xf32>
      %106 = arith.mulf %104, %105 : vector<2x8x64xf32>
      %107 = arith.addf %98, %106 : vector<2x8x64xf32>
      %c0_42 = arith.constant 0 : index
      %c9 = arith.constant 9 : index
      %c0_43 = arith.constant 0 : index
      %108 = vector.load %arg4[%c0_42, %c9, %c0_43] : memref<1x50x64xf32, #tpu.memory_space<vmem>>, vector<1x1x64xf32>
      %109 = vector.shape_cast %108 : vector<1x1x64xf32> to vector<64xf32>
      %110 = vector.shape_cast %109 : vector<64xf32> to vector<1x1x64xf32>
      %cst_44 = arith.constant 0.000000e+00 : f32
      %111 = vector.broadcast %cst_44 : f32 to vector<2x8x8xf32>
      %112 = vector.extract_strided_slice %89 {offsets = [0, 0, 0], sizes = [2, 8, 56], strides = [1, 1, 1]} : vector<2x8x64xf32> to vector<2x8x56xf32>
      %113 = tpu.concatenate %111, %112 in 2 : vector<2x8x8xf32>, vector<2x8x56xf32> -> vector<2x8x64xf32>
      %114 = vector.broadcast %110 : vector<1x1x64xf32> to vector<2x8x64xf32>
      %115 = arith.mulf %113, %114 : vector<2x8x64xf32>
      %116 = arith.addf %107, %115 : vector<2x8x64xf32>
      %c0_45 = arith.constant 0 : index
      %c10 = arith.constant 10 : index
      %c0_46 = arith.constant 0 : index
      %117 = vector.load %arg4[%c0_45, %c10, %c0_46] : memref<1x50x64xf32, #tpu.memory_space<vmem>>, vector<1x1x64xf32>
      %118 = vector.shape_cast %117 : vector<1x1x64xf32> to vector<64xf32>
      %119 = vector.shape_cast %118 : vector<64xf32> to vector<1x1x64xf32>
      %120 = vector.broadcast %119 : vector<1x1x64xf32> to vector<2x8x64xf32>
      %121 = arith.mulf %89, %120 : vector<2x8x64xf32>
      %122 = arith.addf %116, %121 : vector<2x8x64xf32>
      %c0_47 = arith.constant 0 : index
      %c11 = arith.constant 11 : index
      %c0_48 = arith.constant 0 : index
      %123 = vector.load %arg4[%c0_47, %c11, %c0_48] : memref<1x50x64xf32, #tpu.memory_space<vmem>>, vector<1x1x64xf32>
      %124 = vector.shape_cast %123 : vector<1x1x64xf32> to vector<64xf32>
      %125 = vector.shape_cast %124 : vector<64xf32> to vector<1x1x64xf32>
      %cst_49 = arith.constant 0.000000e+00 : f32
      %126 = vector.broadcast %cst_49 : f32 to vector<2x8x8xf32>
      %127 = vector.extract_strided_slice %89 {offsets = [0, 0, 8], sizes = [2, 8, 56], strides = [1, 1, 1]} : vector<2x8x64xf32> to vector<2x8x56xf32>
      %128 = tpu.concatenate %127, %126 in 2 : vector<2x8x56xf32>, vector<2x8x8xf32> -> vector<2x8x64xf32>
      %129 = vector.broadcast %125 : vector<1x1x64xf32> to vector<2x8x64xf32>
      %130 = arith.mulf %128, %129 : vector<2x8x64xf32>
      %131 = arith.addf %122, %130 : vector<2x8x64xf32>
      %c0_50 = arith.constant 0 : index
      %c12 = arith.constant 12 : index
      %c0_51 = arith.constant 0 : index
      %132 = vector.load %arg4[%c0_50, %c12, %c0_51] : memref<1x50x64xf32, #tpu.memory_space<vmem>>, vector<1x1x64xf32>
      %133 = vector.shape_cast %132 : vector<1x1x64xf32> to vector<64xf32>
      %134 = vector.shape_cast %133 : vector<64xf32> to vector<1x1x64xf32>
      %cst_52 = arith.constant 0.000000e+00 : f32
      %135 = vector.broadcast %cst_52 : f32 to vector<2x8x16xf32>
      %136 = vector.extract_strided_slice %89 {offsets = [0, 0, 16], sizes = [2, 8, 48], strides = [1, 1, 1]} : vector<2x8x64xf32> to vector<2x8x48xf32>
      %137 = tpu.concatenate %136, %135 in 2 : vector<2x8x48xf32>, vector<2x8x16xf32> -> vector<2x8x64xf32>
      %138 = vector.broadcast %134 : vector<1x1x64xf32> to vector<2x8x64xf32>
      %139 = arith.mulf %137, %138 : vector<2x8x64xf32>
      %140 = arith.addf %131, %139 : vector<2x8x64xf32>
      %c0_53 = arith.constant 0 : index
      %c13 = arith.constant 13 : index
      %c0_54 = arith.constant 0 : index
      %141 = vector.load %arg4[%c0_53, %c13, %c0_54] : memref<1x50x64xf32, #tpu.memory_space<vmem>>, vector<1x1x64xf32>
      %142 = vector.shape_cast %141 : vector<1x1x64xf32> to vector<64xf32>
      %143 = vector.shape_cast %142 : vector<64xf32> to vector<1x1x64xf32>
      %cst_55 = arith.constant 0.000000e+00 : f32
      %144 = vector.broadcast %cst_55 : f32 to vector<2x8x24xf32>
      %145 = vector.extract_strided_slice %89 {offsets = [0, 0, 24], sizes = [2, 8, 40], strides = [1, 1, 1]} : vector<2x8x64xf32> to vector<2x8x40xf32>
      %146 = tpu.concatenate %145, %144 in 2 : vector<2x8x40xf32>, vector<2x8x24xf32> -> vector<2x8x64xf32>
      %147 = vector.broadcast %143 : vector<1x1x64xf32> to vector<2x8x64xf32>
      %148 = arith.mulf %146, %147 : vector<2x8x64xf32>
      %149 = arith.addf %140, %148 : vector<2x8x64xf32>
      %cst_56 = arith.constant 0.000000e+00 : f32
      %150 = vector.broadcast %cst_56 : f32 to vector<2x1x64xf32>
      %151 = vector.extract_strided_slice %3 {offsets = [0, 0, 0], sizes = [2, 7, 64], strides = [1, 1, 1]} : vector<2x8x64xf32> to vector<2x7x64xf32>
      %152 = tpu.concatenate %150, %151 in 1 : vector<2x1x64xf32>, vector<2x7x64xf32> -> vector<2x8x64xf32>
      %c0_57 = arith.constant 0 : index
      %c14 = arith.constant 14 : index
      %c0_58 = arith.constant 0 : index
      %153 = vector.load %arg4[%c0_57, %c14, %c0_58] : memref<1x50x64xf32, #tpu.memory_space<vmem>>, vector<1x1x64xf32>
      %154 = vector.shape_cast %153 : vector<1x1x64xf32> to vector<64xf32>
      %155 = vector.shape_cast %154 : vector<64xf32> to vector<1x1x64xf32>
      %cst_59 = arith.constant 0.000000e+00 : f32
      %156 = vector.broadcast %cst_59 : f32 to vector<2x8x24xf32>
      %157 = vector.extract_strided_slice %152 {offsets = [0, 0, 0], sizes = [2, 8, 40], strides = [1, 1, 1]} : vector<2x8x64xf32> to vector<2x8x40xf32>
      %158 = tpu.concatenate %156, %157 in 2 : vector<2x8x24xf32>, vector<2x8x40xf32> -> vector<2x8x64xf32>
      %159 = vector.broadcast %155 : vector<1x1x64xf32> to vector<2x8x64xf32>
      %160 = arith.mulf %158, %159 : vector<2x8x64xf32>
      %161 = arith.addf %149, %160 : vector<2x8x64xf32>
      %c0_60 = arith.constant 0 : index
      %c15 = arith.constant 15 : index
      %c0_61 = arith.constant 0 : index
      %162 = vector.load %arg4[%c0_60, %c15, %c0_61] : memref<1x50x64xf32, #tpu.memory_space<vmem>>, vector<1x1x64xf32>
      %163 = vector.shape_cast %162 : vector<1x1x64xf32> to vector<64xf32>
      %164 = vector.shape_cast %163 : vector<64xf32> to vector<1x1x64xf32>
      %cst_62 = arith.constant 0.000000e+00 : f32
      %165 = vector.broadcast %cst_62 : f32 to vector<2x8x16xf32>
      %166 = vector.extract_strided_slice %152 {offsets = [0, 0, 0], sizes = [2, 8, 48], strides = [1, 1, 1]} : vector<2x8x64xf32> to vector<2x8x48xf32>
      %167 = tpu.concatenate %165, %166 in 2 : vector<2x8x16xf32>, vector<2x8x48xf32> -> vector<2x8x64xf32>
      %168 = vector.broadcast %164 : vector<1x1x64xf32> to vector<2x8x64xf32>
      %169 = arith.mulf %167, %168 : vector<2x8x64xf32>
      %170 = arith.addf %161, %169 : vector<2x8x64xf32>
      %c0_63 = arith.constant 0 : index
      %c16 = arith.constant 16 : index
      %c0_64 = arith.constant 0 : index
      %171 = vector.load %arg4[%c0_63, %c16, %c0_64] : memref<1x50x64xf32, #tpu.memory_space<vmem>>, vector<1x1x64xf32>
      %172 = vector.shape_cast %171 : vector<1x1x64xf32> to vector<64xf32>
      %173 = vector.shape_cast %172 : vector<64xf32> to vector<1x1x64xf32>
      %cst_65 = arith.constant 0.000000e+00 : f32
      %174 = vector.broadcast %cst_65 : f32 to vector<2x8x8xf32>
      %175 = vector.extract_strided_slice %152 {offsets = [0, 0, 0], sizes = [2, 8, 56], strides = [1, 1, 1]} : vector<2x8x64xf32> to vector<2x8x56xf32>
      %176 = tpu.concatenate %174, %175 in 2 : vector<2x8x8xf32>, vector<2x8x56xf32> -> vector<2x8x64xf32>
      %177 = vector.broadcast %173 : vector<1x1x64xf32> to vector<2x8x64xf32>
      %178 = arith.mulf %176, %177 : vector<2x8x64xf32>
      %179 = arith.addf %170, %178 : vector<2x8x64xf32>
      %c0_66 = arith.constant 0 : index
      %c17 = arith.constant 17 : index
      %c0_67 = arith.constant 0 : index
      %180 = vector.load %arg4[%c0_66, %c17, %c0_67] : memref<1x50x64xf32, #tpu.memory_space<vmem>>, vector<1x1x64xf32>
      %181 = vector.shape_cast %180 : vector<1x1x64xf32> to vector<64xf32>
      %182 = vector.shape_cast %181 : vector<64xf32> to vector<1x1x64xf32>
      %183 = vector.broadcast %182 : vector<1x1x64xf32> to vector<2x8x64xf32>
      %184 = arith.mulf %152, %183 : vector<2x8x64xf32>
      %185 = arith.addf %179, %184 : vector<2x8x64xf32>
      %c0_68 = arith.constant 0 : index
      %c18 = arith.constant 18 : index
      %c0_69 = arith.constant 0 : index
      %186 = vector.load %arg4[%c0_68, %c18, %c0_69] : memref<1x50x64xf32, #tpu.memory_space<vmem>>, vector<1x1x64xf32>
      %187 = vector.shape_cast %186 : vector<1x1x64xf32> to vector<64xf32>
      %188 = vector.shape_cast %187 : vector<64xf32> to vector<1x1x64xf32>
      %cst_70 = arith.constant 0.000000e+00 : f32
      %189 = vector.broadcast %cst_70 : f32 to vector<2x8x8xf32>
      %190 = vector.extract_strided_slice %152 {offsets = [0, 0, 8], sizes = [2, 8, 56], strides = [1, 1, 1]} : vector<2x8x64xf32> to vector<2x8x56xf32>
      %191 = tpu.concatenate %190, %189 in 2 : vector<2x8x56xf32>, vector<2x8x8xf32> -> vector<2x8x64xf32>
      %192 = vector.broadcast %188 : vector<1x1x64xf32> to vector<2x8x64xf32>
      %193 = arith.mulf %191, %192 : vector<2x8x64xf32>
      %194 = arith.addf %185, %193 : vector<2x8x64xf32>
      %c0_71 = arith.constant 0 : index
      %c19 = arith.constant 19 : index
      %c0_72 = arith.constant 0 : index
      %195 = vector.load %arg4[%c0_71, %c19, %c0_72] : memref<1x50x64xf32, #tpu.memory_space<vmem>>, vector<1x1x64xf32>
      %196 = vector.shape_cast %195 : vector<1x1x64xf32> to vector<64xf32>
      %197 = vector.shape_cast %196 : vector<64xf32> to vector<1x1x64xf32>
      %cst_73 = arith.constant 0.000000e+00 : f32
      %198 = vector.broadcast %cst_73 : f32 to vector<2x8x16xf32>
      %199 = vector.extract_strided_slice %152 {offsets = [0, 0, 16], sizes = [2, 8, 48], strides = [1, 1, 1]} : vector<2x8x64xf32> to vector<2x8x48xf32>
      %200 = tpu.concatenate %199, %198 in 2 : vector<2x8x48xf32>, vector<2x8x16xf32> -> vector<2x8x64xf32>
      %201 = vector.broadcast %197 : vector<1x1x64xf32> to vector<2x8x64xf32>
      %202 = arith.mulf %200, %201 : vector<2x8x64xf32>
      %203 = arith.addf %194, %202 : vector<2x8x64xf32>
      %c0_74 = arith.constant 0 : index
      %c20 = arith.constant 20 : index
      %c0_75 = arith.constant 0 : index
      %204 = vector.load %arg4[%c0_74, %c20, %c0_75] : memref<1x50x64xf32, #tpu.memory_space<vmem>>, vector<1x1x64xf32>
      %205 = vector.shape_cast %204 : vector<1x1x64xf32> to vector<64xf32>
      %206 = vector.shape_cast %205 : vector<64xf32> to vector<1x1x64xf32>
      %cst_76 = arith.constant 0.000000e+00 : f32
      %207 = vector.broadcast %cst_76 : f32 to vector<2x8x24xf32>
      %208 = vector.extract_strided_slice %152 {offsets = [0, 0, 24], sizes = [2, 8, 40], strides = [1, 1, 1]} : vector<2x8x64xf32> to vector<2x8x40xf32>
      %209 = tpu.concatenate %208, %207 in 2 : vector<2x8x40xf32>, vector<2x8x24xf32> -> vector<2x8x64xf32>
      %210 = vector.broadcast %206 : vector<1x1x64xf32> to vector<2x8x64xf32>
      %211 = arith.mulf %209, %210 : vector<2x8x64xf32>
      %212 = arith.addf %203, %211 : vector<2x8x64xf32>
      %c0_77 = arith.constant 0 : index
      %c21 = arith.constant 21 : index
      %c0_78 = arith.constant 0 : index
      %213 = vector.load %arg4[%c0_77, %c21, %c0_78] : memref<1x50x64xf32, #tpu.memory_space<vmem>>, vector<1x1x64xf32>
      %214 = vector.shape_cast %213 : vector<1x1x64xf32> to vector<64xf32>
      %215 = vector.shape_cast %214 : vector<64xf32> to vector<1x1x64xf32>
      %cst_79 = arith.constant 0.000000e+00 : f32
      %216 = vector.broadcast %cst_79 : f32 to vector<2x8x24xf32>
      %217 = vector.extract_strided_slice %3 {offsets = [0, 0, 0], sizes = [2, 8, 40], strides = [1, 1, 1]} : vector<2x8x64xf32> to vector<2x8x40xf32>
      %218 = tpu.concatenate %216, %217 in 2 : vector<2x8x24xf32>, vector<2x8x40xf32> -> vector<2x8x64xf32>
      %219 = vector.broadcast %215 : vector<1x1x64xf32> to vector<2x8x64xf32>
      %220 = arith.mulf %218, %219 : vector<2x8x64xf32>
      %221 = arith.addf %212, %220 : vector<2x8x64xf32>
      %c0_80 = arith.constant 0 : index
      %c22 = arith.constant 22 : index
      %c0_81 = arith.constant 0 : index
      %222 = vector.load %arg4[%c0_80, %c22, %c0_81] : memref<1x50x64xf32, #tpu.memory_space<vmem>>, vector<1x1x64xf32>
      %223 = vector.shape_cast %222 : vector<1x1x64xf32> to vector<64xf32>
      %224 = vector.shape_cast %223 : vector<64xf32> to vector<1x1x64xf32>
      %cst_82 = arith.constant 0.000000e+00 : f32
      %225 = vector.broadcast %cst_82 : f32 to vector<2x8x16xf32>
      %226 = vector.extract_strided_slice %3 {offsets = [0, 0, 0], sizes = [2, 8, 48], strides = [1, 1, 1]} : vector<2x8x64xf32> to vector<2x8x48xf32>
      %227 = tpu.concatenate %225, %226 in 2 : vector<2x8x16xf32>, vector<2x8x48xf32> -> vector<2x8x64xf32>
      %228 = vector.broadcast %224 : vector<1x1x64xf32> to vector<2x8x64xf32>
      %229 = arith.mulf %227, %228 : vector<2x8x64xf32>
      %230 = arith.addf %221, %229 : vector<2x8x64xf32>
      %c0_83 = arith.constant 0 : index
      %c23 = arith.constant 23 : index
      %c0_84 = arith.constant 0 : index
      %231 = vector.load %arg4[%c0_83, %c23, %c0_84] : memref<1x50x64xf32, #tpu.memory_space<vmem>>, vector<1x1x64xf32>
      %232 = vector.shape_cast %231 : vector<1x1x64xf32> to vector<64xf32>
      %233 = vector.shape_cast %232 : vector<64xf32> to vector<1x1x64xf32>
      %cst_85 = arith.constant 0.000000e+00 : f32
      %234 = vector.broadcast %cst_85 : f32 to vector<2x8x8xf32>
      %235 = vector.extract_strided_slice %3 {offsets = [0, 0, 0], sizes = [2, 8, 56], strides = [1, 1, 1]} : vector<2x8x64xf32> to vector<2x8x56xf32>
      %236 = tpu.concatenate %234, %235 in 2 : vector<2x8x8xf32>, vector<2x8x56xf32> -> vector<2x8x64xf32>
      %237 = vector.broadcast %233 : vector<1x1x64xf32> to vector<2x8x64xf32>
      %238 = arith.mulf %236, %237 : vector<2x8x64xf32>
      %239 = arith.addf %230, %238 : vector<2x8x64xf32>
      %c0_86 = arith.constant 0 : index
      %c24 = arith.constant 24 : index
      %c0_87 = arith.constant 0 : index
      %240 = vector.load %arg4[%c0_86, %c24, %c0_87] : memref<1x50x64xf32, #tpu.memory_space<vmem>>, vector<1x1x64xf32>
      %241 = vector.shape_cast %240 : vector<1x1x64xf32> to vector<64xf32>
      %242 = vector.shape_cast %241 : vector<64xf32> to vector<1x1x64xf32>
      %243 = vector.broadcast %242 : vector<1x1x64xf32> to vector<2x8x64xf32>
      %244 = arith.mulf %3, %243 : vector<2x8x64xf32>
      %245 = arith.addf %239, %244 : vector<2x8x64xf32>
      %c0_88 = arith.constant 0 : index
      %c25 = arith.constant 25 : index
      %c0_89 = arith.constant 0 : index
      %246 = vector.load %arg4[%c0_88, %c25, %c0_89] : memref<1x50x64xf32, #tpu.memory_space<vmem>>, vector<1x1x64xf32>
      %247 = vector.shape_cast %246 : vector<1x1x64xf32> to vector<64xf32>
      %248 = vector.shape_cast %247 : vector<64xf32> to vector<1x1x64xf32>
      %cst_90 = arith.constant 0.000000e+00 : f32
      %249 = vector.broadcast %cst_90 : f32 to vector<2x8x8xf32>
      %250 = vector.extract_strided_slice %3 {offsets = [0, 0, 8], sizes = [2, 8, 56], strides = [1, 1, 1]} : vector<2x8x64xf32> to vector<2x8x56xf32>
      %251 = tpu.concatenate %250, %249 in 2 : vector<2x8x56xf32>, vector<2x8x8xf32> -> vector<2x8x64xf32>
      %252 = vector.broadcast %248 : vector<1x1x64xf32> to vector<2x8x64xf32>
      %253 = arith.mulf %251, %252 : vector<2x8x64xf32>
      %254 = arith.addf %245, %253 : vector<2x8x64xf32>
      %c0_91 = arith.constant 0 : index
      %c26 = arith.constant 26 : index
      %c0_92 = arith.constant 0 : index
      %255 = vector.load %arg4[%c0_91, %c26, %c0_92] : memref<1x50x64xf32, #tpu.memory_space<vmem>>, vector<1x1x64xf32>
      %256 = vector.shape_cast %255 : vector<1x1x64xf32> to vector<64xf32>
      %257 = vector.shape_cast %256 : vector<64xf32> to vector<1x1x64xf32>
      %cst_93 = arith.constant 0.000000e+00 : f32
      %258 = vector.broadcast %cst_93 : f32 to vector<2x8x16xf32>
      %259 = vector.extract_strided_slice %3 {offsets = [0, 0, 16], sizes = [2, 8, 48], strides = [1, 1, 1]} : vector<2x8x64xf32> to vector<2x8x48xf32>
      %260 = tpu.concatenate %259, %258 in 2 : vector<2x8x48xf32>, vector<2x8x16xf32> -> vector<2x8x64xf32>
      %261 = vector.broadcast %257 : vector<1x1x64xf32> to vector<2x8x64xf32>
      %262 = arith.mulf %260, %261 : vector<2x8x64xf32>
      %263 = arith.addf %254, %262 : vector<2x8x64xf32>
      %c0_94 = arith.constant 0 : index
      %c27 = arith.constant 27 : index
      %c0_95 = arith.constant 0 : index
      %264 = vector.load %arg4[%c0_94, %c27, %c0_95] : memref<1x50x64xf32, #tpu.memory_space<vmem>>, vector<1x1x64xf32>
      %265 = vector.shape_cast %264 : vector<1x1x64xf32> to vector<64xf32>
      %266 = vector.shape_cast %265 : vector<64xf32> to vector<1x1x64xf32>
      %cst_96 = arith.constant 0.000000e+00 : f32
      %267 = vector.broadcast %cst_96 : f32 to vector<2x8x24xf32>
      %268 = vector.extract_strided_slice %3 {offsets = [0, 0, 24], sizes = [2, 8, 40], strides = [1, 1, 1]} : vector<2x8x64xf32> to vector<2x8x40xf32>
      %269 = tpu.concatenate %268, %267 in 2 : vector<2x8x40xf32>, vector<2x8x24xf32> -> vector<2x8x64xf32>
      %270 = vector.broadcast %266 : vector<1x1x64xf32> to vector<2x8x64xf32>
      %271 = arith.mulf %269, %270 : vector<2x8x64xf32>
      %272 = arith.addf %263, %271 : vector<2x8x64xf32>
      %cst_97 = arith.constant 0.000000e+00 : f32
      %273 = vector.broadcast %cst_97 : f32 to vector<2x1x64xf32>
      %274 = vector.extract_strided_slice %3 {offsets = [0, 1, 0], sizes = [2, 7, 64], strides = [1, 1, 1]} : vector<2x8x64xf32> to vector<2x7x64xf32>
      %275 = tpu.concatenate %274, %273 in 1 : vector<2x7x64xf32>, vector<2x1x64xf32> -> vector<2x8x64xf32>
      %c0_98 = arith.constant 0 : index
      %c28 = arith.constant 28 : index
      %c0_99 = arith.constant 0 : index
      %276 = vector.load %arg4[%c0_98, %c28, %c0_99] : memref<1x50x64xf32, #tpu.memory_space<vmem>>, vector<1x1x64xf32>
      %277 = vector.shape_cast %276 : vector<1x1x64xf32> to vector<64xf32>
      %278 = vector.shape_cast %277 : vector<64xf32> to vector<1x1x64xf32>
      %cst_100 = arith.constant 0.000000e+00 : f32
      %279 = vector.broadcast %cst_100 : f32 to vector<2x8x24xf32>
      %280 = vector.extract_strided_slice %275 {offsets = [0, 0, 0], sizes = [2, 8, 40], strides = [1, 1, 1]} : vector<2x8x64xf32> to vector<2x8x40xf32>
      %281 = tpu.concatenate %279, %280 in 2 : vector<2x8x24xf32>, vector<2x8x40xf32> -> vector<2x8x64xf32>
      %282 = vector.broadcast %278 : vector<1x1x64xf32> to vector<2x8x64xf32>
      %283 = arith.mulf %281, %282 : vector<2x8x64xf32>
      %284 = arith.addf %272, %283 : vector<2x8x64xf32>
      %c0_101 = arith.constant 0 : index
      %c29 = arith.constant 29 : index
      %c0_102 = arith.constant 0 : index
      %285 = vector.load %arg4[%c0_101, %c29, %c0_102] : memref<1x50x64xf32, #tpu.memory_space<vmem>>, vector<1x1x64xf32>
      %286 = vector.shape_cast %285 : vector<1x1x64xf32> to vector<64xf32>
      %287 = vector.shape_cast %286 : vector<64xf32> to vector<1x1x64xf32>
      %cst_103 = arith.constant 0.000000e+00 : f32
      %288 = vector.broadcast %cst_103 : f32 to vector<2x8x16xf32>
      %289 = vector.extract_strided_slice %275 {offsets = [0, 0, 0], sizes = [2, 8, 48], strides = [1, 1, 1]} : vector<2x8x64xf32> to vector<2x8x48xf32>
      %290 = tpu.concatenate %288, %289 in 2 : vector<2x8x16xf32>, vector<2x8x48xf32> -> vector<2x8x64xf32>
      %291 = vector.broadcast %287 : vector<1x1x64xf32> to vector<2x8x64xf32>
      %292 = arith.mulf %290, %291 : vector<2x8x64xf32>
      %293 = arith.addf %284, %292 : vector<2x8x64xf32>
      %c0_104 = arith.constant 0 : index
      %c30 = arith.constant 30 : index
      %c0_105 = arith.constant 0 : index
      %294 = vector.load %arg4[%c0_104, %c30, %c0_105] : memref<1x50x64xf32, #tpu.memory_space<vmem>>, vector<1x1x64xf32>
      %295 = vector.shape_cast %294 : vector<1x1x64xf32> to vector<64xf32>
      %296 = vector.shape_cast %295 : vector<64xf32> to vector<1x1x64xf32>
      %cst_106 = arith.constant 0.000000e+00 : f32
      %297 = vector.broadcast %cst_106 : f32 to vector<2x8x8xf32>
      %298 = vector.extract_strided_slice %275 {offsets = [0, 0, 0], sizes = [2, 8, 56], strides = [1, 1, 1]} : vector<2x8x64xf32> to vector<2x8x56xf32>
      %299 = tpu.concatenate %297, %298 in 2 : vector<2x8x8xf32>, vector<2x8x56xf32> -> vector<2x8x64xf32>
      %300 = vector.broadcast %296 : vector<1x1x64xf32> to vector<2x8x64xf32>
      %301 = arith.mulf %299, %300 : vector<2x8x64xf32>
      %302 = arith.addf %293, %301 : vector<2x8x64xf32>
      %c0_107 = arith.constant 0 : index
      %c31 = arith.constant 31 : index
      %c0_108 = arith.constant 0 : index
      %303 = vector.load %arg4[%c0_107, %c31, %c0_108] : memref<1x50x64xf32, #tpu.memory_space<vmem>>, vector<1x1x64xf32>
      %304 = vector.shape_cast %303 : vector<1x1x64xf32> to vector<64xf32>
      %305 = vector.shape_cast %304 : vector<64xf32> to vector<1x1x64xf32>
      %306 = vector.broadcast %305 : vector<1x1x64xf32> to vector<2x8x64xf32>
      %307 = arith.mulf %275, %306 : vector<2x8x64xf32>
      %308 = arith.addf %302, %307 : vector<2x8x64xf32>
      %c0_109 = arith.constant 0 : index
      %c32 = arith.constant 32 : index
      %c0_110 = arith.constant 0 : index
      %309 = vector.load %arg4[%c0_109, %c32, %c0_110] : memref<1x50x64xf32, #tpu.memory_space<vmem>>, vector<1x1x64xf32>
      %310 = vector.shape_cast %309 : vector<1x1x64xf32> to vector<64xf32>
      %311 = vector.shape_cast %310 : vector<64xf32> to vector<1x1x64xf32>
      %cst_111 = arith.constant 0.000000e+00 : f32
      %312 = vector.broadcast %cst_111 : f32 to vector<2x8x8xf32>
      %313 = vector.extract_strided_slice %275 {offsets = [0, 0, 8], sizes = [2, 8, 56], strides = [1, 1, 1]} : vector<2x8x64xf32> to vector<2x8x56xf32>
      %314 = tpu.concatenate %313, %312 in 2 : vector<2x8x56xf32>, vector<2x8x8xf32> -> vector<2x8x64xf32>
      %315 = vector.broadcast %311 : vector<1x1x64xf32> to vector<2x8x64xf32>
      %316 = arith.mulf %314, %315 : vector<2x8x64xf32>
      %317 = arith.addf %308, %316 : vector<2x8x64xf32>
      %c0_112 = arith.constant 0 : index
      %c33 = arith.constant 33 : index
      %c0_113 = arith.constant 0 : index
      %318 = vector.load %arg4[%c0_112, %c33, %c0_113] : memref<1x50x64xf32, #tpu.memory_space<vmem>>, vector<1x1x64xf32>
      %319 = vector.shape_cast %318 : vector<1x1x64xf32> to vector<64xf32>
      %320 = vector.shape_cast %319 : vector<64xf32> to vector<1x1x64xf32>
      %cst_114 = arith.constant 0.000000e+00 : f32
      %321 = vector.broadcast %cst_114 : f32 to vector<2x8x16xf32>
      %322 = vector.extract_strided_slice %275 {offsets = [0, 0, 16], sizes = [2, 8, 48], strides = [1, 1, 1]} : vector<2x8x64xf32> to vector<2x8x48xf32>
      %323 = tpu.concatenate %322, %321 in 2 : vector<2x8x48xf32>, vector<2x8x16xf32> -> vector<2x8x64xf32>
      %324 = vector.broadcast %320 : vector<1x1x64xf32> to vector<2x8x64xf32>
      %325 = arith.mulf %323, %324 : vector<2x8x64xf32>
      %326 = arith.addf %317, %325 : vector<2x8x64xf32>
      %c0_115 = arith.constant 0 : index
      %c34 = arith.constant 34 : index
      %c0_116 = arith.constant 0 : index
      %327 = vector.load %arg4[%c0_115, %c34, %c0_116] : memref<1x50x64xf32, #tpu.memory_space<vmem>>, vector<1x1x64xf32>
      %328 = vector.shape_cast %327 : vector<1x1x64xf32> to vector<64xf32>
      %329 = vector.shape_cast %328 : vector<64xf32> to vector<1x1x64xf32>
      %cst_117 = arith.constant 0.000000e+00 : f32
      %330 = vector.broadcast %cst_117 : f32 to vector<2x8x24xf32>
      %331 = vector.extract_strided_slice %275 {offsets = [0, 0, 24], sizes = [2, 8, 40], strides = [1, 1, 1]} : vector<2x8x64xf32> to vector<2x8x40xf32>
      %332 = tpu.concatenate %331, %330 in 2 : vector<2x8x40xf32>, vector<2x8x24xf32> -> vector<2x8x64xf32>
      %333 = vector.broadcast %329 : vector<1x1x64xf32> to vector<2x8x64xf32>
      %334 = arith.mulf %332, %333 : vector<2x8x64xf32>
      %335 = arith.addf %326, %334 : vector<2x8x64xf32>
      %cst_118 = arith.constant 0.000000e+00 : f32
      %336 = vector.broadcast %cst_118 : f32 to vector<2x2x64xf32>
      %337 = vector.extract_strided_slice %3 {offsets = [0, 2, 0], sizes = [2, 6, 64], strides = [1, 1, 1]} : vector<2x8x64xf32> to vector<2x6x64xf32>
      %338 = tpu.concatenate %337, %336 in 1 : vector<2x6x64xf32>, vector<2x2x64xf32> -> vector<2x8x64xf32>
      %c0_119 = arith.constant 0 : index
      %c35 = arith.constant 35 : index
      %c0_120 = arith.constant 0 : index
      %339 = vector.load %arg4[%c0_119, %c35, %c0_120] : memref<1x50x64xf32, #tpu.memory_space<vmem>>, vector<1x1x64xf32>
      %340 = vector.shape_cast %339 : vector<1x1x64xf32> to vector<64xf32>
      %341 = vector.shape_cast %340 : vector<64xf32> to vector<1x1x64xf32>
      %cst_121 = arith.constant 0.000000e+00 : f32
      %342 = vector.broadcast %cst_121 : f32 to vector<2x8x24xf32>
      %343 = vector.extract_strided_slice %338 {offsets = [0, 0, 0], sizes = [2, 8, 40], strides = [1, 1, 1]} : vector<2x8x64xf32> to vector<2x8x40xf32>
      %344 = tpu.concatenate %342, %343 in 2 : vector<2x8x24xf32>, vector<2x8x40xf32> -> vector<2x8x64xf32>
      %345 = vector.broadcast %341 : vector<1x1x64xf32> to vector<2x8x64xf32>
      %346 = arith.mulf %344, %345 : vector<2x8x64xf32>
      %347 = arith.addf %335, %346 : vector<2x8x64xf32>
      %c0_122 = arith.constant 0 : index
      %c36 = arith.constant 36 : index
      %c0_123 = arith.constant 0 : index
      %348 = vector.load %arg4[%c0_122, %c36, %c0_123] : memref<1x50x64xf32, #tpu.memory_space<vmem>>, vector<1x1x64xf32>
      %349 = vector.shape_cast %348 : vector<1x1x64xf32> to vector<64xf32>
      %350 = vector.shape_cast %349 : vector<64xf32> to vector<1x1x64xf32>
      %cst_124 = arith.constant 0.000000e+00 : f32
      %351 = vector.broadcast %cst_124 : f32 to vector<2x8x16xf32>
      %352 = vector.extract_strided_slice %338 {offsets = [0, 0, 0], sizes = [2, 8, 48], strides = [1, 1, 1]} : vector<2x8x64xf32> to vector<2x8x48xf32>
      %353 = tpu.concatenate %351, %352 in 2 : vector<2x8x16xf32>, vector<2x8x48xf32> -> vector<2x8x64xf32>
      %354 = vector.broadcast %350 : vector<1x1x64xf32> to vector<2x8x64xf32>
      %355 = arith.mulf %353, %354 : vector<2x8x64xf32>
      %356 = arith.addf %347, %355 : vector<2x8x64xf32>
      %c0_125 = arith.constant 0 : index
      %c37 = arith.constant 37 : index
      %c0_126 = arith.constant 0 : index
      %357 = vector.load %arg4[%c0_125, %c37, %c0_126] : memref<1x50x64xf32, #tpu.memory_space<vmem>>, vector<1x1x64xf32>
      %358 = vector.shape_cast %357 : vector<1x1x64xf32> to vector<64xf32>
      %359 = vector.shape_cast %358 : vector<64xf32> to vector<1x1x64xf32>
      %cst_127 = arith.constant 0.000000e+00 : f32
      %360 = vector.broadcast %cst_127 : f32 to vector<2x8x8xf32>
      %361 = vector.extract_strided_slice %338 {offsets = [0, 0, 0], sizes = [2, 8, 56], strides = [1, 1, 1]} : vector<2x8x64xf32> to vector<2x8x56xf32>
      %362 = tpu.concatenate %360, %361 in 2 : vector<2x8x8xf32>, vector<2x8x56xf32> -> vector<2x8x64xf32>
      %363 = vector.broadcast %359 : vector<1x1x64xf32> to vector<2x8x64xf32>
      %364 = arith.mulf %362, %363 : vector<2x8x64xf32>
      %365 = arith.addf %356, %364 : vector<2x8x64xf32>
      %c0_128 = arith.constant 0 : index
      %c38 = arith.constant 38 : index
      %c0_129 = arith.constant 0 : index
      %366 = vector.load %arg4[%c0_128, %c38, %c0_129] : memref<1x50x64xf32, #tpu.memory_space<vmem>>, vector<1x1x64xf32>
      %367 = vector.shape_cast %366 : vector<1x1x64xf32> to vector<64xf32>
      %368 = vector.shape_cast %367 : vector<64xf32> to vector<1x1x64xf32>
      %369 = vector.broadcast %368 : vector<1x1x64xf32> to vector<2x8x64xf32>
      %370 = arith.mulf %338, %369 : vector<2x8x64xf32>
      %371 = arith.addf %365, %370 : vector<2x8x64xf32>
      %c0_130 = arith.constant 0 : index
      %c39 = arith.constant 39 : index
      %c0_131 = arith.constant 0 : index
      %372 = vector.load %arg4[%c0_130, %c39, %c0_131] : memref<1x50x64xf32, #tpu.memory_space<vmem>>, vector<1x1x64xf32>
      %373 = vector.shape_cast %372 : vector<1x1x64xf32> to vector<64xf32>
      %374 = vector.shape_cast %373 : vector<64xf32> to vector<1x1x64xf32>
      %cst_132 = arith.constant 0.000000e+00 : f32
      %375 = vector.broadcast %cst_132 : f32 to vector<2x8x8xf32>
      %376 = vector.extract_strided_slice %338 {offsets = [0, 0, 8], sizes = [2, 8, 56], strides = [1, 1, 1]} : vector<2x8x64xf32> to vector<2x8x56xf32>
      %377 = tpu.concatenate %376, %375 in 2 : vector<2x8x56xf32>, vector<2x8x8xf32> -> vector<2x8x64xf32>
      %378 = vector.broadcast %374 : vector<1x1x64xf32> to vector<2x8x64xf32>
      %379 = arith.mulf %377, %378 : vector<2x8x64xf32>
      %380 = arith.addf %371, %379 : vector<2x8x64xf32>
      %c0_133 = arith.constant 0 : index
      %c40 = arith.constant 40 : index
      %c0_134 = arith.constant 0 : index
      %381 = vector.load %arg4[%c0_133, %c40, %c0_134] : memref<1x50x64xf32, #tpu.memory_space<vmem>>, vector<1x1x64xf32>
      %382 = vector.shape_cast %381 : vector<1x1x64xf32> to vector<64xf32>
      %383 = vector.shape_cast %382 : vector<64xf32> to vector<1x1x64xf32>
      %cst_135 = arith.constant 0.000000e+00 : f32
      %384 = vector.broadcast %cst_135 : f32 to vector<2x8x16xf32>
      %385 = vector.extract_strided_slice %338 {offsets = [0, 0, 16], sizes = [2, 8, 48], strides = [1, 1, 1]} : vector<2x8x64xf32> to vector<2x8x48xf32>
      %386 = tpu.concatenate %385, %384 in 2 : vector<2x8x48xf32>, vector<2x8x16xf32> -> vector<2x8x64xf32>
      %387 = vector.broadcast %383 : vector<1x1x64xf32> to vector<2x8x64xf32>
      %388 = arith.mulf %386, %387 : vector<2x8x64xf32>
      %389 = arith.addf %380, %388 : vector<2x8x64xf32>
      %c0_136 = arith.constant 0 : index
      %c41 = arith.constant 41 : index
      %c0_137 = arith.constant 0 : index
      %390 = vector.load %arg4[%c0_136, %c41, %c0_137] : memref<1x50x64xf32, #tpu.memory_space<vmem>>, vector<1x1x64xf32>
      %391 = vector.shape_cast %390 : vector<1x1x64xf32> to vector<64xf32>
      %392 = vector.shape_cast %391 : vector<64xf32> to vector<1x1x64xf32>
      %cst_138 = arith.constant 0.000000e+00 : f32
      %393 = vector.broadcast %cst_138 : f32 to vector<2x8x24xf32>
      %394 = vector.extract_strided_slice %338 {offsets = [0, 0, 24], sizes = [2, 8, 40], strides = [1, 1, 1]} : vector<2x8x64xf32> to vector<2x8x40xf32>
      %395 = tpu.concatenate %394, %393 in 2 : vector<2x8x40xf32>, vector<2x8x24xf32> -> vector<2x8x64xf32>
      %396 = vector.broadcast %392 : vector<1x1x64xf32> to vector<2x8x64xf32>
      %397 = arith.mulf %395, %396 : vector<2x8x64xf32>
      %398 = arith.addf %389, %397 : vector<2x8x64xf32>
      %cst_139 = arith.constant 0.000000e+00 : f32
      %399 = vector.broadcast %cst_139 : f32 to vector<2x3x64xf32>
      %400 = vector.extract_strided_slice %3 {offsets = [0, 3, 0], sizes = [2, 5, 64], strides = [1, 1, 1]} : vector<2x8x64xf32> to vector<2x5x64xf32>
      %401 = tpu.concatenate %400, %399 in 1 : vector<2x5x64xf32>, vector<2x3x64xf32> -> vector<2x8x64xf32>
      %c0_140 = arith.constant 0 : index
      %c42 = arith.constant 42 : index
      %c0_141 = arith.constant 0 : index
      %402 = vector.load %arg4[%c0_140, %c42, %c0_141] : memref<1x50x64xf32, #tpu.memory_space<vmem>>, vector<1x1x64xf32>
      %403 = vector.shape_cast %402 : vector<1x1x64xf32> to vector<64xf32>
      %404 = vector.shape_cast %403 : vector<64xf32> to vector<1x1x64xf32>
      %cst_142 = arith.constant 0.000000e+00 : f32
      %405 = vector.broadcast %cst_142 : f32 to vector<2x8x24xf32>
      %406 = vector.extract_strided_slice %401 {offsets = [0, 0, 0], sizes = [2, 8, 40], strides = [1, 1, 1]} : vector<2x8x64xf32> to vector<2x8x40xf32>
      %407 = tpu.concatenate %405, %406 in 2 : vector<2x8x24xf32>, vector<2x8x40xf32> -> vector<2x8x64xf32>
      %408 = vector.broadcast %404 : vector<1x1x64xf32> to vector<2x8x64xf32>
      %409 = arith.mulf %407, %408 : vector<2x8x64xf32>
      %410 = arith.addf %398, %409 : vector<2x8x64xf32>
      %c0_143 = arith.constant 0 : index
      %c43 = arith.constant 43 : index
      %c0_144 = arith.constant 0 : index
      %411 = vector.load %arg4[%c0_143, %c43, %c0_144] : memref<1x50x64xf32, #tpu.memory_space<vmem>>, vector<1x1x64xf32>
      %412 = vector.shape_cast %411 : vector<1x1x64xf32> to vector<64xf32>
      %413 = vector.shape_cast %412 : vector<64xf32> to vector<1x1x64xf32>
      %cst_145 = arith.constant 0.000000e+00 : f32
      %414 = vector.broadcast %cst_145 : f32 to vector<2x8x16xf32>
      %415 = vector.extract_strided_slice %401 {offsets = [0, 0, 0], sizes = [2, 8, 48], strides = [1, 1, 1]} : vector<2x8x64xf32> to vector<2x8x48xf32>
      %416 = tpu.concatenate %414, %415 in 2 : vector<2x8x16xf32>, vector<2x8x48xf32> -> vector<2x8x64xf32>
      %417 = vector.broadcast %413 : vector<1x1x64xf32> to vector<2x8x64xf32>
      %418 = arith.mulf %416, %417 : vector<2x8x64xf32>
      %419 = arith.addf %410, %418 : vector<2x8x64xf32>
      %c0_146 = arith.constant 0 : index
      %c44 = arith.constant 44 : index
      %c0_147 = arith.constant 0 : index
      %420 = vector.load %arg4[%c0_146, %c44, %c0_147] : memref<1x50x64xf32, #tpu.memory_space<vmem>>, vector<1x1x64xf32>
      %421 = vector.shape_cast %420 : vector<1x1x64xf32> to vector<64xf32>
      %422 = vector.shape_cast %421 : vector<64xf32> to vector<1x1x64xf32>
      %cst_148 = arith.constant 0.000000e+00 : f32
      %423 = vector.broadcast %cst_148 : f32 to vector<2x8x8xf32>
      %424 = vector.extract_strided_slice %401 {offsets = [0, 0, 0], sizes = [2, 8, 56], strides = [1, 1, 1]} : vector<2x8x64xf32> to vector<2x8x56xf32>
      %425 = tpu.concatenate %423, %424 in 2 : vector<2x8x8xf32>, vector<2x8x56xf32> -> vector<2x8x64xf32>
      %426 = vector.broadcast %422 : vector<1x1x64xf32> to vector<2x8x64xf32>
      %427 = arith.mulf %425, %426 : vector<2x8x64xf32>
      %428 = arith.addf %419, %427 : vector<2x8x64xf32>
      %c0_149 = arith.constant 0 : index
      %c45 = arith.constant 45 : index
      %c0_150 = arith.constant 0 : index
      %429 = vector.load %arg4[%c0_149, %c45, %c0_150] : memref<1x50x64xf32, #tpu.memory_space<vmem>>, vector<1x1x64xf32>
      %430 = vector.shape_cast %429 : vector<1x1x64xf32> to vector<64xf32>
      %431 = vector.shape_cast %430 : vector<64xf32> to vector<1x1x64xf32>
      %432 = vector.broadcast %431 : vector<1x1x64xf32> to vector<2x8x64xf32>
      %433 = arith.mulf %401, %432 : vector<2x8x64xf32>
      %434 = arith.addf %428, %433 : vector<2x8x64xf32>
      %c0_151 = arith.constant 0 : index
      %c46 = arith.constant 46 : index
      %c0_152 = arith.constant 0 : index
      %435 = vector.load %arg4[%c0_151, %c46, %c0_152] : memref<1x50x64xf32, #tpu.memory_space<vmem>>, vector<1x1x64xf32>
      %436 = vector.shape_cast %435 : vector<1x1x64xf32> to vector<64xf32>
      %437 = vector.shape_cast %436 : vector<64xf32> to vector<1x1x64xf32>
      %cst_153 = arith.constant 0.000000e+00 : f32
      %438 = vector.broadcast %cst_153 : f32 to vector<2x8x8xf32>
      %439 = vector.extract_strided_slice %401 {offsets = [0, 0, 8], sizes = [2, 8, 56], strides = [1, 1, 1]} : vector<2x8x64xf32> to vector<2x8x56xf32>
      %440 = tpu.concatenate %439, %438 in 2 : vector<2x8x56xf32>, vector<2x8x8xf32> -> vector<2x8x64xf32>
      %441 = vector.broadcast %437 : vector<1x1x64xf32> to vector<2x8x64xf32>
      %442 = arith.mulf %440, %441 : vector<2x8x64xf32>
      %443 = arith.addf %434, %442 : vector<2x8x64xf32>
      %c0_154 = arith.constant 0 : index
      %c47 = arith.constant 47 : index
      %c0_155 = arith.constant 0 : index
      %444 = vector.load %arg4[%c0_154, %c47, %c0_155] : memref<1x50x64xf32, #tpu.memory_space<vmem>>, vector<1x1x64xf32>
      %445 = vector.shape_cast %444 : vector<1x1x64xf32> to vector<64xf32>
      %446 = vector.shape_cast %445 : vector<64xf32> to vector<1x1x64xf32>
      %cst_156 = arith.constant 0.000000e+00 : f32
      %447 = vector.broadcast %cst_156 : f32 to vector<2x8x16xf32>
      %448 = vector.extract_strided_slice %401 {offsets = [0, 0, 16], sizes = [2, 8, 48], strides = [1, 1, 1]} : vector<2x8x64xf32> to vector<2x8x48xf32>
      %449 = tpu.concatenate %448, %447 in 2 : vector<2x8x48xf32>, vector<2x8x16xf32> -> vector<2x8x64xf32>
      %450 = vector.broadcast %446 : vector<1x1x64xf32> to vector<2x8x64xf32>
      %451 = arith.mulf %449, %450 : vector<2x8x64xf32>
      %452 = arith.addf %443, %451 : vector<2x8x64xf32>
      %c0_157 = arith.constant 0 : index
      %c48 = arith.constant 48 : index
      %c0_158 = arith.constant 0 : index
      %453 = vector.load %arg4[%c0_157, %c48, %c0_158] : memref<1x50x64xf32, #tpu.memory_space<vmem>>, vector<1x1x64xf32>
      %454 = vector.shape_cast %453 : vector<1x1x64xf32> to vector<64xf32>
      %455 = vector.shape_cast %454 : vector<64xf32> to vector<1x1x64xf32>
      %cst_159 = arith.constant 0.000000e+00 : f32
      %456 = vector.broadcast %cst_159 : f32 to vector<2x8x24xf32>
      %457 = vector.extract_strided_slice %401 {offsets = [0, 0, 24], sizes = [2, 8, 40], strides = [1, 1, 1]} : vector<2x8x64xf32> to vector<2x8x40xf32>
      %458 = tpu.concatenate %457, %456 in 2 : vector<2x8x40xf32>, vector<2x8x24xf32> -> vector<2x8x64xf32>
      %459 = vector.broadcast %455 : vector<1x1x64xf32> to vector<2x8x64xf32>
      %460 = arith.mulf %458, %459 : vector<2x8x64xf32>
      %461 = arith.addf %452, %460 : vector<2x8x64xf32>
      %462 = arith.mulf %1, %461 : vector<2x8x64xf32>
      %c0_160 = arith.constant 0 : index
      %c0_161 = arith.constant 0 : index
      %c0_162 = arith.constant 0 : index
      %c0_163 = arith.constant 0 : index
      %463 = vector.load %arg5[%c0_160, %c0_161, %c0_162, %c0_163] : memref<2x1x8x64xf32, #tpu.memory_space<vmem>>, vector<2x1x8x64xf32>
      %464 = vector.shape_cast %463 : vector<2x1x8x64xf32> to vector<2x8x64xf32>
      %465 = vector.shape_cast %462 : vector<2x8x64xf32> to vector<2x1x8x64xf32>
      tpu.vector_store %arg5[%c0_160, %c0_161, %c0_162, %c0_163], %465 {strides = array<i32>} : memref<2x1x8x64xf32, #tpu.memory_space<vmem>>, vector<2x1x8x64xf32>,
    } else {
    }
    return
  }
  func.func @transform_0(%arg0: i32, %arg1: i32) -> (i32, i32, i32, i32) {
    %c0_i32 = arith.constant 0 : i32
    %c0_i32_0 = arith.constant 0 : i32
    %c0_i32_1 = arith.constant 0 : i32
    return %arg1, %arg0, %c0_i32, %c0_i32_0 : i32, i32, i32, i32
  }
  func.func @transform_1(%arg0: i32, %arg1: i32) -> (i32, i32, i32, i32) {
    %c0_i32 = arith.constant 0 : i32
    %c0_i32_0 = arith.constant 0 : i32
    %c0_i32_1 = arith.constant 0 : i32
    return %arg1, %arg0, %c0_i32, %c0_i32_0 : i32, i32, i32, i32
  }
  func.func @transform_2(%arg0: i32, %arg1: i32) -> (i32, i32, i32) {
    %c0_i32 = arith.constant 0 : i32
    %c0_i32_0 = arith.constant 0 : i32
    %c0_i32_1 = arith.constant 0 : i32
    return %arg0, %c0_i32, %c0_i32_0 : i32, i32, i32
  }
  func.func @transform_3(%arg0: i32, %arg1: i32) -> (i32, i32, i32, i32) {
    %c0_i32 = arith.constant 0 : i32
    %c0_i32_0 = arith.constant 0 : i32
    %c0_i32_1 = arith.constant 0 : i32
    return %arg1, %arg0, %c0_i32, %c0_i32_0 : i32, i32, i32, i32
  }
}

</mosaic_0001>

<llo_original>
// kernel: tpu_custom_call.1
$region0: #{tpu_custom_call.1}
  #allocation0 [shape = 'u32[]', space=smem, size = 0x4, offset = 0x4, fixed_abs, tag = 'smem constant byte address 0x4 - core index']
  #allocation1 [shape = 'u32[144,128]{1,0:T(1,128)}', space=vmem, size = 0x12000, scoped, tag = 'internal scratch']
  %s0 = inlined_call_operand.vmem [shape: f32[2,8,8,64], index: 0, kind: input, shape index: {}]
  %s1 = inlined_call_operand.vmem [shape: f32[2,8,8,64], index: 1, kind: input, shape index: {}]
  %s2 = inlined_call_operand.vmem [shape: f32[8,50,64], index: 2, kind: input, shape index: {}]
  %s3 = inlined_call_operand.hbm [shape: f32[2,8,8,64], index: 3, kind: output, shape index: {}]
  %s4 = sld [smem:[#allocation0]]
  $region133: #{tpu_custom_call.1} parent=0
    _
  %s6 = ssub.s32 1, %s4
  %s7 = scalar_select 0, %s6, %s4
  $region1: #{tpu_custom_call.1} parent=0
    #allocation2 [shape = 'u8[16384]{0}', space=vmem, size = 0x4000, scoped, tag = 'input window, operand 0']
    #allocation3 [shape = 'u8[16384]{0}', space=vmem, size = 0x4000, scoped, tag = 'input window, operand 1']
    #allocation4 [shape = 'u8[16384]{0}', space=vmem, size = 0x4000, scoped, tag = 'output window, operand 0']
    #allocation5 [shape = 's32[2]{0}', space=sflag, size = 0x8, scoped, tag = 'scoped memory for tpu_custom_call.1']
    %8 = vsyncpa [#allocation5], 0
    %s9 = scalar_lea.sflag [#allocation5], 1
    %10 = vsyncpa %s9, 0
    loop: start=0, step=1, limit=10
    $region2: #{tpu_custom_call.1} parent=1 // loop_pre_header
      _
    $region3: #{tpu_custom_call.1} parent=1 // loop_header
      %s12 = sphi 0, %s16
      %p13 = scmp.ge.s32.totalorder %s12, 10
      %s19 = sphi 0, %s31
      %s20 = sphi 0, %s27
      %s21 = sphi 0, %s19
      %s22 = sphi 0, %s20
      %s23 = sphi 0, %s21
      %s24 = sphi 0, %s22
      %s36 = sphi 0, %s38
      %s39 = sphi 0, %s36
      %s40 = sphi 0, %s39
      %s56 = sphi 0, %s40
      %s64 = sphi 0, %s66
      %s67 = sphi 0, %s64
      %s68 = sphi 0, %s67
      %s84 = sphi 0, %s68
      %s90 = sphi 0, %s92
      %s93 = sphi 0, %s90
      %s94 = sphi 0, %s93
      %s110 = sphi 0, %s94
      %s118 = sphi 0, %s120
      %s121 = sphi 0, %s118
      %s122 = sphi 0, %s121
      %s138 = sphi 0, %s122
    $region4: #{tpu_custom_call.1} parent=1 // loop_header_branch
      %15 = sbr.rel (%p13) target = $region8
    $region5: #{tpu_custom_call.1} parent=1 // loop_body
      %s17 = ssub.s32 %s12, 1
      %s18 = ssub.s32 %s12, 2
      %s25 = sadd.s32 1, %s20
      %p26 = scmp.ge.s32.totalorder %s25, 1
      %s27 = scalar_select %p26, 0, %s25
      %s28 = sadd.s32 1, %s19
      %s29 = scalar_select %p26, %s28, %s19
      %p30 = scmp.ge.s32.totalorder %s29, 8
      %s31 = scalar_select %p30, 0, %s29
      %s32 = ssub.s32 %s20, %s27
      %s33 = ssub.s32 %s19, %s31
      %s34 = sor.u32 %s32, %s33
      %p35 = scmp.eq.s32.totalorder %s34, 0
      %s37 = sadd.s32 %s36, 1
      %s38 = scalar_select %p35, %s36, %s37
      %p41 = pneg %p35
      %p42 = scmp.eq.s32.totalorder %s12, 7
      %p43 = por %p41, %p42
      %p44 = scmp.ne.s32.totalorder %s36, %s39
      %p45 = scmp.eq.s32.totalorder %s12, 0
      %p46 = por %p44, %p45
      %p47 = scmp.ne.s32.totalorder %s36, %s39
      %p48 = scmp.eq.s32.totalorder %s17, 7
      %p49 = por %p47, %p48
      %p50 = scmp.ne.s32.totalorder %s39, %s40
      %p51 = scmp.eq.s32.totalorder %s17, 0
      %p52 = por %p50, %p51
      %p53 = scmp.ne.s32.totalorder %s39, %s40
      %p54 = scmp.eq.s32.totalorder %s18, 7
      %p55 = por %p53, %p54
      %p57 = scmp.ne.s32.totalorder %s40, %s56
      %p58 = scmp.eq.s32.totalorder %s18, 0
      %p59 = por %p57, %p58
      %s60 = ssub.s32 %s20, %s27
      %s61 = ssub.s32 %s19, %s31
      %s62 = sor.u32 %s60, %s61
      %p63 = scmp.eq.s32.totalorder %s62, 0
      %s65 = sadd.s32 %s64, 1
      %s66 = scalar_select %p63, %s64, %s65
      %p69 = pneg %p63
      %p70 = scmp.eq.s32.totalorder %s12, 7
      %p71 = por %p69, %p70
      %p72 = scmp.ne.s32.totalorder %s64, %s67
      %p73 = scmp.eq.s32.totalorder %s12, 0
      %p74 = por %p72, %p73
      %p75 = scmp.ne.s32.totalorder %s64, %s67
      %p76 = scmp.eq.s32.totalorder %s17, 7
      %p77 = por %p75, %p76
      %p78 = scmp.ne.s32.totalorder %s67, %s68
      %p79 = scmp.eq.s32.totalorder %s17, 0
      %p80 = por %p78, %p79
      %p81 = scmp.ne.s32.totalorder %s67, %s68
      %p82 = scmp.eq.s32.totalorder %s18, 7
      %p83 = por %p81, %p82
      %p85 = scmp.ne.s32.totalorder %s68, %s84
      %p86 = scmp.eq.s32.totalorder %s18, 0
      %p87 = por %p85, %p86
      %s88 = ssub.s32 %s19, %s31
      %p89 = scmp.eq.s32.totalorder %s88, 0
      %s91 = sadd.s32 %s90, 1
      %s92 = scalar_select %p89, %s90, %s91
      %p95 = pneg %p89
      %p96 = scmp.eq.s32.totalorder %s12, 7
      %p97 = por %p95, %p96
      %p98 = scmp.ne.s32.totalorder %s90, %s93
      %p99 = scmp.eq.s32.totalorder %s12, 0
      %p100 = por %p98, %p99
      %p101 = scmp.ne.s32.totalorder %s90, %s93
      %p102 = scmp.eq.s32.totalorder %s17, 7
      %p103 = por %p101, %p102
      %p104 = scmp.ne.s32.totalorder %s93, %s94
      %p105 = scmp.eq.s32.totalorder %s17, 0
      %p106 = por %p104, %p105
      %p107 = scmp.ne.s32.totalorder %s93, %s94
      %p108 = scmp.eq.s32.totalorder %s18, 7
      %p109 = por %p107, %p108
      %p111 = scmp.ne.s32.totalorder %s94, %s110
      %p112 = scmp.eq.s32.totalorder %s18, 0
      %p113 = por %p111, %p112
      %s114 = ssub.s32 %s20, %s27
      %s115 = ssub.s32 %s19, %s31
      %s116 = sor.u32 %s114, %s115
      %p117 = scmp.eq.s32.totalorder %s116, 0
      %s119 = sadd.s32 %s118, 1
      %s120 = scalar_select %p117, %s118, %s119
      %p123 = pneg %p117
      %p124 = scmp.eq.s32.totalorder %s12, 7
      %p125 = por %p123, %p124
      %p126 = scmp.ne.s32.totalorder %s118, %s121
      %p127 = scmp.eq.s32.totalorder %s12, 0
      %p128 = por %p126, %p127
      %p129 = scmp.ne.s32.totalorder %s118, %s121
      %p130 = scmp.eq.s32.totalorder %s17, 7
      %p131 = por %p129, %p130
      %p132 = scmp.ne.s32.totalorder %s121, %s122
      %p133 = scmp.eq.s32.totalorder %s17, 0
      %p134 = por %p132, %p133
      %p135 = scmp.ne.s32.totalorder %s121, %s122
      %p136 = scmp.eq.s32.totalorder %s18, 7
      %p137 = por %p135, %p136
      %p139 = scmp.ne.s32.totalorder %s122, %s138
      %p140 = scmp.eq.s32.totalorder %s18, 0
      %p141 = por %p139, %p140
      %p142 = scmp.le.s32.totalorder 1, %s12
      %p143 = scmp.lt.s32.totalorder %s12, 9
      %p144 = pnand %p142, %p143
      %p145 = pneg %p144
      // Predicated region
      $region9: #{tpu_custom_call.1} parent=5 // pred_check
        _
      $region10: #{tpu_custom_call.1} parent=5 // pred_check_branch
        %147 = sbr.rel (%p144) target = $region12
      $region11: #{tpu_custom_call.1} parent=5 // pred_region
        %s148 = ssub.s32 %s12, 1
      $region12: #{tpu_custom_call.1} parent=5 // pred_fallthru
        _
      %p149 = scmp.lt.s32.totalorder %s12, 8
      // Predicated region
      $region13: #{tpu_custom_call.1} parent=5 // pred_check
        %p150 = pneg %p149
      $region14: #{tpu_custom_call.1} parent=5 // pred_check_branch
        %152 = sbr.rel (%p150) target = $region16
      $region15: #{tpu_custom_call.1} parent=5 // pred_region
        // Predicated region
        $region17: #{tpu_custom_call.1} parent=15 // pred_check
          %p153 = pneg %p46
        $region18: #{tpu_custom_call.1} parent=15 // pred_check_branch
          %155 = sbr.rel (%p153) target = $region20
        $region19: #{tpu_custom_call.1} parent=15 // pred_region
          %s156 = sand.u32 %s36, 1
          %s157 = sand.u32 %s36, 1
          %s158 = smul.addr %s157, 16
          %s159 = scalar_lea.vmem [#allocation2], %s158
          %s160 = smul.u32 2, %s20
          %s161 = smul.addr %s160, 8
          %s162 = sadd.s32 %s19, %s161
          %s163 = smul.addr %s162, 8
          %s164 = scalar_lea.vmem %s0, %s163
          // Predicated region
          $region21: #{tpu_custom_call.1} parent=19 // pred_check
            _
          $region22: #{tpu_custom_call.1} parent=19 // pred_check_branch
            %166 = sbr.rel (0) target = $region24
          $region23: #{tpu_custom_call.1} parent=19 // pred_region
            // Predicated region
            $region25: #{tpu_custom_call.1} parent=23 // pred_check
              _
            $region26: #{tpu_custom_call.1} parent=23 // pred_check_branch
              %168 = sbr.rel (0) target = $region28
            $region27: #{tpu_custom_call.1} parent=23 // pred_region
              // Predicated region
              $region40: #{tpu_custom_call.1} parent=27 // pred_check
                _
              $region41: #{tpu_custom_call.1} parent=27 // pred_check_branch
                %186 = sbr.rel (0) target = $region43
              $region42: #{tpu_custom_call.1} parent=27 // pred_region
                loop: start=0, step=1, limit=1
                $region44: #{tpu_custom_call.1} parent=42 // loop_pre_header
                  _
                $region45: #{tpu_custom_call.1} parent=42 // loop_header
                  %s188 = sphi 0, %s192
                  %p189 = scmp.ge.s32.totalorder %s188, 1
                  %s193 = sphi %s164, %s164
                  %s194 = sphi %s159, %s159
                $region46: #{tpu_custom_call.1} parent=42 // loop_header_branch
                  %191 = sbr.rel (%p189) target = $region50
                $region47: #{tpu_custom_call.1} parent=42 // loop_body
                  %v195 = vld [vmem:[%s193] sm:$0xff]
                  %196 = vst [vmem:[%s194] sm:$0xff] %v195
                  %v197 = vld [vmem:[%s193 + $0x40] sm:$0xff]
                  %198 = vst [vmem:[%s194 + $0x8] sm:$0xff] %v197
                $region48: #{tpu_custom_call.1} parent=42 // loop_footer
                  %s192 = sadd.s32 1, %s188
                $region49: #{tpu_custom_call.1} parent=42 // loop_footer_branch
                  %187 = sbr.rel target = $region45
                $region50: #{tpu_custom_call.1} parent=42 // loop_exit
                  _
              $region43: #{tpu_custom_call.1} parent=27 // pred_fallthru
                _
              // Predicated region
              $region51: #{tpu_custom_call.1} parent=27 // pred_check
                _
              $region52: #{tpu_custom_call.1} parent=27 // pred_check_branch
                %200 = sbr.rel target = $region54
              $region53: #{tpu_custom_call.1} parent=27 // pred_region
                _
              $region54: #{tpu_custom_call.1} parent=27 // pred_fallthru
                _
            $region28: #{tpu_custom_call.1} parent=23 // pred_fallthru
              _
            // Predicated region
            $region29: #{tpu_custom_call.1} parent=23 // pred_check
              _
            $region30: #{tpu_custom_call.1} parent=23 // pred_check_branch
              %170 = sbr.rel target = $region32
            $region31: #{tpu_custom_call.1} parent=23 // pred_region
              %s172 = ssub.s32 256, 1
              loop: start=0, step=1, limit=1
              $region33: #{tpu_custom_call.1} parent=31 // loop_pre_header
                _
              $region34: #{tpu_custom_call.1} parent=31 // loop_header
                %s174 = sphi 0, %s178
                %p175 = scmp.ge.s32.totalorder %s174, 1
                %s179 = sphi %s164, %s164
                %s180 = sphi %s159, %s159
              $region35: #{tpu_custom_call.1} parent=31 // loop_header_branch
                %177 = sbr.rel (%p175) target = $region39
              $region36: #{tpu_custom_call.1} parent=31 // loop_body
                %v181 = vld [vmem:[%s179] sm:%s172]
                %182 = vst [vmem:[%s180] sm:%s172] %v181
                %v183 = vld [vmem:[%s179 + $0x40] sm:%s172]
                %184 = vst [vmem:[%s180 + $0x8] sm:%s172] %v183
              $region37: #{tpu_custom_call.1} parent=31 // loop_footer
                %s178 = sadd.s32 1, %s174
              $region38: #{tpu_custom_call.1} parent=31 // loop_footer_branch
                %173 = sbr.rel target = $region34
              $region39: #{tpu_custom_call.1} parent=31 // loop_exit
                _
            $region32: #{tpu_custom_call.1} parent=23 // pred_fallthru
              _
          $region24: #{tpu_custom_call.1} parent=19 // pred_fallthru
            _
          %201 = vnop
        $region20: #{tpu_custom_call.1} parent=15 // pred_fallthru
          _
        // Predicated region
        $region55: #{tpu_custom_call.1} parent=15 // pred_check
          %p202 = pneg %p74
        $region56: #{tpu_custom_call.1} parent=15 // pred_check_branch
          %204 = sbr.rel (%p202) target = $region58
        $region57: #{tpu_custom_call.1} parent=15 // pred_region
          %s205 = sand.u32 %s64, 1
          %s206 = sand.u32 %s64, 1
          %s207 = smul.addr %s206, 16
          %s208 = scalar_lea.vmem [#allocation3], %s207
          %s209 = smul.u32 2, %s20
          %s210 = smul.addr %s209, 8
          %s211 = sadd.s32 %s19, %s210
          %s212 = smul.addr %s211, 8
          %s213 = scalar_lea.vmem %s1, %s212
          // Predicated region
          $region59: #{tpu_custom_call.1} parent=57 // pred_check
            _
          $region60: #{tpu_custom_call.1} parent=57 // pred_check_branch
            %215 = sbr.rel (0) target = $region62
          $region61: #{tpu_custom_call.1} parent=57 // pred_region
            // Predicated region
            $region63: #{tpu_custom_call.1} parent=61 // pred_check
              _
            $region64: #{tpu_custom_call.1} parent=61 // pred_check_branch
              %217 = sbr.rel (0) target = $region66
            $region65: #{tpu_custom_call.1} parent=61 // pred_region
              // Predicated region
              $region78: #{tpu_custom_call.1} parent=65 // pred_check
                _
              $region79: #{tpu_custom_call.1} parent=65 // pred_check_branch
                %235 = sbr.rel (0) target = $region81
              $region80: #{tpu_custom_call.1} parent=65 // pred_region
                loop: start=0, step=1, limit=1
                $region82: #{tpu_custom_call.1} parent=80 // loop_pre_header
                  _
                $region83: #{tpu_custom_call.1} parent=80 // loop_header
                  %s237 = sphi 0, %s241
                  %p238 = scmp.ge.s32.totalorder %s237, 1
                  %s242 = sphi %s213, %s213
                  %s243 = sphi %s208, %s208
                $region84: #{tpu_custom_call.1} parent=80 // loop_header_branch
                  %240 = sbr.rel (%p238) target = $region88
                $region85: #{tpu_custom_call.1} parent=80 // loop_body
                  %v244 = vld [vmem:[%s242] sm:$0xff]
                  %245 = vst [vmem:[%s243] sm:$0xff] %v244
                  %v246 = vld [vmem:[%s242 + $0x40] sm:$0xff]
                  %247 = vst [vmem:[%s243 + $0x8] sm:$0xff] %v246
                $region86: #{tpu_custom_call.1} parent=80 // loop_footer
                  %s241 = sadd.s32 1, %s237
                $region87: #{tpu_custom_call.1} parent=80 // loop_footer_branch
                  %236 = sbr.rel target = $region83
                $region88: #{tpu_custom_call.1} parent=80 // loop_exit
                  _
              $region81: #{tpu_custom_call.1} parent=65 // pred_fallthru
                _
              // Predicated region
              $region89: #{tpu_custom_call.1} parent=65 // pred_check
                _
              $region90: #{tpu_custom_call.1} parent=65 // pred_check_branch
                %249 = sbr.rel target = $region92
              $region91: #{tpu_custom_call.1} parent=65 // pred_region
                _
              $region92: #{tpu_custom_call.1} parent=65 // pred_fallthru
                _
            $region66: #{tpu_custom_call.1} parent=61 // pred_fallthru
              _
            // Predicated region
            $region67: #{tpu_custom_call.1} parent=61 // pred_check
              _
            $region68: #{tpu_custom_call.1} parent=61 // pred_check_branch
              %219 = sbr.rel target = $region70
            $region69: #{tpu_custom_call.1} parent=61 // pred_region
              %s221 = ssub.s32 256, 1
              loop: start=0, step=1, limit=1
              $region71: #{tpu_custom_call.1} parent=69 // loop_pre_header
                _
              $region72: #{tpu_custom_call.1} parent=69 // loop_header
                %s223 = sphi 0, %s227
                %p224 = scmp.ge.s32.totalorder %s223, 1
                %s228 = sphi %s213, %s213
                %s229 = sphi %s208, %s208
              $region73: #{tpu_custom_call.1} parent=69 // loop_header_branch
                %226 = sbr.rel (%p224) target = $region77
              $region74: #{tpu_custom_call.1} parent=69 // loop_body
                %v230 = vld [vmem:[%s228] sm:%s221]
                %231 = vst [vmem:[%s229] sm:%s221] %v230
                %v232 = vld [vmem:[%s228 + $0x40] sm:%s221]
                %233 = vst [vmem:[%s229 + $0x8] sm:%s221] %v232
              $region75: #{tpu_custom_call.1} parent=69 // loop_footer
                %s227 = sadd.s32 1, %s223
              $region76: #{tpu_custom_call.1} parent=69 // loop_footer_branch
                %222 = sbr.rel target = $region72
              $region77: #{tpu_custom_call.1} parent=69 // loop_exit
                _
            $region70: #{tpu_custom_call.1} parent=61 // pred_fallthru
              _
          $region62: #{tpu_custom_call.1} parent=57 // pred_fallthru
            _
          %250 = vnop
        $region58: #{tpu_custom_call.1} parent=15 // pred_fallthru
          _
        // Predicated region
        $region93: #{tpu_custom_call.1} parent=15 // pred_check
          %p251 = pneg %p100
        $region94: #{tpu_custom_call.1} parent=15 // pred_check_branch
          %253 = sbr.rel (%p251) target = $region96
        $region95: #{tpu_custom_call.1} parent=15 // pred_region
          %p254 = scmp.lt.s32.totalorder %s19, 7
          %s255 = scalar_select %p254, %s19, 7
          %s256 = smul.addr %s255, 7
          %s257 = smul.addr %s256, 8
          %s258 = scalar_lea.vmem %s2, %s257
        $region96: #{tpu_custom_call.1} parent=15 // pred_fallthru
          _
      $region16: #{tpu_custom_call.1} parent=5 // pred_fallthru
        _
      %p259 = scmp.le.s32.totalorder 1, %s12
      %p260 = scmp.lt.s32.totalorder %s12, 9
      %p261 = pnand %p259, %p260
      %p262 = pneg %p261
      // Predicated region
      $region97: #{tpu_custom_call.1} parent=5 // pred_check
        _
      $region98: #{tpu_custom_call.1} parent=5 // pred_check_branch
        %264 = sbr.rel (%p261) target = $region100
      $region99: #{tpu_custom_call.1} parent=5 // pred_region
        %s265 = ssub.s32 %s12, 1
        %s266 = sand.u32 %s39, 1
        %s267 = sand.u32 %s39, 1
        %s268 = smul.addr %s267, 16
        %s269 = scalar_lea.vmem [#allocation2], %s268
        // Predicated region
        $region101: #{tpu_custom_call.1} parent=99 // pred_check
          %p270 = pneg %p52
        $region102: #{tpu_custom_call.1} parent=99 // pred_check_branch
          %272 = sbr.rel (%p270) target = $region104
        $region103: #{tpu_custom_call.1} parent=99 // pred_region
          _
        $region104: #{tpu_custom_call.1} parent=99 // pred_fallthru
          _
        %s273 = sand.u32 %s67, 1
        %s274 = sand.u32 %s67, 1
        %s275 = smul.addr %s274, 16
        %s276 = scalar_lea.vmem [#allocation3], %s275
        // Predicated region
        $region105: #{tpu_custom_call.1} parent=99 // pred_check
          %p277 = pneg %p80
        $region106: #{tpu_custom_call.1} parent=99 // pred_check_branch
          %279 = sbr.rel (%p277) target = $region108
        $region107: #{tpu_custom_call.1} parent=99 // pred_region
          _
        $region108: #{tpu_custom_call.1} parent=99 // pred_fallthru
          _
        %s280 = sand.u32 %s39, 1
        %s281 = sand.u32 %s39, 1
        %s282 = smul.addr %s281, 16
        %s283 = scalar_lea.vmem [#allocation2], %s282
        %p284 = pneg %p52
        %p285 = pneg %p49
        %s286 = sand.u32 %s67, 1
        %s287 = sand.u32 %s67, 1
        %s288 = smul.addr %s287, 16
        %s289 = scalar_lea.vmem [#allocation3], %s288
        %p290 = pneg %p80
        %p291 = pneg %p77
        %p292 = scmp.lt.s32.totalorder %s21, 7
        %s293 = scalar_select %p292, %s21, 7
        %s294 = smul.addr %s293, 7
        %s295 = smul.addr %s294, 8
        %s296 = scalar_lea.vmem %s2, %s295
        %p297 = pneg %p106
        %p298 = pneg %p103
        %p299 = pneg %p134
        %p300 = pneg %p131
        %s301 = sand.u32 %s121, 1
        %s302 = scalar_lea.sflag [#allocation5], %s301
        %s303 = sand.u32 %s121, 1
        %s304 = smul.addr %s303, 16
        %s305 = scalar_lea.vmem [#allocation4], %s304
        %s306 = smul.u32 2, %s22
        %s307 = smul.u32 2, %s22
        %p308 = scmp.lt.s32.totalorder %s21, 7
        %s309 = scalar_select %p308, %s21, 7
        %s310 = smul.addr %s309, 7
        %s311 = smul.addr %s310, 8
        %s312 = scalar_lea.vmem %s2, %s311
        %s313 = smul.u32 2, %s22
        %v314 = vld [vmem:[%s269] sm:$0xff]
        %v315 = vld [vmem:[%s269 + $0x8] sm:$0xff]
        %v316 = vld [vmem:[%s276] sm:$0xff]
        %v317 = vld [vmem:[%s276 + $0x8] sm:$0xff]
        %v318 = vld [vmem:[%s312 + $0x31] sm:$0x1]
        %p319 = scmp.ge.s32.totalorder %s21, 0
        %p320 = scmp.lt.s32.totalorder %s21, 2
        %p321 = pnand %p319, %p320
        %p322 = pneg %p321
        // Predicated region
        $region109: #{tpu_custom_call.1} parent=99 // pred_check
          _
        $region110: #{tpu_custom_call.1} parent=99 // pred_check_branch
          %324 = sbr.rel (%p321) target = $region112
        $region111: #{tpu_custom_call.1} parent=99 // pred_region
          %v325 = vlaneseq
          %v326 = vshrl.u32 %v325, 7
          %v327 = vsub.s32 0, %v326
          %v328 = vrot.slane %v318, %v327
          %v331 = vrot.slane %v316, 7
          %v332 = vrot.slane %v317, 7
          %vm335 = vcmask 1040384
          %v336 = vsel %vm335, 0.0, %v331
          %v337 = vsel %vm335, 0.0, %v332
          %v338 = vld [vmem:[%s312 + $0x10] sm:$0x1]
          %341 = vrot.lane.b32.xlu0 %v336, 8
          %v342 = vpop.permute.xlu0 %341
          %343 = vrot.lane.b32.xlu0 %v337, 8
          %v344 = vpop.permute.xlu0 %343
          %vm347 = vcmask 64512
          %v348 = vsel %vm347, 0.0, %v342
          %v349 = vsel %vm347, 0.0, %v344
          %v350 = vlaneseq
          %v351 = vshrl.u32 %v350, 7
          %v352 = vsub.s32 0, %v351
          %v353 = vrot.slane %v338, %v352
          %v354 = vmul.f32 %v348, %v353
          %v355 = vmul.f32 %v349, %v353
          %v356 = vadd.f32 %v328, %v354
          %v357 = vadd.f32 %v328, %v355
          %v358 = vld [vmem:[%s312 + $0x11] sm:$0x1]
          %v359 = vlaneseq
          %v360 = vshrl.u32 %v359, 7
          %v361 = vsub.s32 0, %v360
          %v362 = vrot.slane %v358, %v361
          %v363 = vmul.f32 %v336, %v362
          %v364 = vmul.f32 %v337, %v362
          %v365 = vadd.f32 %v356, %v363
          %v366 = vadd.f32 %v357, %v364
          %v367 = vld [vmem:[%s312 + $0x12] sm:$0x1]
          %368 = vrot.lane.b32.xlu0 %v336, 120
          %v369 = vpop.permute.xlu0 %368
          %370 = vrot.lane.b32.xlu0 %v337, 120
          %v371 = vpop.permute.xlu0 %370
          %vm374 = vcmask 457728
          %v375 = vsel %vm374, %v369, 0.0
          %v376 = vsel %vm374, %v371, 0.0
          %v377 = vlaneseq
          %v378 = vshrl.u32 %v377, 7
          %v379 = vsub.s32 0, %v378
          %v380 = vrot.slane %v367, %v379
          %v381 = vmul.f32 %v375, %v380
          %v382 = vmul.f32 %v376, %v380
          %v383 = vadd.f32 %v365, %v381
          %v384 = vadd.f32 %v366, %v382
          %v385 = vld [vmem:[%s312 + $0x17] sm:$0x1]
          %386 = vrot.lane.b32.xlu0 %v316, 8
          %v387 = vpop.permute.xlu0 %386
          %388 = vrot.lane.b32.xlu0 %v317, 8
          %v389 = vpop.permute.xlu0 %388
          %v392 = vsel %vm347, 0.0, %v387
          %v393 = vsel %vm347, 0.0, %v389
          %v394 = vlaneseq
          %v395 = vshrl.u32 %v394, 7
          %v396 = vsub.s32 0, %v395
          %v397 = vrot.slane %v385, %v396
          %v398 = vmul.f32 %v392, %v397
          %v399 = vmul.f32 %v393, %v397
          %v400 = vadd.f32 %v383, %v398
          %v401 = vadd.f32 %v384, %v399
          %v402 = vld [vmem:[%s312 + $0x18] sm:$0x1]
          %v403 = vlaneseq
          %v404 = vshrl.u32 %v403, 7
          %v405 = vsub.s32 0, %v404
          %v406 = vrot.slane %v402, %v405
          %v407 = vmul.f32 %v316, %v406
          %v408 = vmul.f32 %v317, %v406
          %v409 = vadd.f32 %v400, %v407
          %v410 = vadd.f32 %v401, %v408
          %v411 = vld [vmem:[%s312 + $0x19] sm:$0x1]
          %412 = vrot.lane.b32.xlu0 %v316, 120
          %v413 = vpop.permute.xlu0 %412
          %414 = vrot.lane.b32.xlu0 %v317, 120
          %v415 = vpop.permute.xlu0 %414
          %v418 = vsel %vm374, %v413, 0.0
          %v419 = vsel %vm374, %v415, 0.0
          %v420 = vlaneseq
          %v421 = vshrl.u32 %v420, 7
          %v422 = vsub.s32 0, %v421
          %v423 = vrot.slane %v411, %v422
          %v424 = vmul.f32 %v418, %v423
          %v425 = vmul.f32 %v419, %v423
          %v426 = vadd.f32 %v409, %v424
          %v427 = vadd.f32 %v410, %v425
          %v428 = vrot.slane %v316, 1
          %v429 = vrot.slane %v317, 1
          %vm432 = vcmask 1046528
          %v433 = vsel %vm432, %v428, 0.0
          %v434 = vsel %vm432, %v429, 0.0
          %v435 = vld [vmem:[%s312 + $0x1e] sm:$0x1]
          %438 = vrot.lane.b32.xlu0 %v433, 8
          %v439 = vpop.permute.xlu0 %438
          %440 = vrot.lane.b32.xlu0 %v434, 8
          %v441 = vpop.permute.xlu0 %440
          %v444 = vsel %vm347, 0.0, %v439
          %v445 = vsel %vm347, 0.0, %v441
          %v446 = vlaneseq
          %v447 = vshrl.u32 %v446, 7
          %v448 = vsub.s32 0, %v447
          %v449 = vrot.slane %v435, %v448
          %v450 = vmul.f32 %v444, %v449
          %v451 = vmul.f32 %v445, %v449
          %v452 = vadd.f32 %v426, %v450
          %v453 = vadd.f32 %v427, %v451
          %v454 = vld [vmem:[%s312 + $0x1f] sm:$0x1]
          %v455 = vlaneseq
          %v456 = vshrl.u32 %v455, 7
          %v457 = vsub.s32 0, %v456
          %v458 = vrot.slane %v454, %v457
          %v459 = vmul.f32 %v433, %v458
          %v460 = vmul.f32 %v434, %v458
          %v461 = vadd.f32 %v452, %v459
          %v462 = vadd.f32 %v453, %v460
          %v463 = vld [vmem:[%s312 + $0x20] sm:$0x1]
          %464 = vrot.lane.b32.xlu0 %v433, 120
          %v465 = vpop.permute.xlu0 %464
          %466 = vrot.lane.b32.xlu0 %v434, 120
          %v467 = vpop.permute.xlu0 %466
          %v470 = vsel %vm374, %v465, 0.0
          %v471 = vsel %vm374, %v467, 0.0
          %v472 = vlaneseq
          %v473 = vshrl.u32 %v472, 7
          %v474 = vsub.s32 0, %v473
          %v475 = vrot.slane %v463, %v474
          %v476 = vmul.f32 %v470, %v475
          %v477 = vmul.f32 %v471, %v475
          %v478 = vadd.f32 %v461, %v476
          %v479 = vadd.f32 %v462, %v477
          %v480 = vmul.f32 %v314, %v478
          %v481 = vmul.f32 %v315, %v479
          %vm482 = vcmask 523264
          %483 = vst.msk [vmem:[%s305] sm:$0xff] %vm482, %v480
          %484 = vst.msk [vmem:[%s305 + $0x8] sm:$0xff] %vm482, %v481
        $region112: #{tpu_custom_call.1} parent=99 // pred_fallthru
          _
        %p485 = scmp.ge.s32.totalorder %s21, 2
        %p486 = scmp.lt.s32.totalorder %s21, 5
        %p487 = pnand %p485, %p486
        %p488 = pneg %p487
        // Predicated region
        $region113: #{tpu_custom_call.1} parent=99 // pred_check
          _
        $region114: #{tpu_custom_call.1} parent=99 // pred_check_branch
          %490 = sbr.rel (%p487) target = $region116
        $region115: #{tpu_custom_call.1} parent=99 // pred_region
          %v491 = vlaneseq
          %v492 = vshrl.u32 %v491, 7
          %v493 = vsub.s32 0, %v492
          %v494 = vrot.slane %v318, %v493
          %v497 = vrot.slane %v316, 6
          %v498 = vrot.slane %v317, 6
          %vm501 = vcmask 1041408
          %v502 = vsel %vm501, 0.0, %v497
          %v503 = vsel %vm501, 0.0, %v498
          %v504 = vld [vmem:[%s312 + $0x8] sm:$0x1]
          %507 = vrot.lane.b32.xlu0 %v502, 16
          %v508 = vpop.permute.xlu0 %507
          %509 = vrot.lane.b32.xlu0 %v503, 16
          %v510 = vpop.permute.xlu0 %509
          %vm513 = vcmask 130048
          %v514 = vsel %vm513, 0.0, %v508
          %v515 = vsel %vm513, 0.0, %v510
          %v516 = vlaneseq
          %v517 = vshrl.u32 %v516, 7
          %v518 = vsub.s32 0, %v517
          %v519 = vrot.slane %v504, %v518
          %v520 = vmul.f32 %v514, %v519
          %v521 = vmul.f32 %v515, %v519
          %v522 = vadd.f32 %v494, %v520
          %v523 = vadd.f32 %v494, %v521
          %v524 = vld [vmem:[%s312 + $0x9] sm:$0x1]
          %525 = vrot.lane.b32.xlu0 %v502, 8
          %v526 = vpop.permute.xlu0 %525
          %527 = vrot.lane.b32.xlu0 %v503, 8
          %v528 = vpop.permute.xlu0 %527
          %vm531 = vcmask 64512
          %v532 = vsel %vm531, 0.0, %v526
          %v533 = vsel %vm531, 0.0, %v528
          %v534 = vlaneseq
          %v535 = vshrl.u32 %v534, 7
          %v536 = vsub.s32 0, %v535
          %v537 = vrot.slane %v524, %v536
          %v538 = vmul.f32 %v532, %v537
          %v539 = vmul.f32 %v533, %v537
          %v540 = vadd.f32 %v522, %v538
          %v541 = vadd.f32 %v523, %v539
          %v542 = vld [vmem:[%s312 + $0xa] sm:$0x1]
          %v543 = vlaneseq
          %v544 = vshrl.u32 %v543, 7
          %v545 = vsub.s32 0, %v544
          %v546 = vrot.slane %v542, %v545
          %v547 = vmul.f32 %v502, %v546
          %v548 = vmul.f32 %v503, %v546
          %v549 = vadd.f32 %v540, %v547
          %v550 = vadd.f32 %v541, %v548
          %v551 = vld [vmem:[%s312 + $0xb] sm:$0x1]
          %552 = vrot.lane.b32.xlu0 %v502, 120
          %v553 = vpop.permute.xlu0 %552
          %554 = vrot.lane.b32.xlu0 %v503, 120
          %v555 = vpop.permute.xlu0 %554
          %vm558 = vcmask 457728
          %v559 = vsel %vm558, %v553, 0.0
          %v560 = vsel %vm558, %v555, 0.0
          %v561 = vlaneseq
          %v562 = vshrl.u32 %v561, 7
          %v563 = vsub.s32 0, %v562
          %v564 = vrot.slane %v551, %v563
          %v565 = vmul.f32 %v559, %v564
          %v566 = vmul.f32 %v560, %v564
          %v567 = vadd.f32 %v549, %v565
          %v568 = vadd.f32 %v550, %v566
          %v569 = vld [vmem:[%s312 + $0xc] sm:$0x1]
          %570 = vrot.lane.b32.xlu0 %v502, 112
          %v571 = vpop.permute.xlu0 %570
          %572 = vrot.lane.b32.xlu0 %v503, 112
          %v573 = vpop.permute.xlu0 %572
          %vm576 = vcmask 392192
          %v577 = vsel %vm576, %v571, 0.0
          %v578 = vsel %vm576, %v573, 0.0
          %v579 = vlaneseq
          %v580 = vshrl.u32 %v579, 7
          %v581 = vsub.s32 0, %v580
          %v582 = vrot.slane %v569, %v581
          %v583 = vmul.f32 %v577, %v582
          %v584 = vmul.f32 %v578, %v582
          %v585 = vadd.f32 %v567, %v583
          %v586 = vadd.f32 %v568, %v584
          %v587 = vrot.slane %v316, 7
          %v588 = vrot.slane %v317, 7
          %vm591 = vcmask 1040384
          %v592 = vsel %vm591, 0.0, %v587
          %v593 = vsel %vm591, 0.0, %v588
          %v594 = vld [vmem:[%s312 + $0xf] sm:$0x1]
          %597 = vrot.lane.b32.xlu0 %v592, 16
          %v598 = vpop.permute.xlu0 %597
          %599 = vrot.lane.b32.xlu0 %v593, 16
          %v600 = vpop.permute.xlu0 %599
          %v603 = vsel %vm513, 0.0, %v598
          %v604 = vsel %vm513, 0.0, %v600
          %v605 = vlaneseq
          %v606 = vshrl.u32 %v605, 7
          %v607 = vsub.s32 0, %v606
          %v608 = vrot.slane %v594, %v607
          %v609 = vmul.f32 %v603, %v608
          %v610 = vmul.f32 %v604, %v608
          %v611 = vadd.f32 %v585, %v609
          %v612 = vadd.f32 %v586, %v610
          %v613 = vld [vmem:[%s312 + $0x10] sm:$0x1]
          %614 = vrot.lane.b32.xlu0 %v592, 8
          %v615 = vpop.permute.xlu0 %614
          %616 = vrot.lane.b32.xlu0 %v593, 8
          %v617 = vpop.permute.xlu0 %616
          %v620 = vsel %vm531, 0.0, %v615
          %v621 = vsel %vm531, 0.0, %v617
          %v622 = vlaneseq
          %v623 = vshrl.u32 %v622, 7
          %v624 = vsub.s32 0, %v623
          %v625 = vrot.slane %v613, %v624
          %v626 = vmul.f32 %v620, %v625
          %v627 = vmul.f32 %v621, %v625
          %v628 = vadd.f32 %v611, %v626
          %v629 = vadd.f32 %v612, %v627
          %v630 = vld [vmem:[%s312 + $0x11] sm:$0x1]
          %v631 = vlaneseq
          %v632 = vshrl.u32 %v631, 7
          %v633 = vsub.s32 0, %v632
          %v634 = vrot.slane %v630, %v633
          %v635 = vmul.f32 %v592, %v634
          %v636 = vmul.f32 %v593, %v634
          %v637 = vadd.f32 %v628, %v635
          %v638 = vadd.f32 %v629, %v636
          %v639 = vld [vmem:[%s312 + $0x12] sm:$0x1]
          %640 = vrot.lane.b32.xlu0 %v592, 120
          %v641 = vpop.permute.xlu0 %640
          %642 = vrot.lane.b32.xlu0 %v593, 120
          %v643 = vpop.permute.xlu0 %642
          %v646 = vsel %vm558, %v641, 0.0
          %v647 = vsel %vm558, %v643, 0.0
          %v648 = vlaneseq
          %v649 = vshrl.u32 %v648, 7
          %v650 = vsub.s32 0, %v649
          %v651 = vrot.slane %v639, %v650
          %v652 = vmul.f32 %v646, %v651
          %v653 = vmul.f32 %v647, %v651
          %v654 = vadd.f32 %v637, %v652
          %v655 = vadd.f32 %v638, %v653
          %v656 = vld [vmem:[%s312 + $0x13] sm:$0x1]
          %657 = vrot.lane.b32.xlu0 %v592, 112
          %v658 = vpop.permute.xlu0 %657
          %659 = vrot.lane.b32.xlu0 %v593, 112
          %v660 = vpop.permute.xlu0 %659
          %v663 = vsel %vm576, %v658, 0.0
          %v664 = vsel %vm576, %v660, 0.0
          %v665 = vlaneseq
          %v666 = vshrl.u32 %v665, 7
          %v667 = vsub.s32 0, %v666
          %v668 = vrot.slane %v656, %v667
          %v669 = vmul.f32 %v663, %v668
          %v670 = vmul.f32 %v664, %v668
          %v671 = vadd.f32 %v654, %v669
          %v672 = vadd.f32 %v655, %v670
          %v673 = vld [vmem:[%s312 + $0x16] sm:$0x1]
          %674 = vrot.lane.b32.xlu0 %v316, 16
          %v675 = vpop.permute.xlu0 %674
          %676 = vrot.lane.b32.xlu0 %v317, 16
          %v677 = vpop.permute.xlu0 %676
          %v680 = vsel %vm513, 0.0, %v675
          %v681 = vsel %vm513, 0.0, %v677
          %v682 = vlaneseq
          %v683 = vshrl.u32 %v682, 7
          %v684 = vsub.s32 0, %v683
          %v685 = vrot.slane %v673, %v684
          %v686 = vmul.f32 %v680, %v685
          %v687 = vmul.f32 %v681, %v685
          %v688 = vadd.f32 %v671, %v686
          %v689 = vadd.f32 %v672, %v687
          %v690 = vld [vmem:[%s312 + $0x17] sm:$0x1]
          %691 = vrot.lane.b32.xlu0 %v316, 8
          %v692 = vpop.permute.xlu0 %691
          %693 = vrot.lane.b32.xlu0 %v317, 8
          %v694 = vpop.permute.xlu0 %693
          %v697 = vsel %vm531, 0.0, %v692
          %v698 = vsel %vm531, 0.0, %v694
          %v699 = vlaneseq
          %v700 = vshrl.u32 %v699, 7
          %v701 = vsub.s32 0, %v700
          %v702 = vrot.slane %v690, %v701
          %v703 = vmul.f32 %v697, %v702
          %v704 = vmul.f32 %v698, %v702
          %v705 = vadd.f32 %v688, %v703
          %v706 = vadd.f32 %v689, %v704
          %v707 = vld [vmem:[%s312 + $0x18] sm:$0x1]
          %v708 = vlaneseq
          %v709 = vshrl.u32 %v708, 7
          %v710 = vsub.s32 0, %v709
          %v711 = vrot.slane %v707, %v710
          %v712 = vmul.f32 %v316, %v711
          %v713 = vmul.f32 %v317, %v711
          %v714 = vadd.f32 %v705, %v712
          %v715 = vadd.f32 %v706, %v713
          %v716 = vld [vmem:[%s312 + $0x19] sm:$0x1]
          %717 = vrot.lane.b32.xlu0 %v316, 120
          %v718 = vpop.permute.xlu0 %717
          %719 = vrot.lane.b32.xlu0 %v317, 120
          %v720 = vpop.permute.xlu0 %719
          %v723 = vsel %vm558, %v718, 0.0
          %v724 = vsel %vm558, %v720, 0.0
          %v725 = vlaneseq
          %v726 = vshrl.u32 %v725, 7
          %v727 = vsub.s32 0, %v726
          %v728 = vrot.slane %v716, %v727
          %v729 = vmul.f32 %v723, %v728
          %v730 = vmul.f32 %v724, %v728
          %v731 = vadd.f32 %v714, %v729
          %v732 = vadd.f32 %v715, %v730
          %v733 = vld [vmem:[%s312 + $0x1a] sm:$0x1]
          %734 = vrot.lane.b32.xlu0 %v316, 112
          %v735 = vpop.permute.xlu0 %734
          %736 = vrot.lane.b32.xlu0 %v317, 112
          %v737 = vpop.permute.xlu0 %736
          %v740 = vsel %vm576, %v735, 0.0
          %v741 = vsel %vm576, %v737, 0.0
          %v742 = vlaneseq
          %v743 = vshrl.u32 %v742, 7
          %v744 = vsub.s32 0, %v743
          %v745 = vrot.slane %v733, %v744
          %v746 = vmul.f32 %v740, %v745
          %v747 = vmul.f32 %v741, %v745
          %v748 = vadd.f32 %v731, %v746
          %v749 = vadd.f32 %v732, %v747
          %v750 = vrot.slane %v316, 1
          %v751 = vrot.slane %v317, 1
          %vm754 = vcmask 1046528
          %v755 = vsel %vm754, %v750, 0.0
          %v756 = vsel %vm754, %v751, 0.0
          %v757 = vld [vmem:[%s312 + $0x1d] sm:$0x1]
          %760 = vrot.lane.b32.xlu0 %v755, 16
          %v761 = vpop.permute.xlu0 %760
          %762 = vrot.lane.b32.xlu0 %v756, 16
          %v763 = vpop.permute.xlu0 %762
          %v766 = vsel %vm513, 0.0, %v761
          %v767 = vsel %vm513, 0.0, %v763
          %v768 = vlaneseq
          %v769 = vshrl.u32 %v768, 7
          %v770 = vsub.s32 0, %v769
          %v771 = vrot.slane %v757, %v770
          %v772 = vmul.f32 %v766, %v771
          %v773 = vmul.f32 %v767, %v771
          %v774 = vadd.f32 %v748, %v772
          %v775 = vadd.f32 %v749, %v773
          %v776 = vld [vmem:[%s312 + $0x1e] sm:$0x1]
          %777 = vrot.lane.b32.xlu0 %v755, 8
          %v778 = vpop.permute.xlu0 %777
          %779 = vrot.lane.b32.xlu0 %v756, 8
          %v780 = vpop.permute.xlu0 %779
          %v783 = vsel %vm531, 0.0, %v778
          %v784 = vsel %vm531, 0.0, %v780
          %v785 = vlaneseq
          %v786 = vshrl.u32 %v785, 7
          %v787 = vsub.s32 0, %v786
          %v788 = vrot.slane %v776, %v787
          %v789 = vmul.f32 %v783, %v788
          %v790 = vmul.f32 %v784, %v788
          %v791 = vadd.f32 %v774, %v789
          %v792 = vadd.f32 %v775, %v790
          %v793 = vld [vmem:[%s312 + $0x1f] sm:$0x1]
          %v794 = vlaneseq
          %v795 = vshrl.u32 %v794, 7
          %v796 = vsub.s32 0, %v795
          %v797 = vrot.slane %v793, %v796
          %v798 = vmul.f32 %v755, %v797
          %v799 = vmul.f32 %v756, %v797
          %v800 = vadd.f32 %v791, %v798
          %v801 = vadd.f32 %v792, %v799
          %v802 = vld [vmem:[%s312 + $0x20] sm:$0x1]
          %803 = vrot.lane.b32.xlu0 %v755, 120
          %v804 = vpop.permute.xlu0 %803
          %805 = vrot.lane.b32.xlu0 %v756, 120
          %v806 = vpop.permute.xlu0 %805
          %v809 = vsel %vm558, %v804, 0.0
          %v810 = vsel %vm558, %v806, 0.0
          %v811 = vlaneseq
          %v812 = vshrl.u32 %v811, 7
          %v813 = vsub.s32 0, %v812
          %v814 = vrot.slane %v802, %v813
          %v815 = vmul.f32 %v809, %v814
          %v816 = vmul.f32 %v810, %v814
          %v817 = vadd.f32 %v800, %v815
          %v818 = vadd.f32 %v801, %v816
          %v819 = vld [vmem:[%s312 + $0x21] sm:$0x1]
          %820 = vrot.lane.b32.xlu0 %v755, 112
          %v821 = vpop.permute.xlu0 %820
          %822 = vrot.lane.b32.xlu0 %v756, 112
          %v823 = vpop.permute.xlu0 %822
          %v826 = vsel %vm576, %v821, 0.0
          %v827 = vsel %vm576, %v823, 0.0
          %v828 = vlaneseq
          %v829 = vshrl.u32 %v828, 7
          %v830 = vsub.s32 0, %v829
          %v831 = vrot.slane %v819, %v830
          %v832 = vmul.f32 %v826, %v831
          %v833 = vmul.f32 %v827, %v831
          %v834 = vadd.f32 %v817, %v832
          %v835 = vadd.f32 %v818, %v833
          %v836 = vrot.slane %v316, 2
          %v837 = vrot.slane %v317, 2
          %vm840 = vcmask 1045504
          %v841 = vsel %vm840, %v836, 0.0
          %v842 = vsel %vm840, %v837, 0.0
          %v843 = vld [vmem:[%s312 + $0x24] sm:$0x1]
          %846 = vrot.lane.b32.xlu0 %v841, 16
          %v847 = vpop.permute.xlu0 %846
          %848 = vrot.lane.b32.xlu0 %v842, 16
          %v849 = vpop.permute.xlu0 %848
          %v852 = vsel %vm513, 0.0, %v847
          %v853 = vsel %vm513, 0.0, %v849
          %v854 = vlaneseq
          %v855 = vshrl.u32 %v854, 7
          %v856 = vsub.s32 0, %v855
          %v857 = vrot.slane %v843, %v856
          %v858 = vmul.f32 %v852, %v857
          %v859 = vmul.f32 %v853, %v857
          %v860 = vadd.f32 %v834, %v858
          %v861 = vadd.f32 %v835, %v859
          %v862 = vld [vmem:[%s312 + $0x25] sm:$0x1]
          %863 = vrot.lane.b32.xlu0 %v841, 8
          %v864 = vpop.permute.xlu0 %863
          %865 = vrot.lane.b32.xlu0 %v842, 8
          %v866 = vpop.permute.xlu0 %865
          %v869 = vsel %vm531, 0.0, %v864
          %v870 = vsel %vm531, 0.0, %v866
          %v871 = vlaneseq
          %v872 = vshrl.u32 %v871, 7
          %v873 = vsub.s32 0, %v872
          %v874 = vrot.slane %v862, %v873
          %v875 = vmul.f32 %v869, %v874
          %v876 = vmul.f32 %v870, %v874
          %v877 = vadd.f32 %v860, %v875
          %v878 = vadd.f32 %v861, %v876
          %v879 = vld [vmem:[%s312 + $0x26] sm:$0x1]
          %v880 = vlaneseq
          %v881 = vshrl.u32 %v880, 7
          %v882 = vsub.s32 0, %v881
          %v883 = vrot.slane %v879, %v882
          %v884 = vmul.f32 %v841, %v883
          %v885 = vmul.f32 %v842, %v883
          %v886 = vadd.f32 %v877, %v884
          %v887 = vadd.f32 %v878, %v885
          %v888 = vld [vmem:[%s312 + $0x27] sm:$0x1]
          %889 = vrot.lane.b32.xlu0 %v841, 120
          %v890 = vpop.permute.xlu0 %889
          %891 = vrot.lane.b32.xlu0 %v842, 120
          %v892 = vpop.permute.xlu0 %891
          %v895 = vsel %vm558, %v890, 0.0
          %v896 = vsel %vm558, %v892, 0.0
          %v897 = vlaneseq
          %v898 = vshrl.u32 %v897, 7
          %v899 = vsub.s32 0, %v898
          %v900 = vrot.slane %v888, %v899
          %v901 = vmul.f32 %v895, %v900
          %v902 = vmul.f32 %v896, %v900
          %v903 = vadd.f32 %v886, %v901
          %v904 = vadd.f32 %v887, %v902
          %v905 = vld [vmem:[%s312 + $0x28] sm:$0x1]
          %906 = vrot.lane.b32.xlu0 %v841, 112
          %v907 = vpop.permute.xlu0 %906
          %908 = vrot.lane.b32.xlu0 %v842, 112
          %v909 = vpop.permute.xlu0 %908
          %v912 = vsel %vm576, %v907, 0.0
          %v913 = vsel %vm576, %v909, 0.0
          %v914 = vlaneseq
          %v915 = vshrl.u32 %v914, 7
          %v916 = vsub.s32 0, %v915
          %v917 = vrot.slane %v905, %v916
          %v918 = vmul.f32 %v912, %v917
          %v919 = vmul.f32 %v913, %v917
          %v920 = vadd.f32 %v903, %v918
          %v921 = vadd.f32 %v904, %v919
          %v922 = vmul.f32 %v314, %v920
          %v923 = vmul.f32 %v315, %v921
          %vm924 = vcmask 523264
          %925 = vst.msk [vmem:[%s305] sm:$0xff] %vm924, %v922
          %926 = vst.msk [vmem:[%s305 + $0x8] sm:$0xff] %vm924, %v923
        $region116: #{tpu_custom_call.1} parent=99 // pred_fallthru
          _
        %p927 = scmp.ge.s32.totalorder %s21, 5
        %p928 = scmp.lt.s32.totalorder %s21, 8
        %p929 = pnand %p927, %p928
        %p930 = pneg %p929
        // Predicated region
        $region117: #{tpu_custom_call.1} parent=99 // pred_check
          _
        $region118: #{tpu_custom_call.1} parent=99 // pred_check_branch
          %932 = sbr.rel (%p929) target = $region120
        $region119: #{tpu_custom_call.1} parent=99 // pred_region
          %v933 = vlaneseq
          %v934 = vshrl.u32 %v933, 7
          %v935 = vsub.s32 0, %v934
          %v936 = vrot.slane %v318, %v935
          %v939 = vrot.slane %v316, 5
          %v940 = vrot.slane %v317, 5
          %vm943 = vcmask 1042432
          %v944 = vsel %vm943, 0.0, %v939
          %v945 = vsel %vm943, 0.0, %v940
          %v946 = vld [vmem:[%s312] sm:$0x1]
          %949 = vrot.lane.b32.xlu0 %v944, 24
          %v950 = vpop.permute.xlu0 %949
          %951 = vrot.lane.b32.xlu0 %v945, 24
          %v952 = vpop.permute.xlu0 %951
          %vm955 = vcmask 195584
          %v956 = vsel %vm955, 0.0, %v950
          %v957 = vsel %vm955, 0.0, %v952
          %v958 = vlaneseq
          %v959 = vshrl.u32 %v958, 7
          %v960 = vsub.s32 0, %v959
          %v961 = vrot.slane %v946, %v960
          %v962 = vmul.f32 %v956, %v961
          %v963 = vmul.f32 %v957, %v961
          %v964 = vadd.f32 %v936, %v962
          %v965 = vadd.f32 %v936, %v963
          %v966 = vld [vmem:[%s312 + $0x1] sm:$0x1]
          %967 = vrot.lane.b32.xlu0 %v944, 16
          %v968 = vpop.permute.xlu0 %967
          %969 = vrot.lane.b32.xlu0 %v945, 16
          %v970 = vpop.permute.xlu0 %969
          %vm973 = vcmask 130048
          %v974 = vsel %vm973, 0.0, %v968
          %v975 = vsel %vm973, 0.0, %v970
          %v976 = vlaneseq
          %v977 = vshrl.u32 %v976, 7
          %v978 = vsub.s32 0, %v977
          %v979 = vrot.slane %v966, %v978
          %v980 = vmul.f32 %v974, %v979
          %v981 = vmul.f32 %v975, %v979
          %v982 = vadd.f32 %v964, %v980
          %v983 = vadd.f32 %v965, %v981
          %v984 = vld [vmem:[%s312 + $0x2] sm:$0x1]
          %985 = vrot.lane.b32.xlu0 %v944, 8
          %v986 = vpop.permute.xlu0 %985
          %987 = vrot.lane.b32.xlu0 %v945, 8
          %v988 = vpop.permute.xlu0 %987
          %vm991 = vcmask 64512
          %v992 = vsel %vm991, 0.0, %v986
          %v993 = vsel %vm991, 0.0, %v988
          %v994 = vlaneseq
          %v995 = vshrl.u32 %v994, 7
          %v996 = vsub.s32 0, %v995
          %v997 = vrot.slane %v984, %v996
          %v998 = vmul.f32 %v992, %v997
          %v999 = vmul.f32 %v993, %v997
          %v1000 = vadd.f32 %v982, %v998
          %v1001 = vadd.f32 %v983, %v999
          %v1002 = vld [vmem:[%s312 + $0x3] sm:$0x1]
          %v1003 = vlaneseq
          %v1004 = vshrl.u32 %v1003, 7
          %v1005 = vsub.s32 0, %v1004
          %v1006 = vrot.slane %v1002, %v1005
          %v1007 = vmul.f32 %v944, %v1006
          %v1008 = vmul.f32 %v945, %v1006
          %v1009 = vadd.f32 %v1000, %v1007
          %v1010 = vadd.f32 %v1001, %v1008
          %v1011 = vld [vmem:[%s312 + $0x4] sm:$0x1]
          %1012 = vrot.lane.b32.xlu0 %v944, 120
          %v1013 = vpop.permute.xlu0 %1012
          %1014 = vrot.lane.b32.xlu0 %v945, 120
          %v1015 = vpop.permute.xlu0 %1014
          %vm1018 = vcmask 457728
          %v1019 = vsel %vm1018, %v1013, 0.0
          %v1020 = vsel %vm1018, %v1015, 0.0
          %v1021 = vlaneseq
          %v1022 = vshrl.u32 %v1021, 7
          %v1023 = vsub.s32 0, %v1022
          %v1024 = vrot.slane %v1011, %v1023
          %v1025 = vmul.f32 %v1019, %v1024
          %v1026 = vmul.f32 %v1020, %v1024
          %v1027 = vadd.f32 %v1009, %v1025
          %v1028 = vadd.f32 %v1010, %v1026
          %v1029 = vld [vmem:[%s312 + $0x5] sm:$0x1]
          %1030 = vrot.lane.b32.xlu0 %v944, 112
          %v1031 = vpop.permute.xlu0 %1030
          %1032 = vrot.lane.b32.xlu0 %v945, 112
          %v1033 = vpop.permute.xlu0 %1032
          %vm1036 = vcmask 392192
          %v1037 = vsel %vm1036, %v1031, 0.0
          %v1038 = vsel %vm1036, %v1033, 0.0
          %v1039 = vlaneseq
          %v1040 = vshrl.u32 %v1039, 7
          %v1041 = vsub.s32 0, %v1040
          %v1042 = vrot.slane %v1029, %v1041
          %v1043 = vmul.f32 %v1037, %v1042
          %v1044 = vmul.f32 %v1038, %v1042
          %v1045 = vadd.f32 %v1027, %v1043
          %v1046 = vadd.f32 %v1028, %v1044
          %v1047 = vld [vmem:[%s312 + $0x6] sm:$0x1]
          %1048 = vrot.lane.b32.xlu0 %v944, 104
          %v1049 = vpop.permute.xlu0 %1048
          %1050 = vrot.lane.b32.xlu0 %v945, 104
          %v1051 = vpop.permute.xlu0 %1050
          %vm1054 = vcmask 326656
          %v1055 = vsel %vm1054, %v1049, 0.0
          %v1056 = vsel %vm1054, %v1051, 0.0
          %v1057 = vlaneseq
          %v1058 = vshrl.u32 %v1057, 7
          %v1059 = vsub.s32 0, %v1058
          %v1060 = vrot.slane %v1047, %v1059
          %v1061 = vmul.f32 %v1055, %v1060
          %v1062 = vmul.f32 %v1056, %v1060
          %v1063 = vadd.f32 %v1045, %v1061
          %v1064 = vadd.f32 %v1046, %v1062
          %v1065 = vrot.slane %v316, 6
          %v1066 = vrot.slane %v317, 6
          %vm1069 = vcmask 1041408
          %v1070 = vsel %vm1069, 0.0, %v1065
          %v1071 = vsel %vm1069, 0.0, %v1066
          %v1072 = vld [vmem:[%s312 + $0x7] sm:$0x1]
          %1075 = vrot.lane.b32.xlu0 %v1070, 24
          %v1076 = vpop.permute.xlu0 %1075
          %1077 = vrot.lane.b32.xlu0 %v1071, 24
          %v1078 = vpop.permute.xlu0 %1077
          %v1081 = vsel %vm955, 0.0, %v1076
          %v1082 = vsel %vm955, 0.0, %v1078
          %v1083 = vlaneseq
          %v1084 = vshrl.u32 %v1083, 7
          %v1085 = vsub.s32 0, %v1084
          %v1086 = vrot.slane %v1072, %v1085
          %v1087 = vmul.f32 %v1081, %v1086
          %v1088 = vmul.f32 %v1082, %v1086
          %v1089 = vadd.f32 %v1063, %v1087
          %v1090 = vadd.f32 %v1064, %v1088
          %v1091 = vld [vmem:[%s312 + $0x8] sm:$0x1]
          %1092 = vrot.lane.b32.xlu0 %v1070, 16
          %v1093 = vpop.permute.xlu0 %1092
          %1094 = vrot.lane.b32.xlu0 %v1071, 16
          %v1095 = vpop.permute.xlu0 %1094
          %v1098 = vsel %vm973, 0.0, %v1093
          %v1099 = vsel %vm973, 0.0, %v1095
          %v1100 = vlaneseq
          %v1101 = vshrl.u32 %v1100, 7
          %v1102 = vsub.s32 0, %v1101
          %v1103 = vrot.slane %v1091, %v1102
          %v1104 = vmul.f32 %v1098, %v1103
          %v1105 = vmul.f32 %v1099, %v1103
          %v1106 = vadd.f32 %v1089, %v1104
          %v1107 = vadd.f32 %v1090, %v1105
          %v1108 = vld [vmem:[%s312 + $0x9] sm:$0x1]
          %1109 = vrot.lane.b32.xlu0 %v1070, 8
          %v1110 = vpop.permute.xlu0 %1109
          %1111 = vrot.lane.b32.xlu0 %v1071, 8
          %v1112 = vpop.permute.xlu0 %1111
          %v1115 = vsel %vm991, 0.0, %v1110
          %v1116 = vsel %vm991, 0.0, %v1112
          %v1117 = vlaneseq
          %v1118 = vshrl.u32 %v1117, 7
          %v1119 = vsub.s32 0, %v1118
          %v1120 = vrot.slane %v1108, %v1119
          %v1121 = vmul.f32 %v1115, %v1120
          %v1122 = vmul.f32 %v1116, %v1120
          %v1123 = vadd.f32 %v1106, %v1121
          %v1124 = vadd.f32 %v1107, %v1122
          %v1125 = vld [vmem:[%s312 + $0xa] sm:$0x1]
          %v1126 = vlaneseq
          %v1127 = vshrl.u32 %v1126, 7
          %v1128 = vsub.s32 0, %v1127
          %v1129 = vrot.slane %v1125, %v1128
          %v1130 = vmul.f32 %v1070, %v1129
          %v1131 = vmul.f32 %v1071, %v1129
          %v1132 = vadd.f32 %v1123, %v1130
          %v1133 = vadd.f32 %v1124, %v1131
          %v1134 = vld [vmem:[%s312 + $0xb] sm:$0x1]
          %1135 = vrot.lane.b32.xlu0 %v1070, 120
          %v1136 = vpop.permute.xlu0 %1135
          %1137 = vrot.lane.b32.xlu0 %v1071, 120
          %v1138 = vpop.permute.xlu0 %1137
          %v1141 = vsel %vm1018, %v1136, 0.0
          %v1142 = vsel %vm1018, %v1138, 0.0
          %v1143 = vlaneseq
          %v1144 = vshrl.u32 %v1143, 7
          %v1145 = vsub.s32 0, %v1144
          %v1146 = vrot.slane %v1134, %v1145
          %v1147 = vmul.f32 %v1141, %v1146
          %v1148 = vmul.f32 %v1142, %v1146
          %v1149 = vadd.f32 %v1132, %v1147
          %v1150 = vadd.f32 %v1133, %v1148
          %v1151 = vld [vmem:[%s312 + $0xc] sm:$0x1]
          %1152 = vrot.lane.b32.xlu0 %v1070, 112
          %v1153 = vpop.permute.xlu0 %1152
          %1154 = vrot.lane.b32.xlu0 %v1071, 112
          %v1155 = vpop.permute.xlu0 %1154
          %v1158 = vsel %vm1036, %v1153, 0.0
          %v1159 = vsel %vm1036, %v1155, 0.0
          %v1160 = vlaneseq
          %v1161 = vshrl.u32 %v1160, 7
          %v1162 = vsub.s32 0, %v1161
          %v1163 = vrot.slane %v1151, %v1162
          %v1164 = vmul.f32 %v1158, %v1163
          %v1165 = vmul.f32 %v1159, %v1163
          %v1166 = vadd.f32 %v1149, %v1164
          %v1167 = vadd.f32 %v1150, %v1165
          %v1168 = vld [vmem:[%s312 + $0xd] sm:$0x1]
          %1169 = vrot.lane.b32.xlu0 %v1070, 104
          %v1170 = vpop.permute.xlu0 %1169
          %1171 = vrot.lane.b32.xlu0 %v1071, 104
          %v1172 = vpop.permute.xlu0 %1171
          %v1175 = vsel %vm1054, %v1170, 0.0
          %v1176 = vsel %vm1054, %v1172, 0.0
          %v1177 = vlaneseq
          %v1178 = vshrl.u32 %v1177, 7
          %v1179 = vsub.s32 0, %v1178
          %v1180 = vrot.slane %v1168, %v1179
          %v1181 = vmul.f32 %v1175, %v1180
          %v1182 = vmul.f32 %v1176, %v1180
          %v1183 = vadd.f32 %v1166, %v1181
          %v1184 = vadd.f32 %v1167, %v1182
          %v1185 = vrot.slane %v316, 7
          %v1186 = vrot.slane %v317, 7
          %vm1189 = vcmask 1040384
          %v1190 = vsel %vm1189, 0.0, %v1185
          %v1191 = vsel %vm1189, 0.0, %v1186
          %v1192 = vld [vmem:[%s312 + $0xe] sm:$0x1]
          %1195 = vrot.lane.b32.xlu0 %v1190, 24
          %v1196 = vpop.permute.xlu0 %1195
          %1197 = vrot.lane.b32.xlu0 %v1191, 24
          %v1198 = vpop.permute.xlu0 %1197
          %v1201 = vsel %vm955, 0.0, %v1196
          %v1202 = vsel %vm955, 0.0, %v1198
          %v1203 = vlaneseq
          %v1204 = vshrl.u32 %v1203, 7
          %v1205 = vsub.s32 0, %v1204
          %v1206 = vrot.slane %v1192, %v1205
          %v1207 = vmul.f32 %v1201, %v1206
          %v1208 = vmul.f32 %v1202, %v1206
          %v1209 = vadd.f32 %v1183, %v1207
          %v1210 = vadd.f32 %v1184, %v1208
          %v1211 = vld [vmem:[%s312 + $0xf] sm:$0x1]
          %1212 = vrot.lane.b32.xlu0 %v1190, 16
          %v1213 = vpop.permute.xlu0 %1212
          %1214 = vrot.lane.b32.xlu0 %v1191, 16
          %v1215 = vpop.permute.xlu0 %1214
          %v1218 = vsel %vm973, 0.0, %v1213
          %v1219 = vsel %vm973, 0.0, %v1215
          %v1220 = vlaneseq
          %v1221 = vshrl.u32 %v1220, 7
          %v1222 = vsub.s32 0, %v1221
          %v1223 = vrot.slane %v1211, %v1222
          %v1224 = vmul.f32 %v1218, %v1223
          %v1225 = vmul.f32 %v1219, %v1223
          %v1226 = vadd.f32 %v1209, %v1224
          %v1227 = vadd.f32 %v1210, %v1225
          %v1228 = vld [vmem:[%s312 + $0x10] sm:$0x1]
          %1229 = vrot.lane.b32.xlu0 %v1190, 8
          %v1230 = vpop.permute.xlu0 %1229
          %1231 = vrot.lane.b32.xlu0 %v1191, 8
          %v1232 = vpop.permute.xlu0 %1231
          %v1235 = vsel %vm991, 0.0, %v1230
          %v1236 = vsel %vm991, 0.0, %v1232
          %v1237 = vlaneseq
          %v1238 = vshrl.u32 %v1237, 7
          %v1239 = vsub.s32 0, %v1238
          %v1240 = vrot.slane %v1228, %v1239
          %v1241 = vmul.f32 %v1235, %v1240
          %v1242 = vmul.f32 %v1236, %v1240
          %v1243 = vadd.f32 %v1226, %v1241
          %v1244 = vadd.f32 %v1227, %v1242
          %v1245 = vld [vmem:[%s312 + $0x11] sm:$0x1]
          %v1246 = vlaneseq
          %v1247 = vshrl.u32 %v1246, 7
          %v1248 = vsub.s32 0, %v1247
          %v1249 = vrot.slane %v1245, %v1248
          %v1250 = vmul.f32 %v1190, %v1249
          %v1251 = vmul.f32 %v1191, %v1249
          %v1252 = vadd.f32 %v1243, %v1250
          %v1253 = vadd.f32 %v1244, %v1251
          %v1254 = vld [vmem:[%s312 + $0x12] sm:$0x1]
          %1255 = vrot.lane.b32.xlu0 %v1190, 120
          %v1256 = vpop.permute.xlu0 %1255
          %1257 = vrot.lane.b32.xlu0 %v1191, 120
          %v1258 = vpop.permute.xlu0 %1257
          %v1261 = vsel %vm1018, %v1256, 0.0
          %v1262 = vsel %vm1018, %v1258, 0.0
          %v1263 = vlaneseq
          %v1264 = vshrl.u32 %v1263, 7
          %v1265 = vsub.s32 0, %v1264
          %v1266 = vrot.slane %v1254, %v1265
          %v1267 = vmul.f32 %v1261, %v1266
          %v1268 = vmul.f32 %v1262, %v1266
          %v1269 = vadd.f32 %v1252, %v1267
          %v1270 = vadd.f32 %v1253, %v1268
          %v1271 = vld [vmem:[%s312 + $0x13] sm:$0x1]
          %1272 = vrot.lane.b32.xlu0 %v1190, 112
          %v1273 = vpop.permute.xlu0 %1272
          %1274 = vrot.lane.b32.xlu0 %v1191, 112
          %v1275 = vpop.permute.xlu0 %1274
          %v1278 = vsel %vm1036, %v1273, 0.0
          %v1279 = vsel %vm1036, %v1275, 0.0
          %v1280 = vlaneseq
          %v1281 = vshrl.u32 %v1280, 7
          %v1282 = vsub.s32 0, %v1281
          %v1283 = vrot.slane %v1271, %v1282
          %v1284 = vmul.f32 %v1278, %v1283
          %v1285 = vmul.f32 %v1279, %v1283
          %v1286 = vadd.f32 %v1269, %v1284
          %v1287 = vadd.f32 %v1270, %v1285
          %v1288 = vld [vmem:[%s312 + $0x14] sm:$0x1]
          %1289 = vrot.lane.b32.xlu0 %v1190, 104
          %v1290 = vpop.permute.xlu0 %1289
          %1291 = vrot.lane.b32.xlu0 %v1191, 104
          %v1292 = vpop.permute.xlu0 %1291
          %v1295 = vsel %vm1054, %v1290, 0.0
          %v1296 = vsel %vm1054, %v1292, 0.0
          %v1297 = vlaneseq
          %v1298 = vshrl.u32 %v1297, 7
          %v1299 = vsub.s32 0, %v1298
          %v1300 = vrot.slane %v1288, %v1299
          %v1301 = vmul.f32 %v1295, %v1300
          %v1302 = vmul.f32 %v1296, %v1300
          %v1303 = vadd.f32 %v1286, %v1301
          %v1304 = vadd.f32 %v1287, %v1302
          %v1305 = vld [vmem:[%s312 + $0x15] sm:$0x1]
          %1306 = vrot.lane.b32.xlu0 %v316, 24
          %v1307 = vpop.permute.xlu0 %1306
          %1308 = vrot.lane.b32.xlu0 %v317, 24
          %v1309 = vpop.permute.xlu0 %1308
          %v1312 = vsel %vm955, 0.0, %v1307
          %v1313 = vsel %vm955, 0.0, %v1309
          %v1314 = vlaneseq
          %v1315 = vshrl.u32 %v1314, 7
          %v1316 = vsub.s32 0, %v1315
          %v1317 = vrot.slane %v1305, %v1316
          %v1318 = vmul.f32 %v1312, %v1317
          %v1319 = vmul.f32 %v1313, %v1317
          %v1320 = vadd.f32 %v1303, %v1318
          %v1321 = vadd.f32 %v1304, %v1319
          %v1322 = vld [vmem:[%s312 + $0x16] sm:$0x1]
          %1323 = vrot.lane.b32.xlu0 %v316, 16
          %v1324 = vpop.permute.xlu0 %1323
          %1325 = vrot.lane.b32.xlu0 %v317, 16
          %v1326 = vpop.permute.xlu0 %1325
          %v1329 = vsel %vm973, 0.0, %v1324
          %v1330 = vsel %vm973, 0.0, %v1326
          %v1331 = vlaneseq
          %v1332 = vshrl.u32 %v1331, 7
          %v1333 = vsub.s32 0, %v1332
          %v1334 = vrot.slane %v1322, %v1333
          %v1335 = vmul.f32 %v1329, %v1334
          %v1336 = vmul.f32 %v1330, %v1334
          %v1337 = vadd.f32 %v1320, %v1335
          %v1338 = vadd.f32 %v1321, %v1336
          %v1339 = vld [vmem:[%s312 + $0x17] sm:$0x1]
          %1340 = vrot.lane.b32.xlu0 %v316, 8
          %v1341 = vpop.permute.xlu0 %1340
          %1342 = vrot.lane.b32.xlu0 %v317, 8
          %v1343 = vpop.permute.xlu0 %1342
          %v1346 = vsel %vm991, 0.0, %v1341
          %v1347 = vsel %vm991, 0.0, %v1343
          %v1348 = vlaneseq
          %v1349 = vshrl.u32 %v1348, 7
          %v1350 = vsub.s32 0, %v1349
          %v1351 = vrot.slane %v1339, %v1350
          %v1352 = vmul.f32 %v1346, %v1351
          %v1353 = vmul.f32 %v1347, %v1351
          %v1354 = vadd.f32 %v1337, %v1352
          %v1355 = vadd.f32 %v1338, %v1353
          %v1356 = vld [vmem:[%s312 + $0x18] sm:$0x1]
          %v1357 = vlaneseq
          %v1358 = vshrl.u32 %v1357, 7
          %v1359 = vsub.s32 0, %v1358
          %v1360 = vrot.slane %v1356, %v1359
          %v1361 = vmul.f32 %v316, %v1360
          %v1362 = vmul.f32 %v317, %v1360
          %v1363 = vadd.f32 %v1354, %v1361
          %v1364 = vadd.f32 %v1355, %v1362
          %v1365 = vld [vmem:[%s312 + $0x19] sm:$0x1]
          %1366 = vrot.lane.b32.xlu0 %v316, 120
          %v1367 = vpop.permute.xlu0 %1366
          %1368 = vrot.lane.b32.xlu0 %v317, 120
          %v1369 = vpop.permute.xlu0 %1368
          %v1372 = vsel %vm1018, %v1367, 0.0
          %v1373 = vsel %vm1018, %v1369, 0.0
          %v1374 = vlaneseq
          %v1375 = vshrl.u32 %v1374, 7
          %v1376 = vsub.s32 0, %v1375
          %v1377 = vrot.slane %v1365, %v1376
          %v1378 = vmul.f32 %v1372, %v1377
          %v1379 = vmul.f32 %v1373, %v1377
          %v1380 = vadd.f32 %v1363, %v1378
          %v1381 = vadd.f32 %v1364, %v1379
          %v1382 = vld [vmem:[%s312 + $0x1a] sm:$0x1]
          %1383 = vrot.lane.b32.xlu0 %v316, 112
          %v1384 = vpop.permute.xlu0 %1383
          %1385 = vrot.lane.b32.xlu0 %v317, 112
          %v1386 = vpop.permute.xlu0 %1385
          %v1389 = vsel %vm1036, %v1384, 0.0
          %v1390 = vsel %vm1036, %v1386, 0.0
          %v1391 = vlaneseq
          %v1392 = vshrl.u32 %v1391, 7
          %v1393 = vsub.s32 0, %v1392
          %v1394 = vrot.slane %v1382, %v1393
          %v1395 = vmul.f32 %v1389, %v1394
          %v1396 = vmul.f32 %v1390, %v1394
          %v1397 = vadd.f32 %v1380, %v1395
          %v1398 = vadd.f32 %v1381, %v1396
          %v1399 = vld [vmem:[%s312 + $0x1b] sm:$0x1]
          %1400 = vrot.lane.b32.xlu0 %v316, 104
          %v1401 = vpop.permute.xlu0 %1400
          %1402 = vrot.lane.b32.xlu0 %v317, 104
          %v1403 = vpop.permute.xlu0 %1402
          %v1406 = vsel %vm1054, %v1401, 0.0
          %v1407 = vsel %vm1054, %v1403, 0.0
          %v1408 = vlaneseq
          %v1409 = vshrl.u32 %v1408, 7
          %v1410 = vsub.s32 0, %v1409
          %v1411 = vrot.slane %v1399, %v1410
          %v1412 = vmul.f32 %v1406, %v1411
          %v1413 = vmul.f32 %v1407, %v1411
          %v1414 = vadd.f32 %v1397, %v1412
          %v1415 = vadd.f32 %v1398, %v1413
          %v1416 = vrot.slane %v316, 1
          %v1417 = vrot.slane %v317, 1
          %vm1420 = vcmask 1046528
          %v1421 = vsel %vm1420, %v1416, 0.0
          %v1422 = vsel %vm1420, %v1417, 0.0
          %v1423 = vld [vmem:[%s312 + $0x1c] sm:$0x1]
          %1426 = vrot.lane.b32.xlu0 %v1421, 24
          %v1427 = vpop.permute.xlu0 %1426
          %1428 = vrot.lane.b32.xlu0 %v1422, 24
          %v1429 = vpop.permute.xlu0 %1428
          %v1432 = vsel %vm955, 0.0, %v1427
          %v1433 = vsel %vm955, 0.0, %v1429
          %v1434 = vlaneseq
          %v1435 = vshrl.u32 %v1434, 7
          %v1436 = vsub.s32 0, %v1435
          %v1437 = vrot.slane %v1423, %v1436
          %v1438 = vmul.f32 %v1432, %v1437
          %v1439 = vmul.f32 %v1433, %v1437
          %v1440 = vadd.f32 %v1414, %v1438
          %v1441 = vadd.f32 %v1415, %v1439
          %v1442 = vld [vmem:[%s312 + $0x1d] sm:$0x1]
          %1443 = vrot.lane.b32.xlu0 %v1421, 16
          %v1444 = vpop.permute.xlu0 %1443
          %1445 = vrot.lane.b32.xlu0 %v1422, 16
          %v1446 = vpop.permute.xlu0 %1445
          %v1449 = vsel %vm973, 0.0, %v1444
          %v1450 = vsel %vm973, 0.0, %v1446
          %v1451 = vlaneseq
          %v1452 = vshrl.u32 %v1451, 7
          %v1453 = vsub.s32 0, %v1452
          %v1454 = vrot.slane %v1442, %v1453
          %v1455 = vmul.f32 %v1449, %v1454
          %v1456 = vmul.f32 %v1450, %v1454
          %v1457 = vadd.f32 %v1440, %v1455
          %v1458 = vadd.f32 %v1441, %v1456
          %v1459 = vld [vmem:[%s312 + $0x1e] sm:$0x1]
          %1460 = vrot.lane.b32.xlu0 %v1421, 8
          %v1461 = vpop.permute.xlu0 %1460
          %1462 = vrot.lane.b32.xlu0 %v1422, 8
          %v1463 = vpop.permute.xlu0 %1462
          %v1466 = vsel %vm991, 0.0, %v1461
          %v1467 = vsel %vm991, 0.0, %v1463
          %v1468 = vlaneseq
          %v1469 = vshrl.u32 %v1468, 7
          %v1470 = vsub.s32 0, %v1469
          %v1471 = vrot.slane %v1459, %v1470
          %v1472 = vmul.f32 %v1466, %v1471
          %v1473 = vmul.f32 %v1467, %v1471
          %v1474 = vadd.f32 %v1457, %v1472
          %v1475 = vadd.f32 %v1458, %v1473
          %v1476 = vld [vmem:[%s312 + $0x1f] sm:$0x1]
          %v1477 = vlaneseq
          %v1478 = vshrl.u32 %v1477, 7
          %v1479 = vsub.s32 0, %v1478
          %v1480 = vrot.slane %v1476, %v1479
          %v1481 = vmul.f32 %v1421, %v1480
          %v1482 = vmul.f32 %v1422, %v1480
          %v1483 = vadd.f32 %v1474, %v1481
          %v1484 = vadd.f32 %v1475, %v1482
          %v1485 = vld [vmem:[%s312 + $0x20] sm:$0x1]
          %1486 = vrot.lane.b32.xlu0 %v1421, 120
          %v1487 = vpop.permute.xlu0 %1486
          %1488 = vrot.lane.b32.xlu0 %v1422, 120
          %v1489 = vpop.permute.xlu0 %1488
          %v1492 = vsel %vm1018, %v1487, 0.0
          %v1493 = vsel %vm1018, %v1489, 0.0
          %v1494 = vlaneseq
          %v1495 = vshrl.u32 %v1494, 7
          %v1496 = vsub.s32 0, %v1495
          %v1497 = vrot.slane %v1485, %v1496
          %v1498 = vmul.f32 %v1492, %v1497
          %v1499 = vmul.f32 %v1493, %v1497
          %v1500 = vadd.f32 %v1483, %v1498
          %v1501 = vadd.f32 %v1484, %v1499
          %v1502 = vld [vmem:[%s312 + $0x21] sm:$0x1]
          %1503 = vrot.lane.b32.xlu0 %v1421, 112
          %v1504 = vpop.permute.xlu0 %1503
          %1505 = vrot.lane.b32.xlu0 %v1422, 112
          %v1506 = vpop.permute.xlu0 %1505
          %v1509 = vsel %vm1036, %v1504, 0.0
          %v1510 = vsel %vm1036, %v1506, 0.0
          %v1511 = vlaneseq
          %v1512 = vshrl.u32 %v1511, 7
          %v1513 = vsub.s32 0, %v1512
          %v1514 = vrot.slane %v1502, %v1513
          %v1515 = vmul.f32 %v1509, %v1514
          %v1516 = vmul.f32 %v1510, %v1514
          %v1517 = vadd.f32 %v1500, %v1515
          %v1518 = vadd.f32 %v1501, %v1516
          %v1519 = vld [vmem:[%s312 + $0x22] sm:$0x1]
          %1520 = vrot.lane.b32.xlu0 %v1421, 104
          %v1521 = vpop.permute.xlu0 %1520
          %1522 = vrot.lane.b32.xlu0 %v1422, 104
          %v1523 = vpop.permute.xlu0 %1522
          %v1526 = vsel %vm1054, %v1521, 0.0
          %v1527 = vsel %vm1054, %v1523, 0.0
          %v1528 = vlaneseq
          %v1529 = vshrl.u32 %v1528, 7
          %v1530 = vsub.s32 0, %v1529
          %v1531 = vrot.slane %v1519, %v1530
          %v1532 = vmul.f32 %v1526, %v1531
          %v1533 = vmul.f32 %v1527, %v1531
          %v1534 = vadd.f32 %v1517, %v1532
          %v1535 = vadd.f32 %v1518, %v1533
          %v1536 = vrot.slane %v316, 2
          %v1537 = vrot.slane %v317, 2
          %vm1540 = vcmask 1045504
          %v1541 = vsel %vm1540, %v1536, 0.0
          %v1542 = vsel %vm1540, %v1537, 0.0
          %v1543 = vld [vmem:[%s312 + $0x23] sm:$0x1]
          %1546 = vrot.lane.b32.xlu0 %v1541, 24
          %v1547 = vpop.permute.xlu0 %1546
          %1548 = vrot.lane.b32.xlu0 %v1542, 24
          %v1549 = vpop.permute.xlu0 %1548
          %v1552 = vsel %vm955, 0.0, %v1547
          %v1553 = vsel %vm955, 0.0, %v1549
          %v1554 = vlaneseq
          %v1555 = vshrl.u32 %v1554, 7
          %v1556 = vsub.s32 0, %v1555
          %v1557 = vrot.slane %v1543, %v1556
          %v1558 = vmul.f32 %v1552, %v1557
          %v1559 = vmul.f32 %v1553, %v1557
          %v1560 = vadd.f32 %v1534, %v1558
          %v1561 = vadd.f32 %v1535, %v1559
          %v1562 = vld [vmem:[%s312 + $0x24] sm:$0x1]
          %1563 = vrot.lane.b32.xlu0 %v1541, 16
          %v1564 = vpop.permute.xlu0 %1563
          %1565 = vrot.lane.b32.xlu0 %v1542, 16
          %v1566 = vpop.permute.xlu0 %1565
          %v1569 = vsel %vm973, 0.0, %v1564
          %v1570 = vsel %vm973, 0.0, %v1566
          %v1571 = vlaneseq
          %v1572 = vshrl.u32 %v1571, 7
          %v1573 = vsub.s32 0, %v1572
          %v1574 = vrot.slane %v1562, %v1573
          %v1575 = vmul.f32 %v1569, %v1574
          %v1576 = vmul.f32 %v1570, %v1574
          %v1577 = vadd.f32 %v1560, %v1575
          %v1578 = vadd.f32 %v1561, %v1576
          %v1579 = vld [vmem:[%s312 + $0x25] sm:$0x1]
          %1580 = vrot.lane.b32.xlu0 %v1541, 8
          %v1581 = vpop.permute.xlu0 %1580
          %1582 = vrot.lane.b32.xlu0 %v1542, 8
          %v1583 = vpop.permute.xlu0 %1582
          %v1586 = vsel %vm991, 0.0, %v1581
          %v1587 = vsel %vm991, 0.0, %v1583
          %v1588 = vlaneseq
          %v1589 = vshrl.u32 %v1588, 7
          %v1590 = vsub.s32 0, %v1589
          %v1591 = vrot.slane %v1579, %v1590
          %v1592 = vmul.f32 %v1586, %v1591
          %v1593 = vmul.f32 %v1587, %v1591
          %v1594 = vadd.f32 %v1577, %v1592
          %v1595 = vadd.f32 %v1578, %v1593
          %v1596 = vld [vmem:[%s312 + $0x26] sm:$0x1]
          %v1597 = vlaneseq
          %v1598 = vshrl.u32 %v1597, 7
          %v1599 = vsub.s32 0, %v1598
          %v1600 = vrot.slane %v1596, %v1599
          %v1601 = vmul.f32 %v1541, %v1600
          %v1602 = vmul.f32 %v1542, %v1600
          %v1603 = vadd.f32 %v1594, %v1601
          %v1604 = vadd.f32 %v1595, %v1602
          %v1605 = vld [vmem:[%s312 + $0x27] sm:$0x1]
          %1606 = vrot.lane.b32.xlu0 %v1541, 120
          %v1607 = vpop.permute.xlu0 %1606
          %1608 = vrot.lane.b32.xlu0 %v1542, 120
          %v1609 = vpop.permute.xlu0 %1608
          %v1612 = vsel %vm1018, %v1607, 0.0
          %v1613 = vsel %vm1018, %v1609, 0.0
          %v1614 = vlaneseq
          %v1615 = vshrl.u32 %v1614, 7
          %v1616 = vsub.s32 0, %v1615
          %v1617 = vrot.slane %v1605, %v1616
          %v1618 = vmul.f32 %v1612, %v1617
          %v1619 = vmul.f32 %v1613, %v1617
          %v1620 = vadd.f32 %v1603, %v1618
          %v1621 = vadd.f32 %v1604, %v1619
          %v1622 = vld [vmem:[%s312 + $0x28] sm:$0x1]
          %1623 = vrot.lane.b32.xlu0 %v1541, 112
          %v1624 = vpop.permute.xlu0 %1623
          %1625 = vrot.lane.b32.xlu0 %v1542, 112
          %v1626 = vpop.permute.xlu0 %1625
          %v1629 = vsel %vm1036, %v1624, 0.0
          %v1630 = vsel %vm1036, %v1626, 0.0
          %v1631 = vlaneseq
          %v1632 = vshrl.u32 %v1631, 7
          %v1633 = vsub.s32 0, %v1632
          %v1634 = vrot.slane %v1622, %v1633
          %v1635 = vmul.f32 %v1629, %v1634
          %v1636 = vmul.f32 %v1630, %v1634
          %v1637 = vadd.f32 %v1620, %v1635
          %v1638 = vadd.f32 %v1621, %v1636
          %v1639 = vld [vmem:[%s312 + $0x29] sm:$0x1]
          %1640 = vrot.lane.b32.xlu0 %v1541, 104
          %v1641 = vpop.permute.xlu0 %1640
          %1642 = vrot.lane.b32.xlu0 %v1542, 104
          %v1643 = vpop.permute.xlu0 %1642
          %v1646 = vsel %vm1054, %v1641, 0.0
          %v1647 = vsel %vm1054, %v1643, 0.0
          %v1648 = vlaneseq
          %v1649 = vshrl.u32 %v1648, 7
          %v1650 = vsub.s32 0, %v1649
          %v1651 = vrot.slane %v1639, %v1650
          %v1652 = vmul.f32 %v1646, %v1651
          %v1653 = vmul.f32 %v1647, %v1651
          %v1654 = vadd.f32 %v1637, %v1652
          %v1655 = vadd.f32 %v1638, %v1653
          %v1656 = vrot.slane %v316, 3
          %v1657 = vrot.slane %v317, 3
          %vm1660 = vcmask 1044480
          %v1661 = vsel %vm1660, %v1656, 0.0
          %v1662 = vsel %vm1660, %v1657, 0.0
          %v1663 = vld [vmem:[%s312 + $0x2a] sm:$0x1]
          %1666 = vrot.lane.b32.xlu0 %v1661, 24
          %v1667 = vpop.permute.xlu0 %1666
          %1668 = vrot.lane.b32.xlu0 %v1662, 24
          %v1669 = vpop.permute.xlu0 %1668
          %v1672 = vsel %vm955, 0.0, %v1667
          %v1673 = vsel %vm955, 0.0, %v1669
          %v1674 = vlaneseq
          %v1675 = vshrl.u32 %v1674, 7
          %v1676 = vsub.s32 0, %v1675
          %v1677 = vrot.slane %v1663, %v1676
          %v1678 = vmul.f32 %v1672, %v1677
          %v1679 = vmul.f32 %v1673, %v1677
          %v1680 = vadd.f32 %v1654, %v1678
          %v1681 = vadd.f32 %v1655, %v1679
          %v1682 = vld [vmem:[%s312 + $0x2b] sm:$0x1]
          %1683 = vrot.lane.b32.xlu0 %v1661, 16
          %v1684 = vpop.permute.xlu0 %1683
          %1685 = vrot.lane.b32.xlu0 %v1662, 16
          %v1686 = vpop.permute.xlu0 %1685
          %v1689 = vsel %vm973, 0.0, %v1684
          %v1690 = vsel %vm973, 0.0, %v1686
          %v1691 = vlaneseq
          %v1692 = vshrl.u32 %v1691, 7
          %v1693 = vsub.s32 0, %v1692
          %v1694 = vrot.slane %v1682, %v1693
          %v1695 = vmul.f32 %v1689, %v1694
          %v1696 = vmul.f32 %v1690, %v1694
          %v1697 = vadd.f32 %v1680, %v1695
          %v1698 = vadd.f32 %v1681, %v1696
          %v1699 = vld [vmem:[%s312 + $0x2c] sm:$0x1]
          %1700 = vrot.lane.b32.xlu0 %v1661, 8
          %v1701 = vpop.permute.xlu0 %1700
          %1702 = vrot.lane.b32.xlu0 %v1662, 8
          %v1703 = vpop.permute.xlu0 %1702
          %v1706 = vsel %vm991, 0.0, %v1701
          %v1707 = vsel %vm991, 0.0, %v1703
          %v1708 = vlaneseq
          %v1709 = vshrl.u32 %v1708, 7
          %v1710 = vsub.s32 0, %v1709
          %v1711 = vrot.slane %v1699, %v1710
          %v1712 = vmul.f32 %v1706, %v1711
          %v1713 = vmul.f32 %v1707, %v1711
          %v1714 = vadd.f32 %v1697, %v1712
          %v1715 = vadd.f32 %v1698, %v1713
          %v1716 = vld [vmem:[%s312 + $0x2d] sm:$0x1]
          %v1717 = vlaneseq
          %v1718 = vshrl.u32 %v1717, 7
          %v1719 = vsub.s32 0, %v1718
          %v1720 = vrot.slane %v1716, %v1719
          %v1721 = vmul.f32 %v1661, %v1720
          %v1722 = vmul.f32 %v1662, %v1720
          %v1723 = vadd.f32 %v1714, %v1721
          %v1724 = vadd.f32 %v1715, %v1722
          %v1725 = vld [vmem:[%s312 + $0x2e] sm:$0x1]
          %1726 = vrot.lane.b32.xlu0 %v1661, 120
          %v1727 = vpop.permute.xlu0 %1726
          %1728 = vrot.lane.b32.xlu0 %v1662, 120
          %v1729 = vpop.permute.xlu0 %1728
          %v1732 = vsel %vm1018, %v1727, 0.0
          %v1733 = vsel %vm1018, %v1729, 0.0
          %v1734 = vlaneseq
          %v1735 = vshrl.u32 %v1734, 7
          %v1736 = vsub.s32 0, %v1735
          %v1737 = vrot.slane %v1725, %v1736
          %v1738 = vmul.f32 %v1732, %v1737
          %v1739 = vmul.f32 %v1733, %v1737
          %v1740 = vadd.f32 %v1723, %v1738
          %v1741 = vadd.f32 %v1724, %v1739
          %v1742 = vld [vmem:[%s312 + $0x2f] sm:$0x1]
          %1743 = vrot.lane.b32.xlu0 %v1661, 112
          %v1744 = vpop.permute.xlu0 %1743
          %1745 = vrot.lane.b32.xlu0 %v1662, 112
          %v1746 = vpop.permute.xlu0 %1745
          %v1749 = vsel %vm1036, %v1744, 0.0
          %v1750 = vsel %vm1036, %v1746, 0.0
          %v1751 = vlaneseq
          %v1752 = vshrl.u32 %v1751, 7
          %v1753 = vsub.s32 0, %v1752
          %v1754 = vrot.slane %v1742, %v1753
          %v1755 = vmul.f32 %v1749, %v1754
          %v1756 = vmul.f32 %v1750, %v1754
          %v1757 = vadd.f32 %v1740, %v1755
          %v1758 = vadd.f32 %v1741, %v1756
          %v1759 = vld [vmem:[%s312 + $0x30] sm:$0x1]
          %1760 = vrot.lane.b32.xlu0 %v1661, 104
          %v1761 = vpop.permute.xlu0 %1760
          %1762 = vrot.lane.b32.xlu0 %v1662, 104
          %v1763 = vpop.permute.xlu0 %1762
          %v1766 = vsel %vm1054, %v1761, 0.0
          %v1767 = vsel %vm1054, %v1763, 0.0
          %v1768 = vlaneseq
          %v1769 = vshrl.u32 %v1768, 7
          %v1770 = vsub.s32 0, %v1769
          %v1771 = vrot.slane %v1759, %v1770
          %v1772 = vmul.f32 %v1766, %v1771
          %v1773 = vmul.f32 %v1767, %v1771
          %v1774 = vadd.f32 %v1757, %v1772
          %v1775 = vadd.f32 %v1758, %v1773
          %v1776 = vmul.f32 %v314, %v1774
          %v1777 = vmul.f32 %v315, %v1775
          %vm1778 = vcmask 523264
          %1779 = vst.msk [vmem:[%s305] sm:$0xff] %vm1778, %v1776
          %1780 = vst.msk [vmem:[%s305 + $0x8] sm:$0xff] %vm1778, %v1777
        $region120: #{tpu_custom_call.1} parent=99 // pred_fallthru
          _
        %s1781 = sand.u32 %s121, 1
        %s1782 = scalar_lea.sflag [#allocation5], %s1781
        %s1783 = sand.u32 %s121, 1
        %s1784 = smul.addr %s1783, 16
        %s1785 = scalar_lea.vmem [#allocation4], %s1784
        // Predicated region
        $region121: #{tpu_custom_call.1} parent=99 // pred_check
          %p1786 = pneg %p131
        $region122: #{tpu_custom_call.1} parent=99 // pred_check_branch
          %1788 = sbr.rel (%p1786) target = $region124
        $region123: #{tpu_custom_call.1} parent=99 // pred_region
          %s1789 = smul.u32 2, %s22
          %s1791 = ssub.s32 256, 256
          %1792 = vsyncadd %s1782, %s1791
          %s1793 = smul.addr %s1789, 8
          %s1794 = sadd.s32 %s21, %s1793
          %s1795 = smul.addr %s1794, 128
          %s1796 = scalar_lea.hbm %s3, %s1795
          %s1797 = sshll.u32 %s1785, 4
          %s1798 = int_to_ptr.vmem [resolvable:$true] %s1797
          %1803 = dma.vmem_to_hbm [thread:$0]  %s1798, 256, %s1796, %s1782, 128, 1024, 8
        $region124: #{tpu_custom_call.1} parent=99 // pred_fallthru
          _
      $region100: #{tpu_custom_call.1} parent=5 // pred_fallthru
        _
      %p1804 = scmp.le.s32.totalorder 2, %s12
      // Predicated region
      $region125: #{tpu_custom_call.1} parent=5 // pred_check
        %p1805 = pneg %p1804
      $region126: #{tpu_custom_call.1} parent=5 // pred_check_branch
        %1807 = sbr.rel (%p1805) target = $region128
      $region127: #{tpu_custom_call.1} parent=5 // pred_region
        %s1808 = ssub.s32 %s12, 2
        // Predicated region
        $region129: #{tpu_custom_call.1} parent=127 // pred_check
          %p1809 = pneg %p137
        $region130: #{tpu_custom_call.1} parent=127 // pred_check_branch
          %1811 = sbr.rel (%p1809) target = $region132
        $region131: #{tpu_custom_call.1} parent=127 // pred_region
          %s1812 = sand.u32 %s122, 1
          %s1813 = scalar_lea.sflag [#allocation5], %s1812
          %s1814 = sand.u32 %s122, 1
          %s1815 = smul.addr %s1814, 16
          %s1816 = scalar_lea.vmem [#allocation4], %s1815
          %1817 = dma.done %s1813, 256
        $region132: #{tpu_custom_call.1} parent=127 // pred_fallthru
          _
      $region128: #{tpu_custom_call.1} parent=5 // pred_fallthru
        _
    $region6: #{tpu_custom_call.1} parent=1 // loop_footer
      %s16 = sadd.s32 1, %s12
    $region7: #{tpu_custom_call.1} parent=1 // loop_footer_branch
      %11 = sbr.rel target = $region3
    $region8: #{tpu_custom_call.1} parent=1 // loop_exit
      _
    %1818 = vsyncpa [#allocation5], 1
    %s1819 = scalar_lea.sflag [#allocation5], 1
    %1820 = vsyncpa %s1819, 1

</llo_original>
